<compile_context>
chip_gen: v5e
topology: v5e:2x2
jax: 0.10.0
libtpu: 0.0.40
codegen_flags: <defaults>
</compile_context>

<pallas_src>
import functools
import math

import jax
import jax.numpy as jnp
from jax.experimental import pallas as pl
from jax.experimental.pallas import tpu as pltpu


def _vmem_limit_bytes():
    cap = 64 * 1024 * 1024
    try:
        cap = int(pltpu.get_tpu_info().vmem_capacity_bytes)
    except Exception:
        pass
    # Leave headroom for compiler-internal scratch / double buffers:
    # 64 MiB physical (v7x)  -> ~52 MiB;  128 MiB (v5e/v6e) -> ~104-109 MiB.
    return max(32 * 1024 * 1024, min(cap - 12 * 1024 * 1024, int(cap * 0.85)))


_VMEM_LIMIT = _vmem_limit_bytes()


# ---------------------------------------------------------------------------
# Kernel 1: 3x3 'same' conv (stride 1) + per-image BN partial stats,
#           with the previous layer's BN+ReLU optionally fused into the load.
# ---------------------------------------------------------------------------
def _conv3x3_stats_kernel(x_ref, scale_ref, shift_ref, w_ref, z_ref, stats_ref,
                          xpad_ref, *, apply_input_act, row_chunks):
    """
    x_ref    : (1, H, W, Cin)   bf16  input image (block input or raw prev conv out)
    scale_ref: (1, Cin)         f32   fused BN scale for the INPUT channels
    shift_ref: (1, Cin)         f32   fused BN shift for the INPUT channels
    w_ref    : (9*Cin, Cout)    bf16  (kh, kw, cin) row-major flattened weights
    z_ref    : (1, H*W, Cout)   bf16  raw conv output (pre-BN)
    stats_ref: (1, 8, Cout)     f32   rows 0/1 = [sum, sum_sq] over H*W, rest 0
    xpad_ref : (H+2, W+2, Cin)  bf16  VMEM scratch: zero halo + (activated) input
    """
    _, H, W, Cin = x_ref.shape
    Cout = z_ref.shape[-1]

    x = x_ref[0]                                            # (H, W, Cin) bf16
    if apply_input_act:
        # Previous layer's BN + ReLU, applied BEFORE zero padding (matches
        # PyTorch: padding zeros are appended after the ReLU output).
        xf = (x.astype(jnp.float32) * scale_ref[...].reshape(1, 1, Cin)
              + shift_ref[...].reshape(1, 1, Cin))
        x = jnp.maximum(xf, 0.0).astype(x_ref.dtype)

    # Build the 1-pixel zero halo in the VMEM scratch (bf16).  All stores slice
    # only the leading (untiled) dim; halo stays literal zero.
    zrow = jnp.zeros((1, W + 2, Cin), xpad_ref.dtype)
    zcol = jnp.zeros((H, 1, Cin), xpad_ref.dtype)
    xpad_ref[0:1] = zrow
    xpad_ref[H + 1:H + 2] = zrow
    xpad_ref[1:H + 1] = jnp.concatenate([zcol, x, zcol], axis=1)

    use_im2col = Cin < 128   # deep stages: K = Cin already saturates the MXU

    s_tot = jnp.zeros((1, Cout), jnp.float32)
    ss_tot = jnp.zeros((1, Cout), jnp.float32)

    # Static row-chunk loop bounds the im2col / accumulator VMEM footprint.
    for r0, th in row_chunks:
        if use_im2col:
            # 9 shifted taps concatenated on the lane axis -> one big-K matmul.
            taps = [xpad_ref[r0 + kh:r0 + kh + th, kw:kw + W, :]
                    for kh in range(3) for kw in range(3)]
            patches = jnp.concatenate(taps, axis=-1).reshape(th * W, 9 * Cin)
            acc = jnp.dot(patches, w_ref[...],
                          preferred_element_type=jnp.float32)
        else:
            acc = jnp.zeros((th * W, Cout), jnp.float32)
            for kh in range(3):
                for kw in range(3):
                    tap = xpad_ref[r0 + kh:r0 + kh + th, kw:kw + W, :]
                    wk = w_ref[(kh * 3 + kw) * Cin:(kh * 3 + kw + 1) * Cin, :]
                    acc = acc + jnp.dot(tap.reshape(th * W, Cin), wk,
                                        preferred_element_type=jnp.float32)

        # NOTE: conv bias intentionally omitted — a per-channel constant is
        # cancelled exactly by the following BatchNorm's mean subtraction.
        s_tot = s_tot + jnp.sum(acc, axis=0, keepdims=True)
        ss_tot = ss_tot + jnp.sum(acc * acc, axis=0, keepdims=True)
        z_ref[0, r0 * W:(r0 + th) * W, :] = acc.astype(z_ref.dtype)

    stats_ref[...] = jnp.concatenate(
        [s_tot, ss_tot, jnp.zeros((6, Cout), jnp.float32)], axis=0
    ).reshape(1, 8, Cout)


# ---------------------------------------------------------------------------
# Kernel 2: fused affine BatchNorm + ReLU (only used for the final layer).
# ---------------------------------------------------------------------------
def _bn_relu_kernel(z_ref, scale_ref, shift_ref, o_ref):
    C = z_ref.shape[-1]
    z = z_ref[...].astype(jnp.float32)
    y = z * scale_ref[...].reshape(1, 1, C) + shift_ref[...].reshape(1, 1, C)
    o_ref[...] = jnp.maximum(y, 0.0).astype(o_ref.dtype)


# ---------------------------------------------------------------------------
# Host-side helpers (all static-shape Python, evaluated at trace time).
# ---------------------------------------------------------------------------
def _row_chunks(H, W, Cin, Cout, max_bytes=6 * 1024 * 1024):
    """Static (row_start, n_rows) chunks bounding per-chunk VMEM usage."""
    k = 9 * Cin if Cin < 128 else Cin
    per_row = W * (k * 2 + Cout * 6)          # bf16 patches/tap + f32 acc + bf16 out
    th = max(1, min(H, max_bytes // max(per_row, 1)))
    chunks, r = [], 0
    while r < H:
        t = min(th, H - r)
        chunks.append((r, t))
        r += t
    return tuple(chunks)


def _bn_tile_rows(HW, Cout, max_bytes=8 * 1024 * 1024):
    """Largest (8-aligned) divisor of H*W whose double-buffered tile fits."""
    per_row = Cout * (2 + 4) * 2              # bf16 in + f32 out, double-buffered
    cap = max(8, max_bytes // max(per_row, 1))
    if HW <= cap:
        return HW
    start = min(HW, cap)
    start -= start % 8
    for d in range(start, 7, -8):
        if HW % d == 0:
            return d
    return HW


def _bn_scale_shift(stats, hw, gamma, beta, eps=1e-5):
    """Per-channel batch mean/var -> fused (scale, shift).  Tiny, plain JAX.

    Per-image [sum, sum_sq] are combined with a parallel-variance formula so
    the cancellation is only per-image, not over the whole batch.
    """
    s = stats[:, 0, :]                        # (N, C)
    ss = stats[:, 1, :]                       # (N, C)
    n_img = s.shape[0]
    cnt = jnp.float32(hw)
    total = cnt * n_img
    mean_i = s / cnt
    m2_i = jnp.maximum(ss - s * mean_i, 0.0)
    mean = jnp.sum(s, axis=0) / total
    m2 = jnp.sum(m2_i, axis=0) + cnt * jnp.sum((mean_i - mean) ** 2, axis=0)
    var = m2 / total                          # biased variance (PyTorch train BN)
    inv = jax.lax.rsqrt(var + eps)
    scale = gamma.astype(jnp.float32) * inv
    shift = beta.astype(jnp.float32) - mean * scale
    C = scale.shape[0]
    return scale.reshape(1, C), shift.reshape(1, C)


# ---------------------------------------------------------------------------
# pallas_call wrappers
# ---------------------------------------------------------------------------
def _conv3x3_pass(x_nhwc, scale_in, shift_in, w, *, apply_input_act):
    """Conv3x3 (no bias) + per-image BN stats; optional fused input BN+ReLU."""
    N, H, W, Cin = x_nhwc.shape
    Cout = w.shape[-1]
    w9 = w.reshape(9 * Cin, Cout).astype(jnp.bfloat16)
    kernel = functools.partial(
        _conv3x3_stats_kernel,
        apply_input_act=apply_input_act,
        row_chunks=_row_chunks(H, W, Cin, Cout))
    z, stats = pl.pallas_call(
        kernel,
        grid=(N,),
        in_specs=[
            pl.BlockSpec((1, H, W, Cin), lambda n: (n, 0, 0, 0)),
            pl.BlockSpec((1, Cin), lambda n: (0, 0)),
            pl.BlockSpec((1, Cin), lambda n: (0, 0)),
            # TODO(synk): at very wide stages single-buffer this weight block
            # (pipeline_mode=pl.Buffered(1)) or split Cout into a grid axis.
            pl.BlockSpec((9 * Cin, Cout), lambda n: (0, 0)),
        ],
        out_specs=(
            pl.BlockSpec((1, H * W, Cout), lambda n: (n, 0, 0)),
            pl.BlockSpec((1, 8, Cout), lambda n: (n, 0, 0)),
        ),
        out_shape=(
            jax.ShapeDtypeStruct((N, H * W, Cout), jnp.bfloat16),
            jax.ShapeDtypeStruct((N, 8, Cout), jnp.float32),
        ),
        scratch_shapes=[pltpu.VMEM((H + 2, W + 2, Cin), jnp.bfloat16)],
        compiler_params=pltpu.CompilerParams(
            dimension_semantics=("parallel",),
            vmem_limit_bytes=_VMEM_LIMIT),
    )(x_nhwc, scale_in, shift_in, w9)
    return z, stats


def _bn_relu_pass(z, scale, shift, *, out_dtype):
    """Final BN + ReLU pass over (N, H*W, Cout), tiled as large as fits."""
    N, HW, Cout = z.shape
    TH = _bn_tile_rows(HW, Cout)
    # TODO(synk): for Cout < 128 a lane-dense (N, H, W*Cout) repack would turn
    # masked vst.msk stores into dense ones (biggest win on v5e).
    return pl.pallas_call(
        _bn_relu_kernel,
        grid=(N, HW // TH),
        in_specs=[
            pl.BlockSpec((1, TH, Cout), lambda n, t: (n, t, 0)),
            pl.BlockSpec((1, Cout), lambda n, t: (0, 0)),
            pl.BlockSpec((1, Cout), lambda n, t: (0, 0)),
        ],
        out_specs=pl.BlockSpec((1, TH, Cout), lambda n, t: (n, t, 0)),
        out_shape=jax.ShapeDtypeStruct((N, HW, Cout), out_dtype),
        compiler_params=pltpu.CompilerParams(
            dimension_semantics=("parallel", "parallel"),
            vmem_limit_bytes=_VMEM_LIMIT),
    )(z, scale, shift)


# ---------------------------------------------------------------------------
# Parameters + forward
# ---------------------------------------------------------------------------
def init_conv_block_params(key, ch_in, ch_out):
    """Deterministic init matching the shapes of the PyTorch module."""
    k1, k2, k3, k4 = jax.random.split(key, 4)

    def conv_init(kw_key, kb_key, cin, cout):
        fan_in = cin * 3 * 3
        bound = 1.0 / math.sqrt(fan_in)
        # weight stored as (3, 3, Cin, Cout)  (PyTorch is (Cout, Cin, 3, 3))
        w = jax.random.uniform(kw_key, (3, 3, cin, cout), jnp.float32,
                               minval=-bound, maxval=bound)
        b = jax.random.uniform(kb_key, (cout,), jnp.float32,
                               minval=-bound, maxval=bound)
        return w, b

    # Conv biases kept for parameter parity but NOT applied: a per-channel
    # constant is cancelled exactly by training-mode BN mean subtraction.
    w1, b1 = conv_init(k1, k2, ch_in, ch_out)
    w2, b2 = conv_init(k3, k4, ch_out, ch_out)
    return dict(w1=w1, b1=b1, g1=jnp.ones((ch_out,), jnp.float32),
                be1=jnp.zeros((ch_out,), jnp.float32),
                w2=w2, b2=b2, g2=jnp.ones((ch_out,), jnp.float32),
                be2=jnp.zeros((ch_out,), jnp.float32))


@jax.jit
def conv_block_forward(x_nchw, params):
    """Forward of conv_block.  Input/output are NCHW like the PyTorch module."""
    # TODO(synk): in a full U-Net keep activations NHWC end-to-end and drop
    # both transposes (each is an extra full HBM round trip).
    x = jnp.transpose(x_nchw, (0, 2, 3, 1))                # NCHW -> NHWC
    N, H, W, Cin = x.shape
    Cout = params["w1"].shape[-1]

    x_bf = x.astype(jnp.bfloat16)
    ident_scale = jnp.ones((1, Cin), jnp.float32)
    ident_shift = jnp.zeros((1, Cin), jnp.float32)

    # layer 1: conv + BN partial stats (no input activation)
    z1, st1 = _conv3x3_pass(x_bf, ident_scale, ident_shift, params["w1"],
                            apply_input_act=False)
    scale1, shift1 = _bn_scale_shift(st1, H * W, params["g1"], params["be1"])

    # layer 2: conv with layer-1 BN + ReLU fused into its input load
    z2, st2 = _conv3x3_pass(z1.reshape(N, H, W, Cout), scale1, shift1,
                            params["w2"], apply_input_act=True)
    scale2, shift2 = _bn_scale_shift(st2, H * W, params["g2"], params["be2"])

    # final BN + ReLU (the only remaining standalone elementwise pass)
    y = _bn_relu_pass(z2, scale2, shift2, out_dtype=jnp.float32)
    return jnp.transpose(y.reshape(N, H, W, Cout), (0, 3, 1, 2))   # -> NCHW


if __name__ == "__main__":
    key = jax.random.PRNGKey(0)
    kx, kp = jax.random.split(key)

    ch_in, ch_out = 4, 8
    N, H, W = 2, 16, 16

    x = jax.random.normal(kx, (N, ch_in, H, W), jnp.float32)
    params = init_conv_block_params(kp, ch_in, ch_out)

    out = conv_block_forward(x, params)
    out = jax.block_until_ready(out)

    assert out.shape == (N, ch_out, H, W), out.shape
    assert bool(jnp.all(jnp.isfinite(out)))
    assert bool(jnp.all(out >= 0.0))  # ReLU output

    print("KERNEL_OK")
</pallas_src>

<mosaic_0001>
module attributes {stable_mosaic.version = 11 : i64} {
  func.func @_bn_relu_kernel(%arg0: i32, %arg1: i32, %arg2: memref<1x256x8xbf16, #tpu.memory_space<vmem>>, %arg3: memref<1x8xf32, #tpu.memory_space<vmem>>, %arg4: memref<1x8xf32, #tpu.memory_space<vmem>>, %arg5: memref<1x256x8xf32, #tpu.memory_space<vmem>>) attributes {dimension_semantics = [#tpu.dimension_semantics<parallel>, #tpu.dimension_semantics<parallel>], iteration_bounds = array<i64: 2, 1>, scalar_prefetch = 0 : i64, scratch_operands = 0 : i64, tpu.core_type = #tpu.core_type<tc>, window_params = [{transform_indices = @transform_0, window_bounds = array<i64: 1, 256, 8>}, {pipeline_mode = #tpu.pipeline_mode<synchronous>, transform_indices = @transform_1, window_bounds = array<i64: 1, 8>}, {pipeline_mode = #tpu.pipeline_mode<synchronous>, transform_indices = @transform_2, window_bounds = array<i64: 1, 8>}, {transform_indices = @transform_3, window_bounds = array<i64: 1, 256, 8>}]} {
    %c0 = arith.constant 0 : index
    %c0_0 = arith.constant 0 : index
    %c0_1 = arith.constant 0 : index
    %0 = vector.load %arg2[%c0, %c0_0, %c0_1] : memref<1x256x8xbf16, #tpu.memory_space<vmem>>, vector<1x256x8xbf16>
    %1 = arith.extf %0 : vector<1x256x8xbf16> to vector<1x256x8xf32>
    %c0_2 = arith.constant 0 : index
    %c0_3 = arith.constant 0 : index
    %2 = vector.load %arg3[%c0_2, %c0_3] : memref<1x8xf32, #tpu.memory_space<vmem>>, vector<1x8xf32>
    %3 = vector.shape_cast %2 : vector<1x8xf32> to vector<1x1x8xf32>
    %4 = vector.broadcast %3 : vector<1x1x8xf32> to vector<1x256x8xf32>
    %5 = arith.mulf %1, %4 : vector<1x256x8xf32>
    %c0_4 = arith.constant 0 : index
    %c0_5 = arith.constant 0 : index
    %6 = vector.load %arg4[%c0_4, %c0_5] : memref<1x8xf32, #tpu.memory_space<vmem>>, vector<1x8xf32>
    %7 = vector.shape_cast %6 : vector<1x8xf32> to vector<1x1x8xf32>
    %8 = vector.broadcast %7 : vector<1x1x8xf32> to vector<1x256x8xf32>
    %9 = arith.addf %5, %8 : vector<1x256x8xf32>
    %cst = arith.constant 0.000000e+00 : f32
    %10 = vector.broadcast %cst : f32 to vector<1x256x8xf32>
    %11 = arith.maximumf %9, %10 : vector<1x256x8xf32>
    %c0_6 = arith.constant 0 : index
    %c0_7 = arith.constant 0 : index
    %c0_8 = arith.constant 0 : index
    %12 = vector.load %arg5[%c0_6, %c0_7, %c0_8] : memref<1x256x8xf32, #tpu.memory_space<vmem>>, vector<1x256x8xf32>
    tpu.vector_store %arg5[%c0_6, %c0_7, %c0_8], %11 {strides = array<i32>} : memref<1x256x8xf32, #tpu.memory_space<vmem>>, vector<1x256x8xf32>,
    return
  }
  func.func @transform_0(%arg0: i32, %arg1: i32) -> (i32, i32, i32) {
    %c0_i32 = arith.constant 0 : i32
    %c0_i32_0 = arith.constant 0 : i32
    return %arg0, %arg1, %c0_i32 : i32, i32, i32
  }
  func.func @transform_1(%arg0: i32, %arg1: i32) -> (i32, i32) {
    %c0_i32 = arith.constant 0 : i32
    %c0_i32_0 = arith.constant 0 : i32
    %c0_i32_1 = arith.constant 0 : i32
    return %c0_i32, %c0_i32_0 : i32, i32
  }
  func.func @transform_2(%arg0: i32, %arg1: i32) -> (i32, i32) {
    %c0_i32 = arith.constant 0 : i32
    %c0_i32_0 = arith.constant 0 : i32
    %c0_i32_1 = arith.constant 0 : i32
    return %c0_i32, %c0_i32_0 : i32, i32
  }
  func.func @transform_3(%arg0: i32, %arg1: i32) -> (i32, i32, i32) {
    %c0_i32 = arith.constant 0 : i32
    %c0_i32_0 = arith.constant 0 : i32
    return %arg0, %arg1, %c0_i32 : i32, i32, i32
  }
}

module attributes {stable_mosaic.version = 11 : i64} {
  func.func @_conv3x3_stats_kernel(%arg0: i32, %arg1: memref<1x16x16x4xbf16, #tpu.memory_space<vmem>>, %arg2: memref<1x4xf32, #tpu.memory_space<vmem>>, %arg3: memref<1x4xf32, #tpu.memory_space<vmem>>, %arg4: memref<36x8xbf16, #tpu.memory_space<vmem>>, %arg5: memref<1x256x8xbf16, #tpu.memory_space<vmem>>, %arg6: memref<1x8x8xf32, #tpu.memory_space<vmem>>, %arg7: memref<18x18x4xbf16, #tpu.memory_space<vmem>>) attributes {dimension_semantics = [#tpu.dimension_semantics<parallel>], iteration_bounds = array<i64: 2>, scalar_prefetch = 0 : i64, scratch_operands = 1 : i64, tpu.core_type = #tpu.core_type<tc>, window_params = [{transform_indices = @transform_0, window_bounds = array<i64: 1, 16, 16, 4>}, {pipeline_mode = #tpu.pipeline_mode<synchronous>, transform_indices = @transform_1, window_bounds = array<i64: 1, 4>}, {pipeline_mode = #tpu.pipeline_mode<synchronous>, transform_indices = @transform_2, window_bounds = array<i64: 1, 4>}, {pipeline_mode = #tpu.pipeline_mode<synchronous>, transform_indices = @transform_3, window_bounds = array<i64: 36, 8>}, {transform_indices = @transform_4, window_bounds = array<i64: 1, 256, 8>}, {transform_indices = @transform_5, window_bounds = array<i64: 1, 8, 8>}]} {
    %c0 = arith.constant 0 : index
    %c0_0 = arith.constant 0 : index
    %c0_1 = arith.constant 0 : index
    %c0_2 = arith.constant 0 : index
    %0 = vector.load %arg1[%c0, %c0_0, %c0_1, %c0_2] : memref<1x16x16x4xbf16, #tpu.memory_space<vmem>>, vector<1x16x16x4xbf16>
    %1 = vector.shape_cast %0 : vector<1x16x16x4xbf16> to vector<16x16x4xbf16>
    %cst = arith.constant 0.000000e+00 : bf16
    %2 = vector.broadcast %cst : bf16 to vector<1x18x4xbf16>
    %cst_3 = arith.constant 0.000000e+00 : bf16
    %3 = vector.broadcast %cst_3 : bf16 to vector<16x1x4xbf16>
    %c0_4 = arith.constant 0 : index
    %c0_5 = arith.constant 0 : index
    %c0_6 = arith.constant 0 : index
    %4 = vector.load %arg7[%c0_4, %c0_5, %c0_6] : memref<18x18x4xbf16, #tpu.memory_space<vmem>>, vector<1x18x4xbf16>
    tpu.vector_store %arg7[%c0_4, %c0_5, %c0_6], %2 {strides = array<i32>} : memref<18x18x4xbf16, #tpu.memory_space<vmem>>, vector<1x18x4xbf16>,
    %c17 = arith.constant 17 : index
    %c0_7 = arith.constant 0 : index
    %c0_8 = arith.constant 0 : index
    %5 = vector.load %arg7[%c17, %c0_7, %c0_8] : memref<18x18x4xbf16, #tpu.memory_space<vmem>>, vector<1x18x4xbf16>
    tpu.vector_store %arg7[%c17, %c0_7, %c0_8], %2 {strides = array<i32>} : memref<18x18x4xbf16, #tpu.memory_space<vmem>>, vector<1x18x4xbf16>,
    %6 = tpu.concatenate %3, %1, %3 in 1 : vector<16x1x4xbf16>, vector<16x16x4xbf16>, vector<16x1x4xbf16> -> vector<16x18x4xbf16>
    %c1 = arith.constant 1 : index
    %c0_9 = arith.constant 0 : index
    %c0_10 = arith.constant 0 : index
    %7 = vector.load %arg7[%c1, %c0_9, %c0_10] : memref<18x18x4xbf16, #tpu.memory_space<vmem>>, vector<16x18x4xbf16>
    tpu.vector_store %arg7[%c1, %c0_9, %c0_10], %6 {strides = array<i32>} : memref<18x18x4xbf16, #tpu.memory_space<vmem>>, vector<16x18x4xbf16>,
    %cst_11 = arith.constant 0.000000e+00 : f32
    %8 = vector.broadcast %cst_11 : f32 to vector<1x8xf32>
    %cst_12 = arith.constant 0.000000e+00 : f32
    %9 = vector.broadcast %cst_12 : f32 to vector<1x8xf32>
    %c0_13 = arith.constant 0 : index
    %c0_14 = arith.constant 0 : index
    %c0_15 = arith.constant 0 : index
    %10 = vector.load %arg7[%c0_13, %c0_14, %c0_15] : memref<18x18x4xbf16, #tpu.memory_space<vmem>>, vector<16x16x4xbf16>
    %c0_16 = arith.constant 0 : index
    %c1_17 = arith.constant 1 : index
    %c0_18 = arith.constant 0 : index
    %11 = vector.load %arg7[%c0_16, %c1_17, %c0_18] : memref<18x18x4xbf16, #tpu.memory_space<vmem>>, vector<16x16x4xbf16>
    %c0_19 = arith.constant 0 : index
    %c2 = arith.constant 2 : index
    %c0_20 = arith.constant 0 : index
    %12 = vector.load %arg7[%c0_19, %c2, %c0_20] : memref<18x18x4xbf16, #tpu.memory_space<vmem>>, vector<16x16x4xbf16>
    %c1_21 = arith.constant 1 : index
    %c0_22 = arith.constant 0 : index
    %c0_23 = arith.constant 0 : index
    %13 = vector.load %arg7[%c1_21, %c0_22, %c0_23] : memref<18x18x4xbf16, #tpu.memory_space<vmem>>, vector<16x16x4xbf16>
    %c1_24 = arith.constant 1 : index
    %c1_25 = arith.constant 1 : index
    %c0_26 = arith.constant 0 : index
    %14 = vector.load %arg7[%c1_24, %c1_25, %c0_26] : memref<18x18x4xbf16, #tpu.memory_space<vmem>>, vector<16x16x4xbf16>
    %c1_27 = arith.constant 1 : index
    %c2_28 = arith.constant 2 : index
    %c0_29 = arith.constant 0 : index
    %15 = vector.load %arg7[%c1_27, %c2_28, %c0_29] : memref<18x18x4xbf16, #tpu.memory_space<vmem>>, vector<16x16x4xbf16>
    %c2_30 = arith.constant 2 : index
    %c0_31 = arith.constant 0 : index
    %c0_32 = arith.constant 0 : index
    %16 = vector.load %arg7[%c2_30, %c0_31, %c0_32] : memref<18x18x4xbf16, #tpu.memory_space<vmem>>, vector<16x16x4xbf16>
    %c2_33 = arith.constant 2 : index
    %c1_34 = arith.constant 1 : index
    %c0_35 = arith.constant 0 : index
    %17 = vector.load %arg7[%c2_33, %c1_34, %c0_35] : memref<18x18x4xbf16, #tpu.memory_space<vmem>>, vector<16x16x4xbf16>
    %c2_36 = arith.constant 2 : index
    %c2_37 = arith.constant 2 : index
    %c0_38 = arith.constant 0 : index
    %18 = vector.load %arg7[%c2_36, %c2_37, %c0_38] : memref<18x18x4xbf16, #tpu.memory_space<vmem>>, vector<16x16x4xbf16>
    %19 = tpu.concatenate %10, %11, %12, %13, %14, %15, %16, %17, %18 in 2 : vector<16x16x4xbf16>, vector<16x16x4xbf16>, vector<16x16x4xbf16>, vector<16x16x4xbf16>, vector<16x16x4xbf16>, vector<16x16x4xbf16>, vector<16x16x4xbf16>, vector<16x16x4xbf16>, vector<16x16x4xbf16> -> vector<16x16x36xbf16>
    %20 = vector.shape_cast %19 : vector<16x16x36xbf16> to vector<256x36xbf16>
    %c0_39 = arith.constant 0 : index
    %c0_40 = arith.constant 0 : index
    %21 = vector.load %arg4[%c0_39, %c0_40] : memref<36x8xbf16, #tpu.memory_space<vmem>>, vector<36x8xbf16>
    %cst_41 = arith.constant dense<0.000000e+00> : vector<256x8xf32>
    %22 = tpu.matmul %20, %21, %cst_41 {dimension_numbers = #tpu.dot_dimension_numbers<[1], [0], [0], [1], [0, 0, 1, 1], [], []>} : vector<256x36xbf16>, vector<36x8xbf16>, vector<256x8xf32> -> vector<256x8xf32>
    %cst_42 = arith.constant dense<0.000000e+00> : vector<8xf32>
    %23 = vector.multi_reduction <add>, %22, %cst_42 [0] : vector<256x8xf32> to vector<8xf32>
    %24 = vector.shape_cast %23 : vector<8xf32> to vector<1x8xf32>
    %25 = arith.addf %8, %24 : vector<1x8xf32>
    %26 = arith.mulf %22, %22 : vector<256x8xf32>
    %cst_43 = arith.constant dense<0.000000e+00> : vector<8xf32>
    %27 = vector.multi_reduction <add>, %26, %cst_43 [0] : vector<256x8xf32> to vector<8xf32>
    %28 = vector.shape_cast %27 : vector<8xf32> to vector<1x8xf32>
    %29 = arith.addf %9, %28 : vector<1x8xf32>
    %30 = arith.truncf %22 : vector<256x8xf32> to vector<256x8xbf16>
    %c0_44 = arith.constant 0 : index
    %c0_45 = arith.constant 0 : index
    %c0_46 = arith.constant 0 : index
    %31 = vector.load %arg5[%c0_44, %c0_45, %c0_46] : memref<1x256x8xbf16, #tpu.memory_space<vmem>>, vector<1x256x8xbf16>
    %32 = vector.shape_cast %31 : vector<1x256x8xbf16> to vector<256x8xbf16>
    %33 = vector.shape_cast %30 : vector<256x8xbf16> to vector<1x256x8xbf16>
    tpu.vector_store %arg5[%c0_44, %c0_45, %c0_46], %33 {strides = array<i32>} : memref<1x256x8xbf16, #tpu.memory_space<vmem>>, vector<1x256x8xbf16>,
    %cst_47 = arith.constant 0.000000e+00 : f32
    %34 = vector.broadcast %cst_47 : f32 to vector<6x8xf32>
    %35 = tpu.concatenate %25, %29, %34 in 0 : vector<1x8xf32>, vector<1x8xf32>, vector<6x8xf32> -> vector<8x8xf32>
    %36 = vector.shape_cast %35 : vector<8x8xf32> to vector<1x8x8xf32>
    %c0_48 = arith.constant 0 : index
    %c0_49 = arith.constant 0 : index
    %c0_50 = arith.constant 0 : index
    %37 = vector.load %arg6[%c0_48, %c0_49, %c0_50] : memref<1x8x8xf32, #tpu.memory_space<vmem>>, vector<1x8x8xf32>
    tpu.vector_store %arg6[%c0_48, %c0_49, %c0_50], %36 {strides = array<i32>} : memref<1x8x8xf32, #tpu.memory_space<vmem>>, vector<1x8x8xf32>,
    return
  }
  func.func @transform_0(%arg0: i32) -> (i32, i32, i32, i32) {
    %c0_i32 = arith.constant 0 : i32
    %c0_i32_0 = arith.constant 0 : i32
    %c0_i32_1 = arith.constant 0 : i32
    %c0_i32_2 = arith.constant 0 : i32
    return %arg0, %c0_i32, %c0_i32_0, %c0_i32_1 : i32, i32, i32, i32
  }
  func.func @transform_1(%arg0: i32) -> (i32, i32) {
    %c0_i32 = arith.constant 0 : i32
    %c0_i32_0 = arith.constant 0 : i32
    %c0_i32_1 = arith.constant 0 : i32
    return %c0_i32, %c0_i32_0 : i32, i32
  }
  func.func @transform_2(%arg0: i32) -> (i32, i32) {
    %c0_i32 = arith.constant 0 : i32
    %c0_i32_0 = arith.constant 0 : i32
    %c0_i32_1 = arith.constant 0 : i32
    return %c0_i32, %c0_i32_0 : i32, i32
  }
  func.func @transform_3(%arg0: i32) -> (i32, i32) {
    %c0_i32 = arith.constant 0 : i32
    %c0_i32_0 = arith.constant 0 : i32
    %c0_i32_1 = arith.constant 0 : i32
    return %c0_i32, %c0_i32_0 : i32, i32
  }
  func.func @transform_4(%arg0: i32) -> (i32, i32, i32) {
    %c0_i32 = arith.constant 0 : i32
    %c0_i32_0 = arith.constant 0 : i32
    %c0_i32_1 = arith.constant 0 : i32
    return %arg0, %c0_i32, %c0_i32_0 : i32, i32, i32
  }
  func.func @transform_5(%arg0: i32) -> (i32, i32, i32) {
    %c0_i32 = arith.constant 0 : i32
    %c0_i32_0 = arith.constant 0 : i32
    %c0_i32_1 = arith.constant 0 : i32
    return %arg0, %c0_i32, %c0_i32_0 : i32, i32, i32
  }
}

module attributes {stable_mosaic.version = 11 : i64} {
  func.func @_conv3x3_stats_kernel(%arg0: i32, %arg1: memref<1x16x16x8xbf16, #tpu.memory_space<vmem>>, %arg2: memref<1x8xf32, #tpu.memory_space<vmem>>, %arg3: memref<1x8xf32, #tpu.memory_space<vmem>>, %arg4: memref<72x8xbf16, #tpu.memory_space<vmem>>, %arg5: memref<1x256x8xbf16, #tpu.memory_space<vmem>>, %arg6: memref<1x8x8xf32, #tpu.memory_space<vmem>>, %arg7: memref<18x18x8xbf16, #tpu.memory_space<vmem>>) attributes {dimension_semantics = [#tpu.dimension_semantics<parallel>], iteration_bounds = array<i64: 2>, scalar_prefetch = 0 : i64, scratch_operands = 1 : i64, tpu.core_type = #tpu.core_type<tc>, window_params = [{transform_indices = @transform_0, window_bounds = array<i64: 1, 16, 16, 8>}, {pipeline_mode = #tpu.pipeline_mode<synchronous>, transform_indices = @transform_1, window_bounds = array<i64: 1, 8>}, {pipeline_mode = #tpu.pipeline_mode<synchronous>, transform_indices = @transform_2, window_bounds = array<i64: 1, 8>}, {pipeline_mode = #tpu.pipeline_mode<synchronous>, transform_indices = @transform_3, window_bounds = array<i64: 72, 8>}, {transform_indices = @transform_4, window_bounds = array<i64: 1, 256, 8>}, {transform_indices = @transform_5, window_bounds = array<i64: 1, 8, 8>}]} {
    %c0 = arith.constant 0 : index
    %c0_0 = arith.constant 0 : index
    %c0_1 = arith.constant 0 : index
    %c0_2 = arith.constant 0 : index
    %0 = vector.load %arg1[%c0, %c0_0, %c0_1, %c0_2] : memref<1x16x16x8xbf16, #tpu.memory_space<vmem>>, vector<1x16x16x8xbf16>
    %1 = vector.shape_cast %0 : vector<1x16x16x8xbf16> to vector<16x16x8xbf16>
    %2 = arith.extf %1 : vector<16x16x8xbf16> to vector<16x16x8xf32>
    %c0_3 = arith.constant 0 : index
    %c0_4 = arith.constant 0 : index
    %3 = vector.load %arg2[%c0_3, %c0_4] : memref<1x8xf32, #tpu.memory_space<vmem>>, vector<1x8xf32>
    %4 = vector.shape_cast %3 : vector<1x8xf32> to vector<1x1x8xf32>
    %5 = vector.broadcast %4 : vector<1x1x8xf32> to vector<16x16x8xf32>
    %6 = arith.mulf %2, %5 : vector<16x16x8xf32>
    %c0_5 = arith.constant 0 : index
    %c0_6 = arith.constant 0 : index
    %7 = vector.load %arg3[%c0_5, %c0_6] : memref<1x8xf32, #tpu.memory_space<vmem>>, vector<1x8xf32>
    %8 = vector.shape_cast %7 : vector<1x8xf32> to vector<1x1x8xf32>
    %9 = vector.broadcast %8 : vector<1x1x8xf32> to vector<16x16x8xf32>
    %10 = arith.addf %6, %9 : vector<16x16x8xf32>
    %cst = arith.constant 0.000000e+00 : f32
    %11 = vector.broadcast %cst : f32 to vector<16x16x8xf32>
    %12 = arith.maximumf %10, %11 : vector<16x16x8xf32>
    %13 = arith.truncf %12 : vector<16x16x8xf32> to vector<16x16x8xbf16>
    %cst_7 = arith.constant 0.000000e+00 : bf16
    %14 = vector.broadcast %cst_7 : bf16 to vector<1x18x8xbf16>
    %cst_8 = arith.constant 0.000000e+00 : bf16
    %15 = vector.broadcast %cst_8 : bf16 to vector<16x1x8xbf16>
    %c0_9 = arith.constant 0 : index
    %c0_10 = arith.constant 0 : index
    %c0_11 = arith.constant 0 : index
    %16 = vector.load %arg7[%c0_9, %c0_10, %c0_11] : memref<18x18x8xbf16, #tpu.memory_space<vmem>>, vector<1x18x8xbf16>
    tpu.vector_store %arg7[%c0_9, %c0_10, %c0_11], %14 {strides = array<i32>} : memref<18x18x8xbf16, #tpu.memory_space<vmem>>, vector<1x18x8xbf16>,
    %c17 = arith.constant 17 : index
    %c0_12 = arith.constant 0 : index
    %c0_13 = arith.constant 0 : index
    %17 = vector.load %arg7[%c17, %c0_12, %c0_13] : memref<18x18x8xbf16, #tpu.memory_space<vmem>>, vector<1x18x8xbf16>
    tpu.vector_store %arg7[%c17, %c0_12, %c0_13], %14 {strides = array<i32>} : memref<18x18x8xbf16, #tpu.memory_space<vmem>>, vector<1x18x8xbf16>,
    %18 = tpu.concatenate %15, %13, %15 in 1 : vector<16x1x8xbf16>, vector<16x16x8xbf16>, vector<16x1x8xbf16> -> vector<16x18x8xbf16>
    %c1 = arith.constant 1 : index
    %c0_14 = arith.constant 0 : index
    %c0_15 = arith.constant 0 : index
    %19 = vector.load %arg7[%c1, %c0_14, %c0_15] : memref<18x18x8xbf16, #tpu.memory_space<vmem>>, vector<16x18x8xbf16>
    tpu.vector_store %arg7[%c1, %c0_14, %c0_15], %18 {strides = array<i32>} : memref<18x18x8xbf16, #tpu.memory_space<vmem>>, vector<16x18x8xbf16>,
    %cst_16 = arith.constant 0.000000e+00 : f32
    %20 = vector.broadcast %cst_16 : f32 to vector<1x8xf32>
    %cst_17 = arith.constant 0.000000e+00 : f32
    %21 = vector.broadcast %cst_17 : f32 to vector<1x8xf32>
    %c0_18 = arith.constant 0 : index
    %c0_19 = arith.constant 0 : index
    %c0_20 = arith.constant 0 : index
    %22 = vector.load %arg7[%c0_18, %c0_19, %c0_20] : memref<18x18x8xbf16, #tpu.memory_space<vmem>>, vector<16x16x8xbf16>
    %c0_21 = arith.constant 0 : index
    %c1_22 = arith.constant 1 : index
    %c0_23 = arith.constant 0 : index
    %23 = vector.load %arg7[%c0_21, %c1_22, %c0_23] : memref<18x18x8xbf16, #tpu.memory_space<vmem>>, vector<16x16x8xbf16>
    %c0_24 = arith.constant 0 : index
    %c2 = arith.constant 2 : index
    %c0_25 = arith.constant 0 : index
    %24 = vector.load %arg7[%c0_24, %c2, %c0_25] : memref<18x18x8xbf16, #tpu.memory_space<vmem>>, vector<16x16x8xbf16>
    %c1_26 = arith.constant 1 : index
    %c0_27 = arith.constant 0 : index
    %c0_28 = arith.constant 0 : index
    %25 = vector.load %arg7[%c1_26, %c0_27, %c0_28] : memref<18x18x8xbf16, #tpu.memory_space<vmem>>, vector<16x16x8xbf16>
    %c1_29 = arith.constant 1 : index
    %c1_30 = arith.constant 1 : index
    %c0_31 = arith.constant 0 : index
    %26 = vector.load %arg7[%c1_29, %c1_30, %c0_31] : memref<18x18x8xbf16, #tpu.memory_space<vmem>>, vector<16x16x8xbf16>
    %c1_32 = arith.constant 1 : index
    %c2_33 = arith.constant 2 : index
    %c0_34 = arith.constant 0 : index
    %27 = vector.load %arg7[%c1_32, %c2_33, %c0_34] : memref<18x18x8xbf16, #tpu.memory_space<vmem>>, vector<16x16x8xbf16>
    %c2_35 = arith.constant 2 : index
    %c0_36 = arith.constant 0 : index
    %c0_37 = arith.constant 0 : index
    %28 = vector.load %arg7[%c2_35, %c0_36, %c0_37] : memref<18x18x8xbf16, #tpu.memory_space<vmem>>, vector<16x16x8xbf16>
    %c2_38 = arith.constant 2 : index
    %c1_39 = arith.constant 1 : index
    %c0_40 = arith.constant 0 : index
    %29 = vector.load %arg7[%c2_38, %c1_39, %c0_40] : memref<18x18x8xbf16, #tpu.memory_space<vmem>>, vector<16x16x8xbf16>
    %c2_41 = arith.constant 2 : index
    %c2_42 = arith.constant 2 : index
    %c0_43 = arith.constant 0 : index
    %30 = vector.load %arg7[%c2_41, %c2_42, %c0_43] : memref<18x18x8xbf16, #tpu.memory_space<vmem>>, vector<16x16x8xbf16>
    %31 = tpu.concatenate %22, %23, %24, %25, %26, %27, %28, %29, %30 in 2 : vector<16x16x8xbf16>, vector<16x16x8xbf16>, vector<16x16x8xbf16>, vector<16x16x8xbf16>, vector<16x16x8xbf16>, vector<16x16x8xbf16>, vector<16x16x8xbf16>, vector<16x16x8xbf16>, vector<16x16x8xbf16> -> vector<16x16x72xbf16>
    %32 = vector.shape_cast %31 : vector<16x16x72xbf16> to vector<256x72xbf16>
    %c0_44 = arith.constant 0 : index
    %c0_45 = arith.constant 0 : index
    %33 = vector.load %arg4[%c0_44, %c0_45] : memref<72x8xbf16, #tpu.memory_space<vmem>>, vector<72x8xbf16>
    %cst_46 = arith.constant dense<0.000000e+00> : vector<256x8xf32>
    %34 = tpu.matmul %32, %33, %cst_46 {dimension_numbers = #tpu.dot_dimension_numbers<[1], [0], [0], [1], [0, 0, 1, 1], [], []>} : vector<256x72xbf16>, vector<72x8xbf16>, vector<256x8xf32> -> vector<256x8xf32>
    %cst_47 = arith.constant dense<0.000000e+00> : vector<8xf32>
    %35 = vector.multi_reduction <add>, %34, %cst_47 [0] : vector<256x8xf32> to vector<8xf32>
    %36 = vector.shape_cast %35 : vector<8xf32> to vector<1x8xf32>
    %37 = arith.addf %20, %36 : vector<1x8xf32>
    %38 = arith.mulf %34, %34 : vector<256x8xf32>
    %cst_48 = arith.constant dense<0.000000e+00> : vector<8xf32>
    %39 = vector.multi_reduction <add>, %38, %cst_48 [0] : vector<256x8xf32> to vector<8xf32>
    %40 = vector.shape_cast %39 : vector<8xf32> to vector<1x8xf32>
    %41 = arith.addf %21, %40 : vector<1x8xf32>
    %42 = arith.truncf %34 : vector<256x8xf32> to vector<256x8xbf16>
    %c0_49 = arith.constant 0 : index
    %c0_50 = arith.constant 0 : index
    %c0_51 = arith.constant 0 : index
    %43 = vector.load %arg5[%c0_49, %c0_50, %c0_51] : memref<1x256x8xbf16, #tpu.memory_space<vmem>>, vector<1x256x8xbf16>
    %44 = vector.shape_cast %43 : vector<1x256x8xbf16> to vector<256x8xbf16>
    %45 = vector.shape_cast %42 : vector<256x8xbf16> to vector<1x256x8xbf16>
    tpu.vector_store %arg5[%c0_49, %c0_50, %c0_51], %45 {strides = array<i32>} : memref<1x256x8xbf16, #tpu.memory_space<vmem>>, vector<1x256x8xbf16>,
    %cst_52 = arith.constant 0.000000e+00 : f32
    %46 = vector.broadcast %cst_52 : f32 to vector<6x8xf32>
    %47 = tpu.concatenate %37, %41, %46 in 0 : vector<1x8xf32>, vector<1x8xf32>, vector<6x8xf32> -> vector<8x8xf32>
    %48 = vector.shape_cast %47 : vector<8x8xf32> to vector<1x8x8xf32>
    %c0_53 = arith.constant 0 : index
    %c0_54 = arith.constant 0 : index
    %c0_55 = arith.constant 0 : index
    %49 = vector.load %arg6[%c0_53, %c0_54, %c0_55] : memref<1x8x8xf32, #tpu.memory_space<vmem>>, vector<1x8x8xf32>
    tpu.vector_store %arg6[%c0_53, %c0_54, %c0_55], %48 {strides = array<i32>} : memref<1x8x8xf32, #tpu.memory_space<vmem>>, vector<1x8x8xf32>,
    return
  }
  func.func @transform_0(%arg0: i32) -> (i32, i32, i32, i32) {
    %c0_i32 = arith.constant 0 : i32
    %c0_i32_0 = arith.constant 0 : i32
    %c0_i32_1 = arith.constant 0 : i32
    %c0_i32_2 = arith.constant 0 : i32
    return %arg0, %c0_i32, %c0_i32_0, %c0_i32_1 : i32, i32, i32, i32
  }
  func.func @transform_1(%arg0: i32) -> (i32, i32) {
    %c0_i32 = arith.constant 0 : i32
    %c0_i32_0 = arith.constant 0 : i32
    %c0_i32_1 = arith.constant 0 : i32
    return %c0_i32, %c0_i32_0 : i32, i32
  }
  func.func @transform_2(%arg0: i32) -> (i32, i32) {
    %c0_i32 = arith.constant 0 : i32
    %c0_i32_0 = arith.constant 0 : i32
    %c0_i32_1 = arith.constant 0 : i32
    return %c0_i32, %c0_i32_0 : i32, i32
  }
  func.func @transform_3(%arg0: i32) -> (i32, i32) {
    %c0_i32 = arith.constant 0 : i32
    %c0_i32_0 = arith.constant 0 : i32
    %c0_i32_1 = arith.constant 0 : i32
    return %c0_i32, %c0_i32_0 : i32, i32
  }
  func.func @transform_4(%arg0: i32) -> (i32, i32, i32) {
    %c0_i32 = arith.constant 0 : i32
    %c0_i32_0 = arith.constant 0 : i32
    %c0_i32_1 = arith.constant 0 : i32
    return %arg0, %c0_i32, %c0_i32_0 : i32, i32, i32
  }
  func.func @transform_5(%arg0: i32) -> (i32, i32, i32) {
    %c0_i32 = arith.constant 0 : i32
    %c0_i32_0 = arith.constant 0 : i32
    %c0_i32_1 = arith.constant 0 : i32
    return %arg0, %c0_i32, %c0_i32_0 : i32, i32, i32
  }
}

</mosaic_0001>

<llo_original>
// kernel: conv_block_forward.5
$region0: #{conv_block_forward.5}
  #allocation0 [shape = 'u32[]', space=smem, size = 0x4, offset = 0x4, fixed_abs, tag = 'smem constant byte address 0x4 - core index']
  #allocation1 [shape = 'u32[72,128]{1,0:T(1,128)}', space=vmem, size = 0x9000, scoped, tag = 'internal scratch']
  %s0 = inlined_call_operand.vmem [shape: bf16[2,256,8], index: 0, kind: input, shape index: {}]
  %s1 = inlined_call_operand.vmem [shape: f32[1,8], index: 1, kind: input, shape index: {}]
  %s2 = inlined_call_operand.vmem [shape: f32[1,8], index: 2, kind: input, shape index: {}]
  %s3 = inlined_call_operand.vmem [shape: f32[2,256,8], index: 3, kind: output, shape index: {}]
  %s4 = sld [smem:[#allocation0]]
  $region45: #{conv_block_forward.5} parent=0
    _
  %s6 = ssub.s32 1, %s4
  %s7 = scalar_select 0, %s6, %s4
  loop: start=0, step=1, limit=4
  $region2: #{conv_block_forward.5} parent=0 // loop_pre_header
    _
  $region3: #{conv_block_forward.5} parent=0 // loop_header
    %s9 = sphi 0, %s13
    %p10 = scmp.ge.s32.totalorder %s9, 4
    %s16 = sphi 0, %s28
    %s17 = sphi 0, %s24
    %s18 = sphi 0, %s16
    %s19 = sphi 0, %s17
    %s20 = sphi 0, %s18
    %s21 = sphi 0, %s19
    %s33 = sphi 0, %s35
    %s36 = sphi 0, %s33
    %s37 = sphi 0, %s36
    %s53 = sphi 0, %s37
    %s57 = sphi 0, %s57
    %s59 = sphi 0, %s57
    %s60 = sphi 0, %s59
    %s74 = sphi 0, %s60
    %s78 = sphi 0, %s78
    %s80 = sphi 0, %s78
    %s81 = sphi 0, %s80
    %s95 = sphi 0, %s81
    %s103 = sphi 0, %s105
    %s106 = sphi 0, %s103
    %s107 = sphi 0, %s106
    %s123 = sphi 0, %s107
  $region4: #{conv_block_forward.5} parent=0 // loop_header_branch
    %12 = sbr.rel (%p10) target = $region8
  $region5: #{conv_block_forward.5} parent=0 // loop_body
    %s14 = ssub.s32 %s9, 1
    %s15 = ssub.s32 %s9, 2
    %s22 = sadd.s32 1, %s17
    %p23 = scmp.ge.s32.totalorder %s22, 1
    %s24 = scalar_select %p23, 0, %s22
    %s25 = sadd.s32 1, %s16
    %s26 = scalar_select %p23, %s25, %s16
    %p27 = scmp.ge.s32.totalorder %s26, 2
    %s28 = scalar_select %p27, 0, %s26
    %s29 = ssub.s32 %s16, %s28
    %s30 = ssub.s32 %s17, %s24
    %s31 = sor.u32 %s29, %s30
    %p32 = scmp.eq.s32.totalorder %s31, 0
    %s34 = sadd.s32 %s33, 1
    %s35 = scalar_select %p32, %s33, %s34
    %p38 = pneg %p32
    %p39 = scmp.eq.s32.totalorder %s9, 1
    %p40 = por %p38, %p39
    %p41 = scmp.ne.s32.totalorder %s33, %s36
    %p42 = scmp.eq.s32.totalorder %s9, 0
    %p43 = por %p41, %p42
    %p44 = scmp.ne.s32.totalorder %s33, %s36
    %p45 = scmp.eq.s32.totalorder %s14, 1
    %p46 = por %p44, %p45
    %p47 = scmp.ne.s32.totalorder %s36, %s37
    %p48 = scmp.eq.s32.totalorder %s14, 0
    %p49 = por %p47, %p48
    %p50 = scmp.ne.s32.totalorder %s36, %s37
    %p51 = scmp.eq.s32.totalorder %s15, 1
    %p52 = por %p50, %p51
    %p54 = scmp.ne.s32.totalorder %s37, %s53
    %p55 = scmp.eq.s32.totalorder %s15, 0
    %p56 = por %p54, %p55
    %s58 = sadd.s32 %s57, 1
    %p61 = scmp.eq.s32.totalorder %s9, 1
    %p62 = scmp.ne.s32.totalorder %s57, %s59
    %p63 = scmp.eq.s32.totalorder %s9, 0
    %p64 = por %p62, %p63
    %p65 = scmp.ne.s32.totalorder %s57, %s59
    %p66 = scmp.eq.s32.totalorder %s14, 1
    %p67 = por %p65, %p66
    %p68 = scmp.ne.s32.totalorder %s59, %s60
    %p69 = scmp.eq.s32.totalorder %s14, 0
    %p70 = por %p68, %p69
    %p71 = scmp.ne.s32.totalorder %s59, %s60
    %p72 = scmp.eq.s32.totalorder %s15, 1
    %p73 = por %p71, %p72
    %p75 = scmp.ne.s32.totalorder %s60, %s74
    %p76 = scmp.eq.s32.totalorder %s15, 0
    %p77 = por %p75, %p76
    %s79 = sadd.s32 %s78, 1
    %p82 = scmp.eq.s32.totalorder %s9, 1
    %p83 = scmp.ne.s32.totalorder %s78, %s80
    %p84 = scmp.eq.s32.totalorder %s9, 0
    %p85 = por %p83, %p84
    %p86 = scmp.ne.s32.totalorder %s78, %s80
    %p87 = scmp.eq.s32.totalorder %s14, 1
    %p88 = por %p86, %p87
    %p89 = scmp.ne.s32.totalorder %s80, %s81
    %p90 = scmp.eq.s32.totalorder %s14, 0
    %p91 = por %p89, %p90
    %p92 = scmp.ne.s32.totalorder %s80, %s81
    %p93 = scmp.eq.s32.totalorder %s15, 1
    %p94 = por %p92, %p93
    %p96 = scmp.ne.s32.totalorder %s81, %s95
    %p97 = scmp.eq.s32.totalorder %s15, 0
    %p98 = por %p96, %p97
    %s99 = ssub.s32 %s16, %s28
    %s100 = ssub.s32 %s17, %s24
    %s101 = sor.u32 %s99, %s100
    %p102 = scmp.eq.s32.totalorder %s101, 0
    %s104 = sadd.s32 %s103, 1
    %s105 = scalar_select %p102, %s103, %s104
    %p108 = pneg %p102
    %p109 = scmp.eq.s32.totalorder %s9, 1
    %p110 = por %p108, %p109
    %p111 = scmp.ne.s32.totalorder %s103, %s106
    %p112 = scmp.eq.s32.totalorder %s9, 0
    %p113 = por %p111, %p112
    %p114 = scmp.ne.s32.totalorder %s103, %s106
    %p115 = scmp.eq.s32.totalorder %s14, 1
    %p116 = por %p114, %p115
    %p117 = scmp.ne.s32.totalorder %s106, %s107
    %p118 = scmp.eq.s32.totalorder %s14, 0
    %p119 = por %p117, %p118
    %p120 = scmp.ne.s32.totalorder %s106, %s107
    %p121 = scmp.eq.s32.totalorder %s15, 1
    %p122 = por %p120, %p121
    %p124 = scmp.ne.s32.totalorder %s107, %s123
    %p125 = scmp.eq.s32.totalorder %s15, 0
    %p126 = por %p124, %p125
    %p127 = scmp.le.s32.totalorder 1, %s9
    %p128 = scmp.lt.s32.totalorder %s9, 3
    %p129 = pnand %p127, %p128
    %p130 = pneg %p129
    // Predicated region
    $region9: #{conv_block_forward.5} parent=5 // pred_check
      _
    $region10: #{conv_block_forward.5} parent=5 // pred_check_branch
      %132 = sbr.rel (%p129) target = $region12
    $region11: #{conv_block_forward.5} parent=5 // pred_region
      %s133 = ssub.s32 %s9, 1
      // Predicated region
      $region13: #{conv_block_forward.5} parent=11 // pred_check
        %p134 = pneg %p70
      $region14: #{conv_block_forward.5} parent=11 // pred_check_branch
        %136 = sbr.rel (%p134) target = $region16
      $region15: #{conv_block_forward.5} parent=11 // pred_region
        _
      $region16: #{conv_block_forward.5} parent=11 // pred_fallthru
        _
      // Predicated region
      $region17: #{conv_block_forward.5} parent=11 // pred_check
        %p137 = pneg %p91
      $region18: #{conv_block_forward.5} parent=11 // pred_check_branch
        %139 = sbr.rel (%p137) target = $region20
      $region19: #{conv_block_forward.5} parent=11 // pred_region
        _
      $region20: #{conv_block_forward.5} parent=11 // pred_fallthru
        _
    $region12: #{conv_block_forward.5} parent=5 // pred_fallthru
      _
    %p140 = scmp.lt.s32.totalorder %s9, 2
    // Predicated region
    $region21: #{conv_block_forward.5} parent=5 // pred_check
      %p141 = pneg %p140
    $region22: #{conv_block_forward.5} parent=5 // pred_check_branch
      %143 = sbr.rel (%p141) target = $region24
    $region23: #{conv_block_forward.5} parent=5 // pred_region
      // Predicated region
      $region25: #{conv_block_forward.5} parent=23 // pred_check
        %p144 = pneg %p43
      $region26: #{conv_block_forward.5} parent=23 // pred_check_branch
        %146 = sbr.rel (%p144) target = $region28
      $region27: #{conv_block_forward.5} parent=23 // pred_region
        %s147 = smul.u32 32, %s17
        %p148 = scmp.lt.s32.totalorder %s16, 1
        %s149 = scalar_select %p148, %s16, 1
        %p150 = scmp.lt.s32.totalorder %s147, 31
        %s151 = scalar_select %p150, %s147, 31
        %s152 = smul.addr %s149, 32
        %s153 = sadd.s32 %s151, %s152
        %s154 = smul.addr %s153, 4
        %s155 = scalar_lea.vmem %s0, %s154
        %s156 = smul.u32 32, %s17
      $region28: #{conv_block_forward.5} parent=23 // pred_fallthru
        _
    $region24: #{conv_block_forward.5} parent=5 // pred_fallthru
      _
    %p157 = scmp.le.s32.totalorder 1, %s9
    %p158 = scmp.lt.s32.totalorder %s9, 3
    %p159 = pnand %p157, %p158
    %p160 = pneg %p159
    // Predicated region
    $region29: #{conv_block_forward.5} parent=5 // pred_check
      _
    $region30: #{conv_block_forward.5} parent=5 // pred_check_branch
      %162 = sbr.rel (%p159) target = $region32
    $region31: #{conv_block_forward.5} parent=5 // pred_region
      %s163 = ssub.s32 %s9, 1
      %s164 = smul.u32 32, %s19
      %p165 = scmp.lt.s32.totalorder %s18, 1
      %s166 = scalar_select %p165, %s18, 1
      %p167 = scmp.lt.s32.totalorder %s164, 31
      %s168 = scalar_select %p167, %s164, 31
      %s169 = smul.addr %s166, 32
      %s170 = sadd.s32 %s168, %s169
      %s171 = smul.addr %s170, 4
      %s172 = scalar_lea.vmem %s0, %s171
      %p173 = pneg %p49
      %p174 = pneg %p46
      %p175 = pneg %p70
      %p176 = pneg %p67
      %p177 = pneg %p91
      %p178 = pneg %p88
      %p179 = pneg %p119
      %p180 = pneg %p116
      %s181 = smul.u32 32, %s19
      %p182 = scmp.lt.s32.totalorder %s18, 1
      %s183 = scalar_select %p182, %s18, 1
      %p184 = scmp.lt.s32.totalorder %s181, 31
      %s185 = scalar_select %p184, %s181, 31
      %s186 = smul.addr %s183, 32
      %s187 = sadd.s32 %s185, %s186
      %s188 = smul.addr %s187, 8
      %s189 = scalar_lea.vmem %s3, %s188
      %s190 = smul.u32 32, %s19
      %p191 = scmp.lt.s32.totalorder %s18, 1
      %s192 = scalar_select %p191, %s18, 1
      %p193 = scmp.lt.s32.totalorder %s190, 31
      %s194 = scalar_select %p193, %s190, 31
      %s195 = smul.addr %s192, 32
      %s196 = sadd.s32 %s194, %s195
      %s197 = smul.addr %s196, 4
      %s198 = scalar_lea.vmem %s0, %s197
      %s199 = smul.u32 32, %s19
      %s200 = smul.u32 32, %s19
      %p201 = scmp.lt.s32.totalorder %s18, 1
      %s202 = scalar_select %p201, %s18, 1
      %p203 = scmp.lt.s32.totalorder %s200, 31
      %s204 = scalar_select %p203, %s200, 31
      %s205 = smul.addr %s202, 32
      %s206 = sadd.s32 %s204, %s205
      %s207 = smul.addr %s206, 8
      %s208 = scalar_lea.vmem %s3, %s207
      %s209 = smul.u32 32, %s19
      %v210 = vld [vmem:[%s198] sm:$0xf]
      %v211 = vld [vmem:[%s198 + $0x4] sm:$0xf]
      %v212 = vld [vmem:[%s198 + $0x8] sm:$0xf]
      %v213 = vld [vmem:[%s198 + $0xc] sm:$0xf]
      %v214 = vld [vmem:[%s198 + $0x10] sm:$0xf]
      %v215 = vld [vmem:[%s198 + $0x14] sm:$0xf]
      %v216 = vld [vmem:[%s198 + $0x18] sm:$0xf]
      %v217 = vld [vmem:[%s198 + $0x1c] sm:$0xf]
      %v218 = vld [vmem:[%s198 + $0x20] sm:$0xf]
      %v219 = vld [vmem:[%s198 + $0x24] sm:$0xf]
      %v220 = vld [vmem:[%s198 + $0x28] sm:$0xf]
      %v221 = vld [vmem:[%s198 + $0x2c] sm:$0xf]
      %v222 = vld [vmem:[%s198 + $0x30] sm:$0xf]
      %v223 = vld [vmem:[%s198 + $0x34] sm:$0xf]
      %v224 = vld [vmem:[%s198 + $0x38] sm:$0xf]
      %v225 = vld [vmem:[%s198 + $0x3c] sm:$0xf]
      %v226 = vld [vmem:[%s198 + $0x40] sm:$0xf]
      %v227 = vld [vmem:[%s198 + $0x44] sm:$0xf]
      %v228 = vld [vmem:[%s198 + $0x48] sm:$0xf]
      %v229 = vld [vmem:[%s198 + $0x4c] sm:$0xf]
      %v230 = vld [vmem:[%s198 + $0x50] sm:$0xf]
      %v231 = vld [vmem:[%s198 + $0x54] sm:$0xf]
      %v232 = vld [vmem:[%s198 + $0x58] sm:$0xf]
      %v233 = vld [vmem:[%s198 + $0x5c] sm:$0xf]
      %v234 = vld [vmem:[%s198 + $0x60] sm:$0xf]
      %v235 = vld [vmem:[%s198 + $0x64] sm:$0xf]
      %v236 = vld [vmem:[%s198 + $0x68] sm:$0xf]
      %v237 = vld [vmem:[%s198 + $0x6c] sm:$0xf]
      %v238 = vld [vmem:[%s198 + $0x70] sm:$0xf]
      %v239 = vld [vmem:[%s198 + $0x74] sm:$0xf]
      %v240 = vld [vmem:[%s198 + $0x78] sm:$0xf]
      %v241 = vld [vmem:[%s198 + $0x7c] sm:$0xf]
      %v242 = vunpack.c.l.bf16 %v210
      %v243 = vunpack.c.l.bf16 %v211
      %v244 = vunpack.c.l.bf16 %v212
      %v245 = vunpack.c.l.bf16 %v213
      %v246 = vunpack.c.l.bf16 %v214
      %v247 = vunpack.c.l.bf16 %v215
      %v248 = vunpack.c.l.bf16 %v216
      %v249 = vunpack.c.l.bf16 %v217
      %v250 = vunpack.c.l.bf16 %v218
      %v251 = vunpack.c.l.bf16 %v219
      %v252 = vunpack.c.l.bf16 %v220
      %v253 = vunpack.c.l.bf16 %v221
      %v254 = vunpack.c.l.bf16 %v222
      %v255 = vunpack.c.l.bf16 %v223
      %v256 = vunpack.c.l.bf16 %v224
      %v257 = vunpack.c.l.bf16 %v225
      %v258 = vunpack.c.l.bf16 %v226
      %v259 = vunpack.c.l.bf16 %v227
      %v260 = vunpack.c.l.bf16 %v228
      %v261 = vunpack.c.l.bf16 %v229
      %v262 = vunpack.c.l.bf16 %v230
      %v263 = vunpack.c.l.bf16 %v231
      %v264 = vunpack.c.l.bf16 %v232
      %v265 = vunpack.c.l.bf16 %v233
      %v266 = vunpack.c.l.bf16 %v234
      %v267 = vunpack.c.l.bf16 %v235
      %v268 = vunpack.c.l.bf16 %v236
      %v269 = vunpack.c.l.bf16 %v237
      %v270 = vunpack.c.l.bf16 %v238
      %v271 = vunpack.c.l.bf16 %v239
      %v272 = vunpack.c.l.bf16 %v240
      %v273 = vunpack.c.l.bf16 %v241
      %v274 = vld [vmem:[%s1] sm:$0x1]
      %v276 = vperm.slane %v274, 0
      %v278 = vmul.f32 %v242, %v276
      %v279 = vmul.f32 %v243, %v276
      %v280 = vmul.f32 %v244, %v276
      %v281 = vmul.f32 %v245, %v276
      %v282 = vmul.f32 %v246, %v276
      %v283 = vmul.f32 %v247, %v276
      %v284 = vmul.f32 %v248, %v276
      %v285 = vmul.f32 %v249, %v276
      %v286 = vmul.f32 %v250, %v276
      %v287 = vmul.f32 %v251, %v276
      %v288 = vmul.f32 %v252, %v276
      %v289 = vmul.f32 %v253, %v276
      %v290 = vmul.f32 %v254, %v276
      %v291 = vmul.f32 %v255, %v276
      %v292 = vmul.f32 %v256, %v276
      %v293 = vmul.f32 %v257, %v276
      %v294 = vmul.f32 %v258, %v276
      %v295 = vmul.f32 %v259, %v276
      %v296 = vmul.f32 %v260, %v276
      %v297 = vmul.f32 %v261, %v276
      %v298 = vmul.f32 %v262, %v276
      %v299 = vmul.f32 %v263, %v276
      %v300 = vmul.f32 %v264, %v276
      %v301 = vmul.f32 %v265, %v276
      %v302 = vmul.f32 %v266, %v276
      %v303 = vmul.f32 %v267, %v276
      %v304 = vmul.f32 %v268, %v276
      %v305 = vmul.f32 %v269, %v276
      %v306 = vmul.f32 %v270, %v276
      %v307 = vmul.f32 %v271, %v276
      %v308 = vmul.f32 %v272, %v276
      %v309 = vmul.f32 %v273, %v276
      %v310 = vld [vmem:[%s2] sm:$0x1]
      %v312 = vperm.slane %v310, 0
      %v314 = vadd.f32 %v278, %v312
      %v315 = vadd.f32 %v279, %v312
      %v316 = vadd.f32 %v280, %v312
      %v317 = vadd.f32 %v281, %v312
      %v318 = vadd.f32 %v282, %v312
      %v319 = vadd.f32 %v283, %v312
      %v320 = vadd.f32 %v284, %v312
      %v321 = vadd.f32 %v285, %v312
      %v322 = vadd.f32 %v286, %v312
      %v323 = vadd.f32 %v287, %v312
      %v324 = vadd.f32 %v288, %v312
      %v325 = vadd.f32 %v289, %v312
      %v326 = vadd.f32 %v290, %v312
      %v327 = vadd.f32 %v291, %v312
      %v328 = vadd.f32 %v292, %v312
      %v329 = vadd.f32 %v293, %v312
      %v330 = vadd.f32 %v294, %v312
      %v331 = vadd.f32 %v295, %v312
      %v332 = vadd.f32 %v296, %v312
      %v333 = vadd.f32 %v297, %v312
      %v334 = vadd.f32 %v298, %v312
      %v335 = vadd.f32 %v299, %v312
      %v336 = vadd.f32 %v300, %v312
      %v337 = vadd.f32 %v301, %v312
      %v338 = vadd.f32 %v302, %v312
      %v339 = vadd.f32 %v303, %v312
      %v340 = vadd.f32 %v304, %v312
      %v341 = vadd.f32 %v305, %v312
      %v342 = vadd.f32 %v306, %v312
      %v343 = vadd.f32 %v307, %v312
      %v344 = vadd.f32 %v308, %v312
      %v345 = vadd.f32 %v309, %v312
      %v346 = vmax.f32 %v314, 0.0
      %v347 = vmax.f32 %v315, 0.0
      %v348 = vmax.f32 %v316, 0.0
      %v349 = vmax.f32 %v317, 0.0
      %v350 = vmax.f32 %v318, 0.0
      %v351 = vmax.f32 %v319, 0.0
      %v352 = vmax.f32 %v320, 0.0
      %v353 = vmax.f32 %v321, 0.0
      %v354 = vmax.f32 %v322, 0.0
      %v355 = vmax.f32 %v323, 0.0
      %v356 = vmax.f32 %v324, 0.0
      %v357 = vmax.f32 %v325, 0.0
      %v358 = vmax.f32 %v326, 0.0
      %v359 = vmax.f32 %v327, 0.0
      %v360 = vmax.f32 %v328, 0.0
      %v361 = vmax.f32 %v329, 0.0
      %v362 = vmax.f32 %v330, 0.0
      %v363 = vmax.f32 %v331, 0.0
      %v364 = vmax.f32 %v332, 0.0
      %v365 = vmax.f32 %v333, 0.0
      %v366 = vmax.f32 %v334, 0.0
      %v367 = vmax.f32 %v335, 0.0
      %v368 = vmax.f32 %v336, 0.0
      %v369 = vmax.f32 %v337, 0.0
      %v370 = vmax.f32 %v338, 0.0
      %v371 = vmax.f32 %v339, 0.0
      %v372 = vmax.f32 %v340, 0.0
      %v373 = vmax.f32 %v341, 0.0
      %v374 = vmax.f32 %v342, 0.0
      %v375 = vmax.f32 %v343, 0.0
      %v376 = vmax.f32 %v344, 0.0
      %v377 = vmax.f32 %v345, 0.0
      %vm378 = vcmask 64512
      %379 = vst.msk [vmem:[%s208] sm:$0xff] %vm378, %v346
      %380 = vst.msk [vmem:[%s208 + $0x8] sm:$0xff] %vm378, %v347
      %381 = vst.msk [vmem:[%s208 + $0x10] sm:$0xff] %vm378, %v348
      %382 = vst.msk [vmem:[%s208 + $0x18] sm:$0xff] %vm378, %v349
      %383 = vst.msk [vmem:[%s208 + $0x20] sm:$0xff] %vm378, %v350
      %384 = vst.msk [vmem:[%s208 + $0x28] sm:$0xff] %vm378, %v351
      %385 = vst.msk [vmem:[%s208 + $0x30] sm:$0xff] %vm378, %v352
      %386 = vst.msk [vmem:[%s208 + $0x38] sm:$0xff] %vm378, %v353
      %387 = vst.msk [vmem:[%s208 + $0x40] sm:$0xff] %vm378, %v354
      %388 = vst.msk [vmem:[%s208 + $0x48] sm:$0xff] %vm378, %v355
      %389 = vst.msk [vmem:[%s208 + $0x50] sm:$0xff] %vm378, %v356
      %390 = vst.msk [vmem:[%s208 + $0x58] sm:$0xff] %vm378, %v357
      %391 = vst.msk [vmem:[%s208 + $0x60] sm:$0xff] %vm378, %v358
      %392 = vst.msk [vmem:[%s208 + $0x68] sm:$0xff] %vm378, %v359
      %393 = vst.msk [vmem:[%s208 + $0x70] sm:$0xff] %vm378, %v360
      %394 = vst.msk [vmem:[%s208 + $0x78] sm:$0xff] %vm378, %v361
      %395 = vst.msk [vmem:[%s208 + $0x80] sm:$0xff] %vm378, %v362
      %396 = vst.msk [vmem:[%s208 + $0x88] sm:$0xff] %vm378, %v363
      %397 = vst.msk [vmem:[%s208 + $0x90] sm:$0xff] %vm378, %v364
      %398 = vst.msk [vmem:[%s208 + $0x98] sm:$0xff] %vm378, %v365
      %399 = vst.msk [vmem:[%s208 + $0xa0] sm:$0xff] %vm378, %v366
      %400 = vst.msk [vmem:[%s208 + $0xa8] sm:$0xff] %vm378, %v367
      %401 = vst.msk [vmem:[%s208 + $0xb0] sm:$0xff] %vm378, %v368
      %402 = vst.msk [vmem:[%s208 + $0xb8] sm:$0xff] %vm378, %v369
      %403 = vst.msk [vmem:[%s208 + $0xc0] sm:$0xff] %vm378, %v370
      %404 = vst.msk [vmem:[%s208 + $0xc8] sm:$0xff] %vm378, %v371
      %405 = vst.msk [vmem:[%s208 + $0xd0] sm:$0xff] %vm378, %v372
      %406 = vst.msk [vmem:[%s208 + $0xd8] sm:$0xff] %vm378, %v373
      %407 = vst.msk [vmem:[%s208 + $0xe0] sm:$0xff] %vm378, %v374
      %408 = vst.msk [vmem:[%s208 + $0xe8] sm:$0xff] %vm378, %v375
      %409 = vst.msk [vmem:[%s208 + $0xf0] sm:$0xff] %vm378, %v376
      %410 = vst.msk [vmem:[%s208 + $0xf8] sm:$0xff] %vm378, %v377
      %s411 = smul.u32 32, %s19
      %p412 = scmp.lt.s32.totalorder %s18, 1
      %s413 = scalar_select %p412, %s18, 1
      %p414 = scmp.lt.s32.totalorder %s411, 31
      %s415 = scalar_select %p414, %s411, 31
      %s416 = smul.addr %s413, 32
      %s417 = sadd.s32 %s415, %s416
      %s418 = smul.addr %s417, 8
      %s419 = scalar_lea.vmem %s3, %s418
      // Predicated region
      $region33: #{conv_block_forward.5} parent=31 // pred_check
        %p420 = pneg %p116
      $region34: #{conv_block_forward.5} parent=31 // pred_check_branch
        %422 = sbr.rel (%p420) target = $region36
      $region35: #{conv_block_forward.5} parent=31 // pred_region
        %s423 = smul.u32 32, %s19
      $region36: #{conv_block_forward.5} parent=31 // pred_fallthru
        _
    $region32: #{conv_block_forward.5} parent=5 // pred_fallthru
      _
    %p424 = scmp.le.s32.totalorder 2, %s9
    // Predicated region
    $region37: #{conv_block_forward.5} parent=5 // pred_check
      %p425 = pneg %p424
    $region38: #{conv_block_forward.5} parent=5 // pred_check_branch
      %427 = sbr.rel (%p425) target = $region40
    $region39: #{conv_block_forward.5} parent=5 // pred_region
      %s428 = ssub.s32 %s9, 2
      // Predicated region
      $region41: #{conv_block_forward.5} parent=39 // pred_check
        %p429 = pneg %p122
      $region42: #{conv_block_forward.5} parent=39 // pred_check_branch
        %431 = sbr.rel (%p429) target = $region44
      $region43: #{conv_block_forward.5} parent=39 // pred_region
        %s432 = smul.u32 32, %s21
        %p433 = scmp.lt.s32.totalorder %s20, 1
        %s434 = scalar_select %p433, %s20, 1
        %p435 = scmp.lt.s32.totalorder %s432, 31
        %s436 = scalar_select %p435, %s432, 31
        %s437 = smul.addr %s434, 32
        %s438 = sadd.s32 %s436, %s437
        %s439 = smul.addr %s438, 8
        %s440 = scalar_lea.vmem %s3, %s439
      $region44: #{conv_block_forward.5} parent=39 // pred_fallthru
        _
    $region40: #{conv_block_forward.5} parent=5 // pred_fallthru
      _
  $region6: #{conv_block_forward.5} parent=0 // loop_footer
    %s13 = sadd.s32 1, %s9
  $region7: #{conv_block_forward.5} parent=0 // loop_footer_branch
    %8 = sbr.rel target = $region3
  $region8: #{conv_block_forward.5} parent=0 // loop_exit
    _

// kernel: conv_block_forward.4
$region0: #{conv_block_forward.4}
  #allocation0 [shape = 'u32[]', space=smem, size = 0x4, offset = 0x4, fixed_abs, tag = 'smem constant byte address 0x4 - core index']
  #allocation1 [shape = 'u32[72,128]{1,0:T(1,128)}', space=vmem, size = 0x9000, scoped, tag = 'internal scratch']
  #allocation2 [shape = 'bf16[18,18,8]{2,1,0:T(8,128)(2,1)}', space=vmem, size = 0x1b000, scoped, tag = 'scratch operand']
  %s0 = inlined_call_operand.vmem [shape: bf16[2,16,16,8], index: 0, kind: input, shape index: {}]
  %s1 = inlined_call_operand.vmem [shape: f32[1,8], index: 1, kind: input, shape index: {}]
  %s2 = inlined_call_operand.vmem [shape: f32[1,8], index: 2, kind: input, shape index: {}]
  %s3 = inlined_call_operand.vmem [shape: bf16[72,8], index: 3, kind: input, shape index: {}]
  %s4 = inlined_call_operand.vmem [shape: bf16[2,256,8], index: 4, kind: output, shape index: {0}]
  %s5 = inlined_call_operand.vmem [shape: f32[2,8,8], index: 5, kind: output, shape index: {1}]
  %6 = xla_tuple %s4, %s5
  %s7 = sld [smem:[#allocation0]]
  $region57: #{conv_block_forward.4} parent=0
    _
  %s9 = ssub.s32 1, %s7
  %s10 = scalar_select 0, %s9, %s7
  loop: start=0, step=1, limit=4
  $region2: #{conv_block_forward.4} parent=0 // loop_pre_header
    _
  $region3: #{conv_block_forward.4} parent=0 // loop_header
    %s12 = sphi 0, %s16
    %p13 = scmp.ge.s32.totalorder %s12, 4
    %s22 = sphi 0, %s24
    %s25 = sphi 0, %s22
    %s26 = sphi 0, %s25
    %s42 = sphi 0, %s26
    %s46 = sphi 0, %s46
    %s48 = sphi 0, %s46
    %s49 = sphi 0, %s48
    %s63 = sphi 0, %s49
    %s67 = sphi 0, %s67
    %s69 = sphi 0, %s67
    %s70 = sphi 0, %s69
    %s84 = sphi 0, %s70
    %s88 = sphi 0, %s88
    %s90 = sphi 0, %s88
    %s91 = sphi 0, %s90
    %s105 = sphi 0, %s91
    %s111 = sphi 0, %s113
    %s114 = sphi 0, %s111
    %s115 = sphi 0, %s114
    %s131 = sphi 0, %s115
    %s137 = sphi 0, %s139
    %s140 = sphi 0, %s137
    %s141 = sphi 0, %s140
    %s157 = sphi 0, %s141
  $region4: #{conv_block_forward.4} parent=0 // loop_header_branch
    %15 = sbr.rel (%p13) target = $region8
  $region5: #{conv_block_forward.4} parent=0 // loop_body
    %s17 = ssub.s32 %s12, 1
    %s18 = ssub.s32 %s12, 2
    %s19 = sadd.s32 %s12, 1
    %s20 = ssub.s32 %s12, %s19
    %p21 = scmp.eq.s32.totalorder %s20, 0
    %s23 = sadd.s32 %s22, 1
    %s24 = scalar_select %p21, %s22, %s23
    %p27 = pneg %p21
    %p28 = scmp.eq.s32.totalorder %s12, 1
    %p29 = por %p27, %p28
    %p30 = scmp.ne.s32.totalorder %s22, %s25
    %p31 = scmp.eq.s32.totalorder %s12, 0
    %p32 = por %p30, %p31
    %p33 = scmp.ne.s32.totalorder %s22, %s25
    %p34 = scmp.eq.s32.totalorder %s17, 1
    %p35 = por %p33, %p34
    %p36 = scmp.ne.s32.totalorder %s25, %s26
    %p37 = scmp.eq.s32.totalorder %s17, 0
    %p38 = por %p36, %p37
    %p39 = scmp.ne.s32.totalorder %s25, %s26
    %p40 = scmp.eq.s32.totalorder %s18, 1
    %p41 = por %p39, %p40
    %p43 = scmp.ne.s32.totalorder %s26, %s42
    %p44 = scmp.eq.s32.totalorder %s18, 0
    %p45 = por %p43, %p44
    %s47 = sadd.s32 %s46, 1
    %p50 = scmp.eq.s32.totalorder %s12, 1
    %p51 = scmp.ne.s32.totalorder %s46, %s48
    %p52 = scmp.eq.s32.totalorder %s12, 0
    %p53 = por %p51, %p52
    %p54 = scmp.ne.s32.totalorder %s46, %s48
    %p55 = scmp.eq.s32.totalorder %s17, 1
    %p56 = por %p54, %p55
    %p57 = scmp.ne.s32.totalorder %s48, %s49
    %p58 = scmp.eq.s32.totalorder %s17, 0
    %p59 = por %p57, %p58
    %p60 = scmp.ne.s32.totalorder %s48, %s49
    %p61 = scmp.eq.s32.totalorder %s18, 1
    %p62 = por %p60, %p61
    %p64 = scmp.ne.s32.totalorder %s49, %s63
    %p65 = scmp.eq.s32.totalorder %s18, 0
    %p66 = por %p64, %p65
    %s68 = sadd.s32 %s67, 1
    %p71 = scmp.eq.s32.totalorder %s12, 1
    %p72 = scmp.ne.s32.totalorder %s67, %s69
    %p73 = scmp.eq.s32.totalorder %s12, 0
    %p74 = por %p72, %p73
    %p75 = scmp.ne.s32.totalorder %s67, %s69
    %p76 = scmp.eq.s32.totalorder %s17, 1
    %p77 = por %p75, %p76
    %p78 = scmp.ne.s32.totalorder %s69, %s70
    %p79 = scmp.eq.s32.totalorder %s17, 0
    %p80 = por %p78, %p79
    %p81 = scmp.ne.s32.totalorder %s69, %s70
    %p82 = scmp.eq.s32.totalorder %s18, 1
    %p83 = por %p81, %p82
    %p85 = scmp.ne.s32.totalorder %s70, %s84
    %p86 = scmp.eq.s32.totalorder %s18, 0
    %p87 = por %p85, %p86
    %s89 = sadd.s32 %s88, 1
    %p92 = scmp.eq.s32.totalorder %s12, 1
    %p93 = scmp.ne.s32.totalorder %s88, %s90
    %p94 = scmp.eq.s32.totalorder %s12, 0
    %p95 = por %p93, %p94
    %p96 = scmp.ne.s32.totalorder %s88, %s90
    %p97 = scmp.eq.s32.totalorder %s17, 1
    %p98 = por %p96, %p97
    %p99 = scmp.ne.s32.totalorder %s90, %s91
    %p100 = scmp.eq.s32.totalorder %s17, 0
    %p101 = por %p99, %p100
    %p102 = scmp.ne.s32.totalorder %s90, %s91
    %p103 = scmp.eq.s32.totalorder %s18, 1
    %p104 = por %p102, %p103
    %p106 = scmp.ne.s32.totalorder %s91, %s105
    %p107 = scmp.eq.s32.totalorder %s18, 0
    %p108 = por %p106, %p107
    %s109 = ssub.s32 %s12, %s19
    %p110 = scmp.eq.s32.totalorder %s109, 0
    %s112 = sadd.s32 %s111, 1
    %s113 = scalar_select %p110, %s111, %s112
    %p116 = pneg %p110
    %p117 = scmp.eq.s32.totalorder %s12, 1
    %p118 = por %p116, %p117
    %p119 = scmp.ne.s32.totalorder %s111, %s114
    %p120 = scmp.eq.s32.totalorder %s12, 0
    %p121 = por %p119, %p120
    %p122 = scmp.ne.s32.totalorder %s111, %s114
    %p123 = scmp.eq.s32.totalorder %s17, 1
    %p124 = por %p122, %p123
    %p125 = scmp.ne.s32.totalorder %s114, %s115
    %p126 = scmp.eq.s32.totalorder %s17, 0
    %p127 = por %p125, %p126
    %p128 = scmp.ne.s32.totalorder %s114, %s115
    %p129 = scmp.eq.s32.totalorder %s18, 1
    %p130 = por %p128, %p129
    %p132 = scmp.ne.s32.totalorder %s115, %s131
    %p133 = scmp.eq.s32.totalorder %s18, 0
    %p134 = por %p132, %p133
    %s135 = ssub.s32 %s12, %s19
    %p136 = scmp.eq.s32.totalorder %s135, 0
    %s138 = sadd.s32 %s137, 1
    %s139 = scalar_select %p136, %s137, %s138
    %p142 = pneg %p136
    %p143 = scmp.eq.s32.totalorder %s12, 1
    %p144 = por %p142, %p143
    %p145 = scmp.ne.s32.totalorder %s137, %s140
    %p146 = scmp.eq.s32.totalorder %s12, 0
    %p147 = por %p145, %p146
    %p148 = scmp.ne.s32.totalorder %s137, %s140
    %p149 = scmp.eq.s32.totalorder %s17, 1
    %p150 = por %p148, %p149
    %p151 = scmp.ne.s32.totalorder %s140, %s141
    %p152 = scmp.eq.s32.totalorder %s17, 0
    %p153 = por %p151, %p152
    %p154 = scmp.ne.s32.totalorder %s140, %s141
    %p155 = scmp.eq.s32.totalorder %s18, 1
    %p156 = por %p154, %p155
    %p158 = scmp.ne.s32.totalorder %s141, %s157
    %p159 = scmp.eq.s32.totalorder %s18, 0
    %p160 = por %p158, %p159
    %p161 = scmp.le.s32.totalorder 1, %s12
    %p162 = scmp.lt.s32.totalorder %s12, 3
    %p163 = pnand %p161, %p162
    %p164 = pneg %p163
    // Predicated region
    $region9: #{conv_block_forward.4} parent=5 // pred_check
      _
    $region10: #{conv_block_forward.4} parent=5 // pred_check_branch
      %166 = sbr.rel (%p163) target = $region12
    $region11: #{conv_block_forward.4} parent=5 // pred_region
      %s167 = ssub.s32 %s12, 1
      // Predicated region
      $region13: #{conv_block_forward.4} parent=11 // pred_check
        %p168 = pneg %p59
      $region14: #{conv_block_forward.4} parent=11 // pred_check_branch
        %170 = sbr.rel (%p168) target = $region16
      $region15: #{conv_block_forward.4} parent=11 // pred_region
        _
      $region16: #{conv_block_forward.4} parent=11 // pred_fallthru
        _
      // Predicated region
      $region17: #{conv_block_forward.4} parent=11 // pred_check
        %p171 = pneg %p80
      $region18: #{conv_block_forward.4} parent=11 // pred_check_branch
        %173 = sbr.rel (%p171) target = $region20
      $region19: #{conv_block_forward.4} parent=11 // pred_region
        _
      $region20: #{conv_block_forward.4} parent=11 // pred_fallthru
        _
      // Predicated region
      $region21: #{conv_block_forward.4} parent=11 // pred_check
        %p174 = pneg %p101
      $region22: #{conv_block_forward.4} parent=11 // pred_check_branch
        %176 = sbr.rel (%p174) target = $region24
      $region23: #{conv_block_forward.4} parent=11 // pred_region
        _
      $region24: #{conv_block_forward.4} parent=11 // pred_fallthru
        _
    $region12: #{conv_block_forward.4} parent=5 // pred_fallthru
      _
    %p177 = scmp.lt.s32.totalorder %s12, 2
    // Predicated region
    $region25: #{conv_block_forward.4} parent=5 // pred_check
      %p178 = pneg %p177
    $region26: #{conv_block_forward.4} parent=5 // pred_check_branch
      %180 = sbr.rel (%p178) target = $region28
    $region27: #{conv_block_forward.4} parent=5 // pred_region
      // Predicated region
      $region29: #{conv_block_forward.4} parent=27 // pred_check
        %p181 = pneg %p32
      $region30: #{conv_block_forward.4} parent=27 // pred_check_branch
        %183 = sbr.rel (%p181) target = $region32
      $region31: #{conv_block_forward.4} parent=27 // pred_region
        %p184 = scmp.lt.s32.totalorder %s12, 1
        %s185 = scalar_select %p184, %s12, 1
        %s186 = smul.addr %s185, 32
        %s187 = smul.addr %s186, 4
        %s188 = scalar_lea.vmem %s0, %s187
      $region32: #{conv_block_forward.4} parent=27 // pred_fallthru
        _
    $region28: #{conv_block_forward.4} parent=5 // pred_fallthru
      _
    %p189 = scmp.le.s32.totalorder 1, %s12
    %p190 = scmp.lt.s32.totalorder %s12, 3
    %p191 = pnand %p189, %p190
    %p192 = pneg %p191
    // Predicated region
    $region33: #{conv_block_forward.4} parent=5 // pred_check
      _
    $region34: #{conv_block_forward.4} parent=5 // pred_check_branch
      %194 = sbr.rel (%p191) target = $region36
    $region35: #{conv_block_forward.4} parent=5 // pred_region
      %s195 = ssub.s32 %s12, 1
      %p196 = scmp.lt.s32.totalorder %s17, 1
      %s197 = scalar_select %p196, %s17, 1
      %s198 = smul.addr %s197, 32
      %s199 = smul.addr %s198, 4
      %s200 = scalar_lea.vmem %s0, %s199
      %p201 = pneg %p38
      %p202 = pneg %p35
      %p203 = pneg %p59
      %p204 = pneg %p56
      %p205 = pneg %p80
      %p206 = pneg %p77
      %p207 = pneg %p101
      %p208 = pneg %p98
      %p209 = pneg %p127
      %p210 = pneg %p124
      %p211 = scmp.lt.s32.totalorder %s17, 1
      %s212 = scalar_select %p211, %s17, 1
      %s213 = smul.addr %s212, 32
      %s214 = smul.addr %s213, 4
      %s215 = scalar_lea.vmem %s4, %s214
      %p216 = pneg %p153
      %p217 = pneg %p150
      %p218 = scmp.lt.s32.totalorder %s17, 1
      %s219 = scalar_select %p218, %s17, 1
      %s220 = smul.addr %s219, 8
      %s221 = scalar_lea.vmem %s5, %s220
      %p222 = scmp.lt.s32.totalorder %s17, 1
      %s223 = scalar_select %p222, %s17, 1
      %s224 = smul.addr %s223, 32
      %s225 = smul.addr %s224, 4
      %s226 = scalar_lea.vmem %s0, %s225
      %p227 = scmp.lt.s32.totalorder %s17, 1
      %s228 = scalar_select %p227, %s17, 1
      %s229 = smul.addr %s228, 32
      %s230 = smul.addr %s229, 4
      %s231 = scalar_lea.vmem %s4, %s230
      %p232 = scmp.lt.s32.totalorder %s17, 1
      %s233 = scalar_select %p232, %s17, 1
      %s234 = smul.addr %s233, 8
      %s235 = scalar_lea.vmem %s5, %s234
      %v237 = vld [vmem:[%s226] sm:$0xf]
      %v238 = vld [vmem:[%s226 + $0x4] sm:$0xf]
      %v239 = vld [vmem:[%s226 + $0x8] sm:$0xf]
      %v240 = vld [vmem:[%s226 + $0xc] sm:$0xf]
      %v241 = vld [vmem:[%s226 + $0x10] sm:$0xf]
      %v242 = vld [vmem:[%s226 + $0x14] sm:$0xf]
      %v243 = vld [vmem:[%s226 + $0x18] sm:$0xf]
      %v244 = vld [vmem:[%s226 + $0x1c] sm:$0xf]
      %v245 = vld [vmem:[%s226 + $0x20] sm:$0xf]
      %v246 = vld [vmem:[%s226 + $0x24] sm:$0xf]
      %v247 = vld [vmem:[%s226 + $0x28] sm:$0xf]
      %v248 = vld [vmem:[%s226 + $0x2c] sm:$0xf]
      %v249 = vld [vmem:[%s226 + $0x30] sm:$0xf]
      %v250 = vld [vmem:[%s226 + $0x34] sm:$0xf]
      %v251 = vld [vmem:[%s226 + $0x38] sm:$0xf]
      %v252 = vld [vmem:[%s226 + $0x3c] sm:$0xf]
      %v253 = vld [vmem:[%s226 + $0x40] sm:$0xf]
      %v254 = vld [vmem:[%s226 + $0x44] sm:$0xf]
      %v255 = vld [vmem:[%s226 + $0x48] sm:$0xf]
      %v256 = vld [vmem:[%s226 + $0x4c] sm:$0xf]
      %v257 = vld [vmem:[%s226 + $0x50] sm:$0xf]
      %v258 = vld [vmem:[%s226 + $0x54] sm:$0xf]
      %v259 = vld [vmem:[%s226 + $0x58] sm:$0xf]
      %v260 = vld [vmem:[%s226 + $0x5c] sm:$0xf]
      %v261 = vld [vmem:[%s226 + $0x60] sm:$0xf]
      %v262 = vld [vmem:[%s226 + $0x64] sm:$0xf]
      %v263 = vld [vmem:[%s226 + $0x68] sm:$0xf]
      %v264 = vld [vmem:[%s226 + $0x6c] sm:$0xf]
      %v265 = vld [vmem:[%s226 + $0x70] sm:$0xf]
      %v266 = vld [vmem:[%s226 + $0x74] sm:$0xf]
      %v267 = vld [vmem:[%s226 + $0x78] sm:$0xf]
      %v268 = vld [vmem:[%s226 + $0x7c] sm:$0xf]
      %v269 = vunpack.c.l.bf16 %v237
      %v270 = vunpack.c.l.bf16 %v238
      %v271 = vunpack.c.l.bf16 %v239
      %v272 = vunpack.c.l.bf16 %v240
      %v273 = vunpack.c.l.bf16 %v241
      %v274 = vunpack.c.l.bf16 %v242
      %v275 = vunpack.c.l.bf16 %v243
      %v276 = vunpack.c.l.bf16 %v244
      %v277 = vunpack.c.l.bf16 %v245
      %v278 = vunpack.c.l.bf16 %v246
      %v279 = vunpack.c.l.bf16 %v247
      %v280 = vunpack.c.l.bf16 %v248
      %v281 = vunpack.c.l.bf16 %v249
      %v282 = vunpack.c.l.bf16 %v250
      %v283 = vunpack.c.l.bf16 %v251
      %v284 = vunpack.c.l.bf16 %v252
      %v285 = vunpack.c.l.bf16 %v253
      %v286 = vunpack.c.l.bf16 %v254
      %v287 = vunpack.c.l.bf16 %v255
      %v288 = vunpack.c.l.bf16 %v256
      %v289 = vunpack.c.l.bf16 %v257
      %v290 = vunpack.c.l.bf16 %v258
      %v291 = vunpack.c.l.bf16 %v259
      %v292 = vunpack.c.l.bf16 %v260
      %v293 = vunpack.c.l.bf16 %v261
      %v294 = vunpack.c.l.bf16 %v262
      %v295 = vunpack.c.l.bf16 %v263
      %v296 = vunpack.c.l.bf16 %v264
      %v297 = vunpack.c.l.bf16 %v265
      %v298 = vunpack.c.l.bf16 %v266
      %v299 = vunpack.c.l.bf16 %v267
      %v300 = vunpack.c.l.bf16 %v268
      %v301 = vld [vmem:[%s1] sm:$0x1]
      %v303 = vperm.slane %v301, 0
      %v305 = vmul.f32 %v269, %v303
      %v306 = vmul.f32 %v270, %v303
      %v307 = vmul.f32 %v271, %v303
      %v308 = vmul.f32 %v272, %v303
      %v309 = vmul.f32 %v273, %v303
      %v310 = vmul.f32 %v274, %v303
      %v311 = vmul.f32 %v275, %v303
      %v312 = vmul.f32 %v276, %v303
      %v313 = vmul.f32 %v277, %v303
      %v314 = vmul.f32 %v278, %v303
      %v315 = vmul.f32 %v279, %v303
      %v316 = vmul.f32 %v280, %v303
      %v317 = vmul.f32 %v281, %v303
      %v318 = vmul.f32 %v282, %v303
      %v319 = vmul.f32 %v283, %v303
      %v320 = vmul.f32 %v284, %v303
      %v321 = vmul.f32 %v285, %v303
      %v322 = vmul.f32 %v286, %v303
      %v323 = vmul.f32 %v287, %v303
      %v324 = vmul.f32 %v288, %v303
      %v325 = vmul.f32 %v289, %v303
      %v326 = vmul.f32 %v290, %v303
      %v327 = vmul.f32 %v291, %v303
      %v328 = vmul.f32 %v292, %v303
      %v329 = vmul.f32 %v293, %v303
      %v330 = vmul.f32 %v294, %v303
      %v331 = vmul.f32 %v295, %v303
      %v332 = vmul.f32 %v296, %v303
      %v333 = vmul.f32 %v297, %v303
      %v334 = vmul.f32 %v298, %v303
      %v335 = vmul.f32 %v299, %v303
      %v336 = vmul.f32 %v300, %v303
      %v337 = vld [vmem:[%s2] sm:$0x1]
      %v339 = vperm.slane %v337, 0
      %v341 = vadd.f32 %v305, %v339
      %v342 = vadd.f32 %v306, %v339
      %v343 = vadd.f32 %v307, %v339
      %v344 = vadd.f32 %v308, %v339
      %v345 = vadd.f32 %v309, %v339
      %v346 = vadd.f32 %v310, %v339
      %v347 = vadd.f32 %v311, %v339
      %v348 = vadd.f32 %v312, %v339
      %v349 = vadd.f32 %v313, %v339
      %v350 = vadd.f32 %v314, %v339
      %v351 = vadd.f32 %v315, %v339
      %v352 = vadd.f32 %v316, %v339
      %v353 = vadd.f32 %v317, %v339
      %v354 = vadd.f32 %v318, %v339
      %v355 = vadd.f32 %v319, %v339
      %v356 = vadd.f32 %v320, %v339
      %v357 = vadd.f32 %v321, %v339
      %v358 = vadd.f32 %v322, %v339
      %v359 = vadd.f32 %v323, %v339
      %v360 = vadd.f32 %v324, %v339
      %v361 = vadd.f32 %v325, %v339
      %v362 = vadd.f32 %v326, %v339
      %v363 = vadd.f32 %v327, %v339
      %v364 = vadd.f32 %v328, %v339
      %v365 = vadd.f32 %v329, %v339
      %v366 = vadd.f32 %v330, %v339
      %v367 = vadd.f32 %v331, %v339
      %v368 = vadd.f32 %v332, %v339
      %v369 = vadd.f32 %v333, %v339
      %v370 = vadd.f32 %v334, %v339
      %v371 = vadd.f32 %v335, %v339
      %v372 = vadd.f32 %v336, %v339
      %v373 = vmax.f32 %v341, 0.0
      %v374 = vmax.f32 %v342, 0.0
      %v375 = vmax.f32 %v343, 0.0
      %v376 = vmax.f32 %v344, 0.0
      %v377 = vmax.f32 %v345, 0.0
      %v378 = vmax.f32 %v346, 0.0
      %v379 = vmax.f32 %v347, 0.0
      %v380 = vmax.f32 %v348, 0.0
      %v381 = vmax.f32 %v349, 0.0
      %v382 = vmax.f32 %v350, 0.0
      %v383 = vmax.f32 %v351, 0.0
      %v384 = vmax.f32 %v352, 0.0
      %v385 = vmax.f32 %v353, 0.0
      %v386 = vmax.f32 %v354, 0.0
      %v387 = vmax.f32 %v355, 0.0
      %v388 = vmax.f32 %v356, 0.0
      %v389 = vmax.f32 %v357, 0.0
      %v390 = vmax.f32 %v358, 0.0
      %v391 = vmax.f32 %v359, 0.0
      %v392 = vmax.f32 %v360, 0.0
      %v393 = vmax.f32 %v361, 0.0
      %v394 = vmax.f32 %v362, 0.0
      %v395 = vmax.f32 %v363, 0.0
      %v396 = vmax.f32 %v364, 0.0
      %v397 = vmax.f32 %v365, 0.0
      %v398 = vmax.f32 %v366, 0.0
      %v399 = vmax.f32 %v367, 0.0
      %v400 = vmax.f32 %v368, 0.0
      %v401 = vmax.f32 %v369, 0.0
      %v402 = vmax.f32 %v370, 0.0
      %v403 = vmax.f32 %v371, 0.0
      %v404 = vmax.f32 %v372, 0.0
      %v405 = vpack.c.bf16 %v373, %v373
      %v406 = vpack.c.bf16 %v374, %v374
      %v407 = vpack.c.bf16 %v375, %v375
      %v408 = vpack.c.bf16 %v376, %v376
      %v409 = vpack.c.bf16 %v377, %v377
      %v410 = vpack.c.bf16 %v378, %v378
      %v411 = vpack.c.bf16 %v379, %v379
      %v412 = vpack.c.bf16 %v380, %v380
      %v413 = vpack.c.bf16 %v381, %v381
      %v414 = vpack.c.bf16 %v382, %v382
      %v415 = vpack.c.bf16 %v383, %v383
      %v416 = vpack.c.bf16 %v384, %v384
      %v417 = vpack.c.bf16 %v385, %v385
      %v418 = vpack.c.bf16 %v386, %v386
      %v419 = vpack.c.bf16 %v387, %v387
      %v420 = vpack.c.bf16 %v388, %v388
      %v421 = vpack.c.bf16 %v389, %v389
      %v422 = vpack.c.bf16 %v390, %v390
      %v423 = vpack.c.bf16 %v391, %v391
      %v424 = vpack.c.bf16 %v392, %v392
      %v425 = vpack.c.bf16 %v393, %v393
      %v426 = vpack.c.bf16 %v394, %v394
      %v427 = vpack.c.bf16 %v395, %v395
      %v428 = vpack.c.bf16 %v396, %v396
      %v429 = vpack.c.bf16 %v397, %v397
      %v430 = vpack.c.bf16 %v398, %v398
      %v431 = vpack.c.bf16 %v399, %v399
      %v432 = vpack.c.bf16 %v400, %v400
      %v433 = vpack.c.bf16 %v401, %v401
      %v434 = vpack.c.bf16 %v402, %v402
      %v435 = vpack.c.bf16 %v403, %v403
      %v436 = vpack.c.bf16 %v404, %v404
      %vm437 = vcmask 60416
      %438 = vst.msk [vmem:[#allocation2] sm:$0xf] %vm437, 0
      %439 = vst.msk [vmem:[#allocation2 + $0x4] sm:$0xf] %vm437, 0
      %vm440 = vcmask 57344
      %441 = vst.msk [vmem:[#allocation2 + $0x8] sm:$0x1] %vm440, 0
      %s442 = scalar_lea.vmem [#allocation2], 204
      %443 = vst.msk [vmem:[%s442] sm:$0xf] %vm437, 0
      %444 = vst.msk [vmem:[%s442 + $0x4] sm:$0xf] %vm437, 0
      %445 = vst.msk [vmem:[%s442 + $0x8] sm:$0x1] %vm440, 0
      %v478 = vunpack.c.l.b16 %v405
      %v479 = vunpack.c.l.b16 %v406
      %v480 = vunpack.c.l.b16 %v407
      %v481 = vunpack.c.l.b16 %v408
      %v482 = vunpack.c.l.b16 %v409
      %v483 = vunpack.c.l.b16 %v410
      %v484 = vunpack.c.l.b16 %v411
      %v485 = vunpack.c.l.b16 %v412
      %v486 = vunpack.c.l.b16 %v413
      %v487 = vunpack.c.l.b16 %v414
      %v488 = vunpack.c.l.b16 %v415
      %v489 = vunpack.c.l.b16 %v416
      %v490 = vunpack.c.l.b16 %v417
      %v491 = vunpack.c.l.b16 %v418
      %v492 = vunpack.c.l.b16 %v419
      %v493 = vunpack.c.l.b16 %v420
      %v494 = vunpack.c.l.b16 %v421
      %v495 = vunpack.c.l.b16 %v422
      %v496 = vunpack.c.l.b16 %v423
      %v497 = vunpack.c.l.b16 %v424
      %v498 = vunpack.c.l.b16 %v425
      %v499 = vunpack.c.l.b16 %v426
      %v500 = vunpack.c.l.b16 %v427
      %v501 = vunpack.c.l.b16 %v428
      %v502 = vunpack.c.l.b16 %v429
      %v503 = vunpack.c.l.b16 %v430
      %v504 = vunpack.c.l.b16 %v431
      %v505 = vunpack.c.l.b16 %v432
      %v506 = vunpack.c.l.b16 %v433
      %v507 = vunpack.c.l.b16 %v434
      %v508 = vunpack.c.l.b16 %v435
      %v509 = vunpack.c.l.b16 %v436
      %v510 = vpack.c.b16 %v479, %v478
      %v511 = vpack.c.b16 %v481, %v480
      %v512 = vpack.c.b16 %v483, %v482
      %v513 = vpack.c.b16 %v485, %v484
      %v514 = vpack.c.b16 %v487, %v486
      %v515 = vpack.c.b16 %v489, %v488
      %v516 = vpack.c.b16 %v491, %v490
      %v517 = vpack.c.b16 %v493, %v492
      %v518 = vpack.c.b16 %v495, %v494
      %v519 = vpack.c.b16 %v497, %v496
      %v520 = vpack.c.b16 %v499, %v498
      %v521 = vpack.c.b16 %v501, %v500
      %v522 = vpack.c.b16 %v503, %v502
      %v523 = vpack.c.b16 %v505, %v504
      %v524 = vpack.c.b16 %v507, %v506
      %v525 = vpack.c.b16 %v509, %v508
      %v527 = vshrl.u32 %v510, 16
      %v529 = vrot.slane %v527, 7
      %v530 = vshll.u32 %v510, 16
      %v532 = vor.u32 %v529, %v530
      %v534 = vshrl.u32 %v511, 16
      %v536 = vrot.slane %v534, 7
      %v537 = vshll.u32 %v511, 16
      %v539 = vor.u32 %v536, %v537
      %v541 = vshrl.u32 %v512, 16
      %v543 = vrot.slane %v541, 7
      %v544 = vshll.u32 %v512, 16
      %v546 = vor.u32 %v543, %v544
      %v548 = vshrl.u32 %v513, 16
      %v550 = vrot.slane %v548, 7
      %v551 = vshll.u32 %v513, 16
      %v553 = vor.u32 %v550, %v551
      %v555 = vshrl.u32 %v514, 16
      %v557 = vrot.slane %v555, 7
      %v558 = vshll.u32 %v514, 16
      %v560 = vor.u32 %v557, %v558
      %v562 = vshrl.u32 %v515, 16
      %v564 = vrot.slane %v562, 7
      %v565 = vshll.u32 %v515, 16
      %v567 = vor.u32 %v564, %v565
      %v569 = vshrl.u32 %v516, 16
      %v571 = vrot.slane %v569, 7
      %v572 = vshll.u32 %v516, 16
      %v574 = vor.u32 %v571, %v572
      %v576 = vshrl.u32 %v517, 16
      %v578 = vrot.slane %v576, 7
      %v579 = vshll.u32 %v517, 16
      %v581 = vor.u32 %v578, %v579
      %v583 = vshrl.u32 %v518, 16
      %v585 = vrot.slane %v583, 7
      %v586 = vshll.u32 %v518, 16
      %v588 = vor.u32 %v585, %v586
      %v590 = vshrl.u32 %v519, 16
      %v592 = vrot.slane %v590, 7
      %v593 = vshll.u32 %v519, 16
      %v595 = vor.u32 %v592, %v593
      %v597 = vshrl.u32 %v520, 16
      %v599 = vrot.slane %v597, 7
      %v600 = vshll.u32 %v520, 16
      %v602 = vor.u32 %v599, %v600
      %v604 = vshrl.u32 %v521, 16
      %v606 = vrot.slane %v604, 7
      %v607 = vshll.u32 %v521, 16
      %v609 = vor.u32 %v606, %v607
      %v611 = vshrl.u32 %v522, 16
      %v613 = vrot.slane %v611, 7
      %v614 = vshll.u32 %v522, 16
      %v616 = vor.u32 %v613, %v614
      %v618 = vshrl.u32 %v523, 16
      %v620 = vrot.slane %v618, 7
      %v621 = vshll.u32 %v523, 16
      %v623 = vor.u32 %v620, %v621
      %v625 = vshrl.u32 %v524, 16
      %v627 = vrot.slane %v625, 7
      %v628 = vshll.u32 %v524, 16
      %v630 = vor.u32 %v627, %v628
      %v632 = vshrl.u32 %v525, 16
      %v634 = vrot.slane %v632, 7
      %v635 = vshll.u32 %v525, 16
      %v637 = vor.u32 %v634, %v635
      %vm670 = vcmask 1040384
      %vm671 = vsmask.f32 256
      %vm672 = vmand %vm670, %vm671
      %v673 = vsel %vm672, 0, %v532
      %v674 = vsel %vm672, 0, %v539
      %v675 = vsel %vm672, 0, %v546
      %v676 = vsel %vm672, 0, %v553
      %v677 = vsel %vm672, 0, %v560
      %v678 = vsel %vm672, 0, %v567
      %v679 = vsel %vm672, 0, %v574
      %v680 = vsel %vm672, 0, %v581
      %v681 = vsel %vm672, 0, %v588
      %v682 = vsel %vm672, 0, %v595
      %v683 = vsel %vm672, 0, %v602
      %v684 = vsel %vm672, 0, %v609
      %v685 = vsel %vm672, 0, %v616
      %v686 = vsel %vm672, 0, %v623
      %v687 = vsel %vm672, 0, %v630
      %v688 = vsel %vm672, 0, %v637
      %v689 = vsel %vm672, %v529, 0
      %v690 = vsel %vm672, %v536, 0
      %v691 = vsel %vm672, %v543, 0
      %v692 = vsel %vm672, %v550, 0
      %v693 = vsel %vm672, %v557, 0
      %v694 = vsel %vm672, %v564, 0
      %v695 = vsel %vm672, %v571, 0
      %v696 = vsel %vm672, %v578, 0
      %v697 = vsel %vm672, %v585, 0
      %v698 = vsel %vm672, %v592, 0
      %v699 = vsel %vm672, %v599, 0
      %v700 = vsel %vm672, %v606, 0
      %v701 = vsel %vm672, %v613, 0
      %v702 = vsel %vm672, %v620, 0
      %v703 = vsel %vm672, %v627, 0
      %v704 = vsel %vm672, %v634, 0
      %v737 = vunpack.c.l.b16 %v673
      %v738 = vunpack.c.h.b16 %v673
      %v739 = vunpack.c.l.b16 %v689
      %v740 = vunpack.c.l.b16 %v674
      %v741 = vunpack.c.h.b16 %v674
      %v742 = vunpack.c.l.b16 %v690
      %v743 = vunpack.c.l.b16 %v675
      %v744 = vunpack.c.h.b16 %v675
      %v745 = vunpack.c.l.b16 %v691
      %v746 = vunpack.c.l.b16 %v676
      %v747 = vunpack.c.h.b16 %v676
      %v748 = vunpack.c.l.b16 %v692
      %v749 = vunpack.c.l.b16 %v677
      %v750 = vunpack.c.h.b16 %v677
      %v751 = vunpack.c.l.b16 %v693
      %v752 = vunpack.c.l.b16 %v678
      %v753 = vunpack.c.h.b16 %v678
      %v754 = vunpack.c.l.b16 %v694
      %v755 = vunpack.c.l.b16 %v679
      %v756 = vunpack.c.h.b16 %v679
      %v757 = vunpack.c.l.b16 %v695
      %v758 = vunpack.c.l.b16 %v680
      %v759 = vunpack.c.h.b16 %v680
      %v760 = vunpack.c.l.b16 %v696
      %v761 = vunpack.c.l.b16 %v681
      %v762 = vunpack.c.h.b16 %v681
      %v763 = vunpack.c.l.b16 %v697
      %v764 = vunpack.c.l.b16 %v682
      %v765 = vunpack.c.h.b16 %v682
      %v766 = vunpack.c.l.b16 %v698
      %v767 = vunpack.c.l.b16 %v683
      %v768 = vunpack.c.h.b16 %v683
      %v769 = vunpack.c.l.b16 %v699
      %v770 = vunpack.c.l.b16 %v684
      %v771 = vunpack.c.h.b16 %v684
      %v772 = vunpack.c.l.b16 %v700
      %v773 = vunpack.c.l.b16 %v685
      %v774 = vunpack.c.h.b16 %v685
      %v775 = vunpack.c.l.b16 %v701
      %v776 = vunpack.c.l.b16 %v686
      %v777 = vunpack.c.h.b16 %v686
      %v778 = vunpack.c.l.b16 %v702
      %v779 = vunpack.c.l.b16 %v687
      %v780 = vunpack.c.h.b16 %v687
      %v781 = vunpack.c.l.b16 %v703
      %v782 = vunpack.c.l.b16 %v688
      %v783 = vunpack.c.h.b16 %v688
      %v784 = vunpack.c.l.b16 %v704
      %v785 = vpack.c.b16 %v737, %v737
      %v786 = vpack.c.b16 %v738, %v738
      %v787 = vpack.c.b16 %v739, %v739
      %v788 = vpack.c.b16 %v740, %v740
      %v789 = vpack.c.b16 %v741, %v741
      %v790 = vpack.c.b16 %v742, %v742
      %v791 = vpack.c.b16 %v743, %v743
      %v792 = vpack.c.b16 %v744, %v744
      %v793 = vpack.c.b16 %v745, %v745
      %v794 = vpack.c.b16 %v746, %v746
      %v795 = vpack.c.b16 %v747, %v747
      %v796 = vpack.c.b16 %v748, %v748
      %v797 = vpack.c.b16 %v749, %v749
      %v798 = vpack.c.b16 %v750, %v750
      %v799 = vpack.c.b16 %v751, %v751
      %v800 = vpack.c.b16 %v752, %v752
      %v801 = vpack.c.b16 %v753, %v753
      %v802 = vpack.c.b16 %v754, %v754
      %v803 = vpack.c.b16 %v755, %v755
      %v804 = vpack.c.b16 %v756, %v756
      %v805 = vpack.c.b16 %v757, %v757
      %v806 = vpack.c.b16 %v758, %v758
      %v807 = vpack.c.b16 %v759, %v759
      %v808 = vpack.c.b16 %v760, %v760
      %v809 = vpack.c.b16 %v761, %v761
      %v810 = vpack.c.b16 %v762, %v762
      %v811 = vpack.c.b16 %v763, %v763
      %v812 = vpack.c.b16 %v764, %v764
      %v813 = vpack.c.b16 %v765, %v765
      %v814 = vpack.c.b16 %v766, %v766
      %v815 = vpack.c.b16 %v767, %v767
      %v816 = vpack.c.b16 %v768, %v768
      %v817 = vpack.c.b16 %v769, %v769
      %v818 = vpack.c.b16 %v770, %v770
      %v819 = vpack.c.b16 %v771, %v771
      %v820 = vpack.c.b16 %v772, %v772
      %v821 = vpack.c.b16 %v773, %v773
      %v822 = vpack.c.b16 %v774, %v774
      %v823 = vpack.c.b16 %v775, %v775
      %v824 = vpack.c.b16 %v776, %v776
      %v825 = vpack.c.b16 %v777, %v777
      %v826 = vpack.c.b16 %v778, %v778
      %v827 = vpack.c.b16 %v779, %v779
      %v828 = vpack.c.b16 %v780, %v780
      %v829 = vpack.c.b16 %v781, %v781
      %v830 = vpack.c.b16 %v782, %v782
      %v831 = vpack.c.b16 %v783, %v783
      %v832 = vpack.c.b16 %v784, %v784
      %s881 = scalar_lea.vmem [#allocation2], 12
      %882 = vst.msk [vmem:[%s881] sm:$0xf] %vm437, %v785
      %883 = vst.msk [vmem:[%s881 + $0x4] sm:$0xf] %vm437, %v786
      %884 = vst.msk [vmem:[%s881 + $0x8] sm:$0x1] %vm440, %v787
      %885 = vst.msk [vmem:[%s881 + $0xc] sm:$0xf] %vm437, %v788
      %886 = vst.msk [vmem:[%s881 + $0x10] sm:$0xf] %vm437, %v789
      %887 = vst.msk [vmem:[%s881 + $0x14] sm:$0x1] %vm440, %v790
      %888 = vst.msk [vmem:[%s881 + $0x18] sm:$0xf] %vm437, %v791
      %889 = vst.msk [vmem:[%s881 + $0x1c] sm:$0xf] %vm437, %v792
      %890 = vst.msk [vmem:[%s881 + $0x20] sm:$0x1] %vm440, %v793
      %891 = vst.msk [vmem:[%s881 + $0x24] sm:$0xf] %vm437, %v794
      %892 = vst.msk [vmem:[%s881 + $0x28] sm:$0xf] %vm437, %v795
      %893 = vst.msk [vmem:[%s881 + $0x2c] sm:$0x1] %vm440, %v796
      %894 = vst.msk [vmem:[%s881 + $0x30] sm:$0xf] %vm437, %v797
      %895 = vst.msk [vmem:[%s881 + $0x34] sm:$0xf] %vm437, %v798
      %896 = vst.msk [vmem:[%s881 + $0x38] sm:$0x1] %vm440, %v799
      %897 = vst.msk [vmem:[%s881 + $0x3c] sm:$0xf] %vm437, %v800
      %898 = vst.msk [vmem:[%s881 + $0x40] sm:$0xf] %vm437, %v801
      %899 = vst.msk [vmem:[%s881 + $0x44] sm:$0x1] %vm440, %v802
      %900 = vst.msk [vmem:[%s881 + $0x48] sm:$0xf] %vm437, %v803
      %901 = vst.msk [vmem:[%s881 + $0x4c] sm:$0xf] %vm437, %v804
      %902 = vst.msk [vmem:[%s881 + $0x50] sm:$0x1] %vm440, %v805
      %903 = vst.msk [vmem:[%s881 + $0x54] sm:$0xf] %vm437, %v806
      %904 = vst.msk [vmem:[%s881 + $0x58] sm:$0xf] %vm437, %v807
      %905 = vst.msk [vmem:[%s881 + $0x5c] sm:$0x1] %vm440, %v808
      %906 = vst.msk [vmem:[%s881 + $0x60] sm:$0xf] %vm437, %v809
      %907 = vst.msk [vmem:[%s881 + $0x64] sm:$0xf] %vm437, %v810
      %908 = vst.msk [vmem:[%s881 + $0x68] sm:$0x1] %vm440, %v811
      %909 = vst.msk [vmem:[%s881 + $0x6c] sm:$0xf] %vm437, %v812
      %910 = vst.msk [vmem:[%s881 + $0x70] sm:$0xf] %vm437, %v813
      %911 = vst.msk [vmem:[%s881 + $0x74] sm:$0x1] %vm440, %v814
      %912 = vst.msk [vmem:[%s881 + $0x78] sm:$0xf] %vm437, %v815
      %913 = vst.msk [vmem:[%s881 + $0x7c] sm:$0xf] %vm437, %v816
      %914 = vst.msk [vmem:[%s881 + $0x80] sm:$0x1] %vm440, %v817
      %915 = vst.msk [vmem:[%s881 + $0x84] sm:$0xf] %vm437, %v818
      %916 = vst.msk [vmem:[%s881 + $0x88] sm:$0xf] %vm437, %v819
      %917 = vst.msk [vmem:[%s881 + $0x8c] sm:$0x1] %vm440, %v820
      %918 = vst.msk [vmem:[%s881 + $0x90] sm:$0xf] %vm437, %v821
      %919 = vst.msk [vmem:[%s881 + $0x94] sm:$0xf] %vm437, %v822
      %920 = vst.msk [vmem:[%s881 + $0x98] sm:$0x1] %vm440, %v823
      %921 = vst.msk [vmem:[%s881 + $0x9c] sm:$0xf] %vm437, %v824
      %922 = vst.msk [vmem:[%s881 + $0xa0] sm:$0xf] %vm437, %v825
      %923 = vst.msk [vmem:[%s881 + $0xa4] sm:$0x1] %vm440, %v826
      %924 = vst.msk [vmem:[%s881 + $0xa8] sm:$0xf] %vm437, %v827
      %925 = vst.msk [vmem:[%s881 + $0xac] sm:$0xf] %vm437, %v828
      %926 = vst.msk [vmem:[%s881 + $0xb0] sm:$0x1] %vm440, %v829
      %927 = vst.msk [vmem:[%s881 + $0xb4] sm:$0xf] %vm437, %v830
      %928 = vst.msk [vmem:[%s881 + $0xb8] sm:$0xf] %vm437, %v831
      %929 = vst.msk [vmem:[%s881 + $0xbc] sm:$0x1] %vm440, %v832
      %v930 = vld [vmem:[#allocation2] sm:$0xf]
      %v931 = vld [vmem:[#allocation2 + $0x4] sm:$0xf]
      %v932 = vld [vmem:[#allocation2 + $0xc] sm:$0xf]
      %v933 = vld [vmem:[#allocation2 + $0x10] sm:$0xf]
      %v934 = vld [vmem:[#allocation2 + $0x18] sm:$0xf]
      %v935 = vld [vmem:[#allocation2 + $0x1c] sm:$0xf]
      %v936 = vld [vmem:[#allocation2 + $0x24] sm:$0xf]
      %v937 = vld [vmem:[#allocation2 + $0x28] sm:$0xf]
      %v938 = vld [vmem:[#allocation2 + $0x30] sm:$0xf]
      %v939 = vld [vmem:[#allocation2 + $0x34] sm:$0xf]
      %v940 = vld [vmem:[#allocation2 + $0x3c] sm:$0xf]
      %v941 = vld [vmem:[#allocation2 + $0x40] sm:$0xf]
      %v942 = vld [vmem:[#allocation2 + $0x48] sm:$0xf]
      %v943 = vld [vmem:[#allocation2 + $0x4c] sm:$0xf]
      %v944 = vld [vmem:[#allocation2 + $0x54] sm:$0xf]
      %v945 = vld [vmem:[#allocation2 + $0x58] sm:$0xf]
      %v946 = vld [vmem:[#allocation2 + $0x60] sm:$0xf]
      %v947 = vld [vmem:[#allocation2 + $0x64] sm:$0xf]
      %v948 = vld [vmem:[#allocation2 + $0x6c] sm:$0xf]
      %v949 = vld [vmem:[#allocation2 + $0x70] sm:$0xf]
      %v950 = vld [vmem:[#allocation2 + $0x78] sm:$0xf]
      %v951 = vld [vmem:[#allocation2 + $0x7c] sm:$0xf]
      %v952 = vld [vmem:[#allocation2 + $0x84] sm:$0xf]
      %v953 = vld [vmem:[#allocation2 + $0x88] sm:$0xf]
      %v954 = vld [vmem:[#allocation2 + $0x90] sm:$0xf]
      %v955 = vld [vmem:[#allocation2 + $0x94] sm:$0xf]
      %v956 = vld [vmem:[#allocation2 + $0x9c] sm:$0xf]
      %v957 = vld [vmem:[#allocation2 + $0xa0] sm:$0xf]
      %v958 = vld [vmem:[#allocation2 + $0xa8] sm:$0xf]
      %v959 = vld [vmem:[#allocation2 + $0xac] sm:$0xf]
      %v960 = vld [vmem:[#allocation2 + $0xb4] sm:$0xf]
      %v961 = vld [vmem:[#allocation2 + $0xb8] sm:$0xf]
      %v962 = vld [vmem:[#allocation2 + $0x8] sm:$0x1]
      %v963 = vld [vmem:[#allocation2 + $0x14] sm:$0x1]
      %v964 = vld [vmem:[#allocation2 + $0x20] sm:$0x1]
      %v965 = vld [vmem:[#allocation2 + $0x2c] sm:$0x1]
      %v966 = vld [vmem:[#allocation2 + $0x38] sm:$0x1]
      %v967 = vld [vmem:[#allocation2 + $0x44] sm:$0x1]
      %v968 = vld [vmem:[#allocation2 + $0x50] sm:$0x1]
      %v969 = vld [vmem:[#allocation2 + $0x5c] sm:$0x1]
      %v970 = vld [vmem:[#allocation2 + $0x68] sm:$0x1]
      %v971 = vld [vmem:[#allocation2 + $0x74] sm:$0x1]
      %v972 = vld [vmem:[#allocation2 + $0x80] sm:$0x1]
      %v973 = vld [vmem:[#allocation2 + $0x8c] sm:$0x1]
      %v974 = vld [vmem:[#allocation2 + $0x98] sm:$0x1]
      %v975 = vld [vmem:[#allocation2 + $0xa4] sm:$0x1]
      %v976 = vld [vmem:[#allocation2 + $0xb0] sm:$0x1]
      %v977 = vld [vmem:[#allocation2 + $0xbc] sm:$0x1]
      %v978 = vld [vmem:[#allocation2] sm:$0xe]
      %v979 = vld [vmem:[#allocation2 + $0xc] sm:$0xe]
      %v980 = vld [vmem:[#allocation2 + $0x18] sm:$0xe]
      %v981 = vld [vmem:[#allocation2 + $0x24] sm:$0xe]
      %v982 = vld [vmem:[#allocation2 + $0x30] sm:$0xe]
      %v983 = vld [vmem:[#allocation2 + $0x3c] sm:$0xe]
      %v984 = vld [vmem:[#allocation2 + $0x48] sm:$0xe]
      %v985 = vld [vmem:[#allocation2 + $0x54] sm:$0xe]
      %v986 = vld [vmem:[#allocation2 + $0x60] sm:$0xe]
      %v987 = vld [vmem:[#allocation2 + $0x6c] sm:$0xe]
      %v988 = vld [vmem:[#allocation2 + $0x78] sm:$0xe]
      %v989 = vld [vmem:[#allocation2 + $0x84] sm:$0xe]
      %v990 = vld [vmem:[#allocation2 + $0x90] sm:$0xe]
      %v991 = vld [vmem:[#allocation2 + $0x9c] sm:$0xe]
      %v992 = vld [vmem:[#allocation2 + $0xa8] sm:$0xe]
      %v993 = vld [vmem:[#allocation2 + $0xb4] sm:$0xe]
      %v994 = vld [vmem:[%s881] sm:$0xf]
      %v995 = vld [vmem:[%s881 + $0x4] sm:$0xf]
      %v996 = vld [vmem:[%s881 + $0xc] sm:$0xf]
      %v997 = vld [vmem:[%s881 + $0x10] sm:$0xf]
      %v998 = vld [vmem:[%s881 + $0x18] sm:$0xf]
      %v999 = vld [vmem:[%s881 + $0x1c] sm:$0xf]
      %v1000 = vld [vmem:[%s881 + $0x24] sm:$0xf]
      %v1001 = vld [vmem:[%s881 + $0x28] sm:$0xf]
      %v1002 = vld [vmem:[%s881 + $0x30] sm:$0xf]
      %v1003 = vld [vmem:[%s881 + $0x34] sm:$0xf]
      %v1004 = vld [vmem:[%s881 + $0x3c] sm:$0xf]
      %v1005 = vld [vmem:[%s881 + $0x40] sm:$0xf]
      %v1006 = vld [vmem:[%s881 + $0x48] sm:$0xf]
      %v1007 = vld [vmem:[%s881 + $0x4c] sm:$0xf]
      %v1008 = vld [vmem:[%s881 + $0x54] sm:$0xf]
      %v1009 = vld [vmem:[%s881 + $0x58] sm:$0xf]
      %v1010 = vld [vmem:[%s881 + $0x60] sm:$0xf]
      %v1011 = vld [vmem:[%s881 + $0x64] sm:$0xf]
      %v1012 = vld [vmem:[%s881 + $0x6c] sm:$0xf]
      %v1013 = vld [vmem:[%s881 + $0x70] sm:$0xf]
      %v1014 = vld [vmem:[%s881 + $0x78] sm:$0xf]
      %v1015 = vld [vmem:[%s881 + $0x7c] sm:$0xf]
      %v1016 = vld [vmem:[%s881 + $0x84] sm:$0xf]
      %v1017 = vld [vmem:[%s881 + $0x88] sm:$0xf]
      %v1018 = vld [vmem:[%s881 + $0x90] sm:$0xf]
      %v1019 = vld [vmem:[%s881 + $0x94] sm:$0xf]
      %v1020 = vld [vmem:[%s881 + $0x9c] sm:$0xf]
      %v1021 = vld [vmem:[%s881 + $0xa0] sm:$0xf]
      %v1022 = vld [vmem:[%s881 + $0xa8] sm:$0xf]
      %v1023 = vld [vmem:[%s881 + $0xac] sm:$0xf]
      %v1024 = vld [vmem:[%s881 + $0xb4] sm:$0xf]
      %v1025 = vld [vmem:[%s881 + $0xb8] sm:$0xf]
      %v1026 = vld [vmem:[%s881 + $0x8] sm:$0x1]
      %v1027 = vld [vmem:[%s881 + $0x14] sm:$0x1]
      %v1028 = vld [vmem:[%s881 + $0x20] sm:$0x1]
      %v1029 = vld [vmem:[%s881 + $0x2c] sm:$0x1]
      %v1030 = vld [vmem:[%s881 + $0x38] sm:$0x1]
      %v1031 = vld [vmem:[%s881 + $0x44] sm:$0x1]
      %v1032 = vld [vmem:[%s881 + $0x50] sm:$0x1]
      %v1033 = vld [vmem:[%s881 + $0x5c] sm:$0x1]
      %v1034 = vld [vmem:[%s881 + $0x68] sm:$0x1]
      %v1035 = vld [vmem:[%s881 + $0x74] sm:$0x1]
      %v1036 = vld [vmem:[%s881 + $0x80] sm:$0x1]
      %v1037 = vld [vmem:[%s881 + $0x8c] sm:$0x1]
      %v1038 = vld [vmem:[%s881 + $0x98] sm:$0x1]
      %v1039 = vld [vmem:[%s881 + $0xa4] sm:$0x1]
      %v1040 = vld [vmem:[%s881 + $0xb0] sm:$0x1]
      %v1041 = vld [vmem:[%s881 + $0xbc] sm:$0x1]
      %v1042 = vld [vmem:[%s881] sm:$0xe]
      %v1043 = vld [vmem:[%s881 + $0xc] sm:$0xe]
      %v1044 = vld [vmem:[%s881 + $0x18] sm:$0xe]
      %v1045 = vld [vmem:[%s881 + $0x24] sm:$0xe]
      %v1046 = vld [vmem:[%s881 + $0x30] sm:$0xe]
      %v1047 = vld [vmem:[%s881 + $0x3c] sm:$0xe]
      %v1048 = vld [vmem:[%s881 + $0x48] sm:$0xe]
      %v1049 = vld [vmem:[%s881 + $0x54] sm:$0xe]
      %v1050 = vld [vmem:[%s881 + $0x60] sm:$0xe]
      %v1051 = vld [vmem:[%s881 + $0x6c] sm:$0xe]
      %v1052 = vld [vmem:[%s881 + $0x78] sm:$0xe]
      %v1053 = vld [vmem:[%s881 + $0x84] sm:$0xe]
      %v1054 = vld [vmem:[%s881 + $0x90] sm:$0xe]
      %v1055 = vld [vmem:[%s881 + $0x9c] sm:$0xe]
      %v1056 = vld [vmem:[%s881 + $0xa8] sm:$0xe]
      %v1057 = vld [vmem:[%s881 + $0xb4] sm:$0xe]
      %s1058 = scalar_lea.vmem [#allocation2], 24
      %v1059 = vld [vmem:[%s1058] sm:$0xf]
      %v1060 = vld [vmem:[%s1058 + $0x4] sm:$0xf]
      %v1061 = vld [vmem:[%s1058 + $0xc] sm:$0xf]
      %v1062 = vld [vmem:[%s1058 + $0x10] sm:$0xf]
      %v1063 = vld [vmem:[%s1058 + $0x18] sm:$0xf]
      %v1064 = vld [vmem:[%s1058 + $0x1c] sm:$0xf]
      %v1065 = vld [vmem:[%s1058 + $0x24] sm:$0xf]
      %v1066 = vld [vmem:[%s1058 + $0x28] sm:$0xf]
      %v1067 = vld [vmem:[%s1058 + $0x30] sm:$0xf]
      %v1068 = vld [vmem:[%s1058 + $0x34] sm:$0xf]
      %v1069 = vld [vmem:[%s1058 + $0x3c] sm:$0xf]
      %v1070 = vld [vmem:[%s1058 + $0x40] sm:$0xf]
      %v1071 = vld [vmem:[%s1058 + $0x48] sm:$0xf]
      %v1072 = vld [vmem:[%s1058 + $0x4c] sm:$0xf]
      %v1073 = vld [vmem:[%s1058 + $0x54] sm:$0xf]
      %v1074 = vld [vmem:[%s1058 + $0x58] sm:$0xf]
      %v1075 = vld [vmem:[%s1058 + $0x60] sm:$0xf]
      %v1076 = vld [vmem:[%s1058 + $0x64] sm:$0xf]
      %v1077 = vld [vmem:[%s1058 + $0x6c] sm:$0xf]
      %v1078 = vld [vmem:[%s1058 + $0x70] sm:$0xf]
      %v1079 = vld [vmem:[%s1058 + $0x78] sm:$0xf]
      %v1080 = vld [vmem:[%s1058 + $0x7c] sm:$0xf]
      %v1081 = vld [vmem:[%s1058 + $0x84] sm:$0xf]
      %v1082 = vld [vmem:[%s1058 + $0x88] sm:$0xf]
      %v1083 = vld [vmem:[%s1058 + $0x90] sm:$0xf]
      %v1084 = vld [vmem:[%s1058 + $0x94] sm:$0xf]
      %v1085 = vld [vmem:[%s1058 + $0x9c] sm:$0xf]
      %v1086 = vld [vmem:[%s1058 + $0xa0] sm:$0xf]
      %v1087 = vld [vmem:[%s1058 + $0xa8] sm:$0xf]
      %v1088 = vld [vmem:[%s1058 + $0xac] sm:$0xf]
      %v1089 = vld [vmem:[%s1058 + $0xb4] sm:$0xf]
      %v1090 = vld [vmem:[%s1058 + $0xb8] sm:$0xf]
      %v1091 = vld [vmem:[%s1058 + $0x8] sm:$0x1]
      %v1092 = vld [vmem:[%s1058 + $0x14] sm:$0x1]
      %v1093 = vld [vmem:[%s1058 + $0x20] sm:$0x1]
      %v1094 = vld [vmem:[%s1058 + $0x2c] sm:$0x1]
      %v1095 = vld [vmem:[%s1058 + $0x38] sm:$0x1]
      %v1096 = vld [vmem:[%s1058 + $0x44] sm:$0x1]
      %v1097 = vld [vmem:[%s1058 + $0x50] sm:$0x1]
      %v1098 = vld [vmem:[%s1058 + $0x5c] sm:$0x1]
      %v1099 = vld [vmem:[%s1058 + $0x68] sm:$0x1]
      %v1100 = vld [vmem:[%s1058 + $0x74] sm:$0x1]
      %v1101 = vld [vmem:[%s1058 + $0x80] sm:$0x1]
      %v1102 = vld [vmem:[%s1058 + $0x8c] sm:$0x1]
      %v1103 = vld [vmem:[%s1058 + $0x98] sm:$0x1]
      %v1104 = vld [vmem:[%s1058 + $0xa4] sm:$0x1]
      %v1105 = vld [vmem:[%s1058 + $0xb0] sm:$0x1]
      %v1106 = vld [vmem:[%s1058 + $0xbc] sm:$0x1]
      %v1107 = vld [vmem:[%s1058] sm:$0xe]
      %v1108 = vld [vmem:[%s1058 + $0xc] sm:$0xe]
      %v1109 = vld [vmem:[%s1058 + $0x18] sm:$0xe]
      %v1110 = vld [vmem:[%s1058 + $0x24] sm:$0xe]
      %v1111 = vld [vmem:[%s1058 + $0x30] sm:$0xe]
      %v1112 = vld [vmem:[%s1058 + $0x3c] sm:$0xe]
      %v1113 = vld [vmem:[%s1058 + $0x48] sm:$0xe]
      %v1114 = vld [vmem:[%s1058 + $0x54] sm:$0xe]
      %v1115 = vld [vmem:[%s1058 + $0x60] sm:$0xe]
      %v1116 = vld [vmem:[%s1058 + $0x6c] sm:$0xe]
      %v1117 = vld [vmem:[%s1058 + $0x78] sm:$0xe]
      %v1118 = vld [vmem:[%s1058 + $0x84] sm:$0xe]
      %v1119 = vld [vmem:[%s1058 + $0x90] sm:$0xe]
      %v1120 = vld [vmem:[%s1058 + $0x9c] sm:$0xe]
      %v1121 = vld [vmem:[%s1058 + $0xa8] sm:$0xe]
      %v1122 = vld [vmem:[%s1058 + $0xb4] sm:$0xe]
      %v1155 = vunpack.c.l.b16 %v930
      %v1156 = vunpack.c.l.b16 %v931
      %v1157 = vunpack.c.l.b16 %v932
      %v1158 = vunpack.c.l.b16 %v933
      %v1159 = vunpack.c.l.b16 %v934
      %v1160 = vunpack.c.l.b16 %v935
      %v1161 = vunpack.c.l.b16 %v936
      %v1162 = vunpack.c.l.b16 %v937
      %v1163 = vunpack.c.l.b16 %v938
      %v1164 = vunpack.c.l.b16 %v939
      %v1165 = vunpack.c.l.b16 %v940
      %v1166 = vunpack.c.l.b16 %v941
      %v1167 = vunpack.c.l.b16 %v942
      %v1168 = vunpack.c.l.b16 %v943
      %v1169 = vunpack.c.l.b16 %v944
      %v1170 = vunpack.c.l.b16 %v945
      %v1171 = vunpack.c.l.b16 %v946
      %v1172 = vunpack.c.l.b16 %v947
      %v1173 = vunpack.c.l.b16 %v948
      %v1174 = vunpack.c.l.b16 %v949
      %v1175 = vunpack.c.l.b16 %v950
      %v1176 = vunpack.c.l.b16 %v951
      %v1177 = vunpack.c.l.b16 %v952
      %v1178 = vunpack.c.l.b16 %v953
      %v1179 = vunpack.c.l.b16 %v954
      %v1180 = vunpack.c.l.b16 %v955
      %v1181 = vunpack.c.l.b16 %v956
      %v1182 = vunpack.c.l.b16 %v957
      %v1183 = vunpack.c.l.b16 %v958
      %v1184 = vunpack.c.l.b16 %v959
      %v1185 = vunpack.c.l.b16 %v960
      %v1186 = vunpack.c.l.b16 %v961
      %v1187 = vpack.c.b16 %v1156, %v1155
      %v1188 = vpack.c.b16 %v1158, %v1157
      %v1189 = vpack.c.b16 %v1160, %v1159
      %v1190 = vpack.c.b16 %v1162, %v1161
      %v1191 = vpack.c.b16 %v1164, %v1163
      %v1192 = vpack.c.b16 %v1166, %v1165
      %v1193 = vpack.c.b16 %v1168, %v1167
      %v1194 = vpack.c.b16 %v1170, %v1169
      %v1195 = vpack.c.b16 %v1172, %v1171
      %v1196 = vpack.c.b16 %v1174, %v1173
      %v1197 = vpack.c.b16 %v1176, %v1175
      %v1198 = vpack.c.b16 %v1178, %v1177
      %v1199 = vpack.c.b16 %v1180, %v1179
      %v1200 = vpack.c.b16 %v1182, %v1181
      %v1201 = vpack.c.b16 %v1184, %v1183
      %v1202 = vpack.c.b16 %v1186, %v1185
      %v1219 = vunpack.c.l.b16 %v962
      %v1220 = vunpack.c.l.b16 %v963
      %v1221 = vunpack.c.l.b16 %v964
      %v1222 = vunpack.c.l.b16 %v965
      %v1223 = vunpack.c.l.b16 %v966
      %v1224 = vunpack.c.l.b16 %v967
      %v1225 = vunpack.c.l.b16 %v968
      %v1226 = vunpack.c.l.b16 %v969
      %v1227 = vunpack.c.l.b16 %v970
      %v1228 = vunpack.c.l.b16 %v971
      %v1229 = vunpack.c.l.b16 %v972
      %v1230 = vunpack.c.l.b16 %v973
      %v1231 = vunpack.c.l.b16 %v974
      %v1232 = vunpack.c.l.b16 %v975
      %v1233 = vunpack.c.l.b16 %v976
      %v1234 = vunpack.c.l.b16 %v977
      %v1235 = vpack.c.b16 %v1219, %v1219
      %v1236 = vpack.c.b16 %v1220, %v1220
      %v1237 = vpack.c.b16 %v1221, %v1221
      %v1238 = vpack.c.b16 %v1222, %v1222
      %v1239 = vpack.c.b16 %v1223, %v1223
      %v1240 = vpack.c.b16 %v1224, %v1224
      %v1241 = vpack.c.b16 %v1225, %v1225
      %v1242 = vpack.c.b16 %v1226, %v1226
      %v1243 = vpack.c.b16 %v1227, %v1227
      %v1244 = vpack.c.b16 %v1228, %v1228
      %v1245 = vpack.c.b16 %v1229, %v1229
      %v1246 = vpack.c.b16 %v1230, %v1230
      %v1247 = vpack.c.b16 %v1231, %v1231
      %v1248 = vpack.c.b16 %v1232, %v1232
      %v1249 = vpack.c.b16 %v1233, %v1233
      %v1250 = vpack.c.b16 %v1234, %v1234
      %vm1251 = vsmask.f32 7424
      %v1253 = vshrl.u32 %v1187, 16
      %v1255 = vshll.u32 %v1187, 16
      %v1257 = vrot.slane %v1255, 1
      %v1258 = vor.u32 %v1253, %v1257
      %v1260 = vshll.u32 %v1235, 16
      %v1262 = vrot.slane %v1260, 1
      %v1263 = vsel %vm1251, %v1258, %v1262
      %v1265 = vshrl.u32 %v1188, 16
      %v1267 = vshll.u32 %v1188, 16
      %v1269 = vrot.slane %v1267, 1
      %v1270 = vor.u32 %v1265, %v1269
      %v1272 = vshll.u32 %v1236, 16
      %v1274 = vrot.slane %v1272, 1
      %v1275 = vsel %vm1251, %v1270, %v1274
      %v1277 = vshrl.u32 %v1189, 16
      %v1279 = vshll.u32 %v1189, 16
      %v1281 = vrot.slane %v1279, 1
      %v1282 = vor.u32 %v1277, %v1281
      %v1284 = vshll.u32 %v1237, 16
      %v1286 = vrot.slane %v1284, 1
      %v1287 = vsel %vm1251, %v1282, %v1286
      %v1289 = vshrl.u32 %v1190, 16
      %v1291 = vshll.u32 %v1190, 16
      %v1293 = vrot.slane %v1291, 1
      %v1294 = vor.u32 %v1289, %v1293
      %v1296 = vshll.u32 %v1238, 16
      %v1298 = vrot.slane %v1296, 1
      %v1299 = vsel %vm1251, %v1294, %v1298
      %v1301 = vshrl.u32 %v1191, 16
      %v1303 = vshll.u32 %v1191, 16
      %v1305 = vrot.slane %v1303, 1
      %v1306 = vor.u32 %v1301, %v1305
      %v1308 = vshll.u32 %v1239, 16
      %v1310 = vrot.slane %v1308, 1
      %v1311 = vsel %vm1251, %v1306, %v1310
      %v1313 = vshrl.u32 %v1192, 16
      %v1315 = vshll.u32 %v1192, 16
      %v1317 = vrot.slane %v1315, 1
      %v1318 = vor.u32 %v1313, %v1317
      %v1320 = vshll.u32 %v1240, 16
      %v1322 = vrot.slane %v1320, 1
      %v1323 = vsel %vm1251, %v1318, %v1322
      %v1325 = vshrl.u32 %v1193, 16
      %v1327 = vshll.u32 %v1193, 16
      %v1329 = vrot.slane %v1327, 1
      %v1330 = vor.u32 %v1325, %v1329
      %v1332 = vshll.u32 %v1241, 16
      %v1334 = vrot.slane %v1332, 1
      %v1335 = vsel %vm1251, %v1330, %v1334
      %v1337 = vshrl.u32 %v1194, 16
      %v1339 = vshll.u32 %v1194, 16
      %v1341 = vrot.slane %v1339, 1
      %v1342 = vor.u32 %v1337, %v1341
      %v1344 = vshll.u32 %v1242, 16
      %v1346 = vrot.slane %v1344, 1
      %v1347 = vsel %vm1251, %v1342, %v1346
      %v1349 = vshrl.u32 %v1195, 16
      %v1351 = vshll.u32 %v1195, 16
      %v1353 = vrot.slane %v1351, 1
      %v1354 = vor.u32 %v1349, %v1353
      %v1356 = vshll.u32 %v1243, 16
      %v1358 = vrot.slane %v1356, 1
      %v1359 = vsel %vm1251, %v1354, %v1358
      %v1361 = vshrl.u32 %v1196, 16
      %v1363 = vshll.u32 %v1196, 16
      %v1365 = vrot.slane %v1363, 1
      %v1366 = vor.u32 %v1361, %v1365
      %v1368 = vshll.u32 %v1244, 16
      %v1370 = vrot.slane %v1368, 1
      %v1371 = vsel %vm1251, %v1366, %v1370
      %v1373 = vshrl.u32 %v1197, 16
      %v1375 = vshll.u32 %v1197, 16
      %v1377 = vrot.slane %v1375, 1
      %v1378 = vor.u32 %v1373, %v1377
      %v1380 = vshll.u32 %v1245, 16
      %v1382 = vrot.slane %v1380, 1
      %v1383 = vsel %vm1251, %v1378, %v1382
      %v1385 = vshrl.u32 %v1198, 16
      %v1387 = vshll.u32 %v1198, 16
      %v1389 = vrot.slane %v1387, 1
      %v1390 = vor.u32 %v1385, %v1389
      %v1392 = vshll.u32 %v1246, 16
      %v1394 = vrot.slane %v1392, 1
      %v1395 = vsel %vm1251, %v1390, %v1394
      %v1397 = vshrl.u32 %v1199, 16
      %v1399 = vshll.u32 %v1199, 16
      %v1401 = vrot.slane %v1399, 1
      %v1402 = vor.u32 %v1397, %v1401
      %v1404 = vshll.u32 %v1247, 16
      %v1406 = vrot.slane %v1404, 1
      %v1407 = vsel %vm1251, %v1402, %v1406
      %v1409 = vshrl.u32 %v1200, 16
      %v1411 = vshll.u32 %v1200, 16
      %v1413 = vrot.slane %v1411, 1
      %v1414 = vor.u32 %v1409, %v1413
      %v1416 = vshll.u32 %v1248, 16
      %v1418 = vrot.slane %v1416, 1
      %v1419 = vsel %vm1251, %v1414, %v1418
      %v1421 = vshrl.u32 %v1201, 16
      %v1423 = vshll.u32 %v1201, 16
      %v1425 = vrot.slane %v1423, 1
      %v1426 = vor.u32 %v1421, %v1425
      %v1428 = vshll.u32 %v1249, 16
      %v1430 = vrot.slane %v1428, 1
      %v1431 = vsel %vm1251, %v1426, %v1430
      %v1433 = vshrl.u32 %v1202, 16
      %v1435 = vshll.u32 %v1202, 16
      %v1437 = vrot.slane %v1435, 1
      %v1438 = vor.u32 %v1433, %v1437
      %v1440 = vshll.u32 %v1250, 16
      %v1442 = vrot.slane %v1440, 1
      %v1443 = vsel %vm1251, %v1438, %v1442
      %1444 = vrot.lane.b32.xlu0 %v1263, 8
      %v1445 = vpop.permute.xlu0 %1444
      %1446 = vrot.lane.b32.xlu0 %v1275, 8
      %v1447 = vpop.permute.xlu0 %1446
      %1448 = vrot.lane.b32.xlu0 %v1287, 8
      %v1449 = vpop.permute.xlu0 %1448
      %1450 = vrot.lane.b32.xlu0 %v1299, 8
      %v1451 = vpop.permute.xlu0 %1450
      %1452 = vrot.lane.b32.xlu0 %v1311, 8
      %v1453 = vpop.permute.xlu0 %1452
      %1454 = vrot.lane.b32.xlu0 %v1323, 8
      %v1455 = vpop.permute.xlu0 %1454
      %1456 = vrot.lane.b32.xlu0 %v1335, 8
      %v1457 = vpop.permute.xlu0 %1456
      %1458 = vrot.lane.b32.xlu0 %v1347, 8
      %v1459 = vpop.permute.xlu0 %1458
      %1460 = vrot.lane.b32.xlu0 %v1359, 8
      %v1461 = vpop.permute.xlu0 %1460
      %1462 = vrot.lane.b32.xlu0 %v1371, 8
      %v1463 = vpop.permute.xlu0 %1462
      %1464 = vrot.lane.b32.xlu0 %v1383, 8
      %v1465 = vpop.permute.xlu0 %1464
      %1466 = vrot.lane.b32.xlu0 %v1395, 8
      %v1467 = vpop.permute.xlu0 %1466
      %1468 = vrot.lane.b32.xlu0 %v1407, 8
      %v1469 = vpop.permute.xlu0 %1468
      %1470 = vrot.lane.b32.xlu0 %v1419, 8
      %v1471 = vpop.permute.xlu0 %1470
      %1472 = vrot.lane.b32.xlu0 %v1431, 8
      %v1473 = vpop.permute.xlu0 %1472
      %1474 = vrot.lane.b32.xlu0 %v1443, 8
      %v1475 = vpop.permute.xlu0 %1474
      %v1492 = vunpack.c.l.b16 %v978
      %v1493 = vunpack.c.l.b16 %v979
      %v1494 = vunpack.c.l.b16 %v980
      %v1495 = vunpack.c.l.b16 %v981
      %v1496 = vunpack.c.l.b16 %v982
      %v1497 = vunpack.c.l.b16 %v983
      %v1498 = vunpack.c.l.b16 %v984
      %v1499 = vunpack.c.l.b16 %v985
      %v1500 = vunpack.c.l.b16 %v986
      %v1501 = vunpack.c.l.b16 %v987
      %v1502 = vunpack.c.l.b16 %v988
      %v1503 = vunpack.c.l.b16 %v989
      %v1504 = vunpack.c.l.b16 %v990
      %v1505 = vunpack.c.l.b16 %v991
      %v1506 = vunpack.c.l.b16 %v992
      %v1507 = vunpack.c.l.b16 %v993
      %v1508 = vpack.c.b16 %v1156, %v1492
      %v1509 = vpack.c.b16 %v1158, %v1493
      %v1510 = vpack.c.b16 %v1160, %v1494
      %v1511 = vpack.c.b16 %v1162, %v1495
      %v1512 = vpack.c.b16 %v1164, %v1496
      %v1513 = vpack.c.b16 %v1166, %v1497
      %v1514 = vpack.c.b16 %v1168, %v1498
      %v1515 = vpack.c.b16 %v1170, %v1499
      %v1516 = vpack.c.b16 %v1172, %v1500
      %v1517 = vpack.c.b16 %v1174, %v1501
      %v1518 = vpack.c.b16 %v1176, %v1502
      %v1519 = vpack.c.b16 %v1178, %v1503
      %v1520 = vpack.c.b16 %v1180, %v1504
      %v1521 = vpack.c.b16 %v1182, %v1505
      %v1522 = vpack.c.b16 %v1184, %v1506
      %v1523 = vpack.c.b16 %v1186, %v1507
      %vm1524 = vcmask 1046528
      %v1525 = vrot.slane %v1508, 1
      %v1526 = vrot.slane %v1235, 1
      %v1527 = vsel %vm1524, %v1525, %v1526
      %v1528 = vrot.slane %v1509, 1
      %v1529 = vrot.slane %v1236, 1
      %v1530 = vsel %vm1524, %v1528, %v1529
      %v1531 = vrot.slane %v1510, 1
      %v1532 = vrot.slane %v1237, 1
      %v1533 = vsel %vm1524, %v1531, %v1532
      %v1534 = vrot.slane %v1511, 1
      %v1535 = vrot.slane %v1238, 1
      %v1536 = vsel %vm1524, %v1534, %v1535
      %v1537 = vrot.slane %v1512, 1
      %v1538 = vrot.slane %v1239, 1
      %v1539 = vsel %vm1524, %v1537, %v1538
      %v1540 = vrot.slane %v1513, 1
      %v1541 = vrot.slane %v1240, 1
      %v1542 = vsel %vm1524, %v1540, %v1541
      %v1543 = vrot.slane %v1514, 1
      %v1544 = vrot.slane %v1241, 1
      %v1545 = vsel %vm1524, %v1543, %v1544
      %v1546 = vrot.slane %v1515, 1
      %v1547 = vrot.slane %v1242, 1
      %v1548 = vsel %vm1524, %v1546, %v1547
      %v1549 = vrot.slane %v1516, 1
      %v1550 = vrot.slane %v1243, 1
      %v1551 = vsel %vm1524, %v1549, %v1550
      %v1552 = vrot.slane %v1517, 1
      %v1553 = vrot.slane %v1244, 1
      %v1554 = vsel %vm1524, %v1552, %v1553
      %v1555 = vrot.slane %v1518, 1
      %v1556 = vrot.slane %v1245, 1
      %v1557 = vsel %vm1524, %v1555, %v1556
      %v1558 = vrot.slane %v1519, 1
      %v1559 = vrot.slane %v1246, 1
      %v1560 = vsel %vm1524, %v1558, %v1559
      %v1561 = vrot.slane %v1520, 1
      %v1562 = vrot.slane %v1247, 1
      %v1563 = vsel %vm1524, %v1561, %v1562
      %v1564 = vrot.slane %v1521, 1
      %v1565 = vrot.slane %v1248, 1
      %v1566 = vsel %vm1524, %v1564, %v1565
      %v1567 = vrot.slane %v1522, 1
      %v1568 = vrot.slane %v1249, 1
      %v1569 = vsel %vm1524, %v1567, %v1568
      %v1570 = vrot.slane %v1523, 1
      %v1571 = vrot.slane %v1250, 1
      %v1572 = vsel %vm1524, %v1570, %v1571
      %1573 = vrot.lane.b32.xlu0 %v1527, 16
      %v1574 = vpop.permute.xlu0 %1573
      %1575 = vrot.lane.b32.xlu0 %v1530, 16
      %v1576 = vpop.permute.xlu0 %1575
      %1577 = vrot.lane.b32.xlu0 %v1533, 16
      %v1578 = vpop.permute.xlu0 %1577
      %1579 = vrot.lane.b32.xlu0 %v1536, 16
      %v1580 = vpop.permute.xlu0 %1579
      %1581 = vrot.lane.b32.xlu0 %v1539, 16
      %v1582 = vpop.permute.xlu0 %1581
      %1583 = vrot.lane.b32.xlu0 %v1542, 16
      %v1584 = vpop.permute.xlu0 %1583
      %1585 = vrot.lane.b32.xlu0 %v1545, 16
      %v1586 = vpop.permute.xlu0 %1585
      %1587 = vrot.lane.b32.xlu0 %v1548, 16
      %v1588 = vpop.permute.xlu0 %1587
      %1589 = vrot.lane.b32.xlu0 %v1551, 16
      %v1590 = vpop.permute.xlu0 %1589
      %1591 = vrot.lane.b32.xlu0 %v1554, 16
      %v1592 = vpop.permute.xlu0 %1591
      %1593 = vrot.lane.b32.xlu0 %v1557, 16
      %v1594 = vpop.permute.xlu0 %1593
      %1595 = vrot.lane.b32.xlu0 %v1560, 16
      %v1596 = vpop.permute.xlu0 %1595
      %1597 = vrot.lane.b32.xlu0 %v1563, 16
      %v1598 = vpop.permute.xlu0 %1597
      %1599 = vrot.lane.b32.xlu0 %v1566, 16
      %v1600 = vpop.permute.xlu0 %1599
      %1601 = vrot.lane.b32.xlu0 %v1569, 16
      %v1602 = vpop.permute.xlu0 %1601
      %1603 = vrot.lane.b32.xlu0 %v1572, 16
      %v1604 = vpop.permute.xlu0 %1603
      %v1637 = vunpack.c.l.b16 %v994
      %v1638 = vunpack.c.l.b16 %v995
      %v1639 = vunpack.c.l.b16 %v996
      %v1640 = vunpack.c.l.b16 %v997
      %v1641 = vunpack.c.l.b16 %v998
      %v1642 = vunpack.c.l.b16 %v999
      %v1643 = vunpack.c.l.b16 %v1000
      %v1644 = vunpack.c.l.b16 %v1001
      %v1645 = vunpack.c.l.b16 %v1002
      %v1646 = vunpack.c.l.b16 %v1003
      %v1647 = vunpack.c.l.b16 %v1004
      %v1648 = vunpack.c.l.b16 %v1005
      %v1649 = vunpack.c.l.b16 %v1006
      %v1650 = vunpack.c.l.b16 %v1007
      %v1651 = vunpack.c.l.b16 %v1008
      %v1652 = vunpack.c.l.b16 %v1009
      %v1653 = vunpack.c.l.b16 %v1010
      %v1654 = vunpack.c.l.b16 %v1011
      %v1655 = vunpack.c.l.b16 %v1012
      %v1656 = vunpack.c.l.b16 %v1013
      %v1657 = vunpack.c.l.b16 %v1014
      %v1658 = vunpack.c.l.b16 %v1015
      %v1659 = vunpack.c.l.b16 %v1016
      %v1660 = vunpack.c.l.b16 %v1017
      %v1661 = vunpack.c.l.b16 %v1018
      %v1662 = vunpack.c.l.b16 %v1019
      %v1663 = vunpack.c.l.b16 %v1020
      %v1664 = vunpack.c.l.b16 %v1021
      %v1665 = vunpack.c.l.b16 %v1022
      %v1666 = vunpack.c.l.b16 %v1023
      %v1667 = vunpack.c.l.b16 %v1024
      %v1668 = vunpack.c.l.b16 %v1025
      %v1669 = vpack.c.b16 %v1638, %v1637
      %v1670 = vpack.c.b16 %v1640, %v1639
      %v1671 = vpack.c.b16 %v1642, %v1641
      %v1672 = vpack.c.b16 %v1644, %v1643
      %v1673 = vpack.c.b16 %v1646, %v1645
      %v1674 = vpack.c.b16 %v1648, %v1647
      %v1675 = vpack.c.b16 %v1650, %v1649
      %v1676 = vpack.c.b16 %v1652, %v1651
      %v1677 = vpack.c.b16 %v1654, %v1653
      %v1678 = vpack.c.b16 %v1656, %v1655
      %v1679 = vpack.c.b16 %v1658, %v1657
      %v1680 = vpack.c.b16 %v1660, %v1659
      %v1681 = vpack.c.b16 %v1662, %v1661
      %v1682 = vpack.c.b16 %v1664, %v1663
      %v1683 = vpack.c.b16 %v1666, %v1665
      %v1684 = vpack.c.b16 %v1668, %v1667
      %1685 = vrot.lane.b32.xlu0 %v1669, 24
      %v1686 = vpop.permute.xlu0 %1685
      %1687 = vrot.lane.b32.xlu0 %v1670, 24
      %v1688 = vpop.permute.xlu0 %1687
      %1689 = vrot.lane.b32.xlu0 %v1671, 24
      %v1690 = vpop.permute.xlu0 %1689
      %1691 = vrot.lane.b32.xlu0 %v1672, 24
      %v1692 = vpop.permute.xlu0 %1691
      %1693 = vrot.lane.b32.xlu0 %v1673, 24
      %v1694 = vpop.permute.xlu0 %1693
      %1695 = vrot.lane.b32.xlu0 %v1674, 24
      %v1696 = vpop.permute.xlu0 %1695
      %1697 = vrot.lane.b32.xlu0 %v1675, 24
      %v1698 = vpop.permute.xlu0 %1697
      %1699 = vrot.lane.b32.xlu0 %v1676, 24
      %v1700 = vpop.permute.xlu0 %1699
      %1701 = vrot.lane.b32.xlu0 %v1677, 24
      %v1702 = vpop.permute.xlu0 %1701
      %1703 = vrot.lane.b32.xlu0 %v1678, 24
      %v1704 = vpop.permute.xlu0 %1703
      %1705 = vrot.lane.b32.xlu0 %v1679, 24
      %v1706 = vpop.permute.xlu0 %1705
      %1707 = vrot.lane.b32.xlu0 %v1680, 24
      %v1708 = vpop.permute.xlu0 %1707
      %1709 = vrot.lane.b32.xlu0 %v1681, 24
      %v1710 = vpop.permute.xlu0 %1709
      %1711 = vrot.lane.b32.xlu0 %v1682, 24
      %v1712 = vpop.permute.xlu0 %1711
      %1713 = vrot.lane.b32.xlu0 %v1683, 24
      %v1714 = vpop.permute.xlu0 %1713
      %1715 = vrot.lane.b32.xlu0 %v1684, 24
      %v1716 = vpop.permute.xlu0 %1715
      %v1733 = vunpack.c.l.b16 %v1026
      %v1734 = vunpack.c.l.b16 %v1027
      %v1735 = vunpack.c.l.b16 %v1028
      %v1736 = vunpack.c.l.b16 %v1029
      %v1737 = vunpack.c.l.b16 %v1030
      %v1738 = vunpack.c.l.b16 %v1031
      %v1739 = vunpack.c.l.b16 %v1032
      %v1740 = vunpack.c.l.b16 %v1033
      %v1741 = vunpack.c.l.b16 %v1034
      %v1742 = vunpack.c.l.b16 %v1035
      %v1743 = vunpack.c.l.b16 %v1036
      %v1744 = vunpack.c.l.b16 %v1037
      %v1745 = vunpack.c.l.b16 %v1038
      %v1746 = vunpack.c.l.b16 %v1039
      %v1747 = vunpack.c.l.b16 %v1040
      %v1748 = vunpack.c.l.b16 %v1041
      %v1749 = vpack.c.b16 %v1733, %v1733
      %v1750 = vpack.c.b16 %v1734, %v1734
      %v1751 = vpack.c.b16 %v1735, %v1735
      %v1752 = vpack.c.b16 %v1736, %v1736
      %v1753 = vpack.c.b16 %v1737, %v1737
      %v1754 = vpack.c.b16 %v1738, %v1738
      %v1755 = vpack.c.b16 %v1739, %v1739
      %v1756 = vpack.c.b16 %v1740, %v1740
      %v1757 = vpack.c.b16 %v1741, %v1741
      %v1758 = vpack.c.b16 %v1742, %v1742
      %v1759 = vpack.c.b16 %v1743, %v1743
      %v1760 = vpack.c.b16 %v1744, %v1744
      %v1761 = vpack.c.b16 %v1745, %v1745
      %v1762 = vpack.c.b16 %v1746, %v1746
      %v1763 = vpack.c.b16 %v1747, %v1747
      %v1764 = vpack.c.b16 %v1748, %v1748
      %v1766 = vshrl.u32 %v1669, 16
      %v1768 = vshll.u32 %v1669, 16
      %v1770 = vrot.slane %v1768, 1
      %v1771 = vor.u32 %v1766, %v1770
      %v1773 = vshll.u32 %v1749, 16
      %v1775 = vrot.slane %v1773, 1
      %v1776 = vsel %vm1251, %v1771, %v1775
      %v1778 = vshrl.u32 %v1670, 16
      %v1780 = vshll.u32 %v1670, 16
      %v1782 = vrot.slane %v1780, 1
      %v1783 = vor.u32 %v1778, %v1782
      %v1785 = vshll.u32 %v1750, 16
      %v1787 = vrot.slane %v1785, 1
      %v1788 = vsel %vm1251, %v1783, %v1787
      %v1790 = vshrl.u32 %v1671, 16
      %v1792 = vshll.u32 %v1671, 16
      %v1794 = vrot.slane %v1792, 1
      %v1795 = vor.u32 %v1790, %v1794
      %v1797 = vshll.u32 %v1751, 16
      %v1799 = vrot.slane %v1797, 1
      %v1800 = vsel %vm1251, %v1795, %v1799
      %v1802 = vshrl.u32 %v1672, 16
      %v1804 = vshll.u32 %v1672, 16
      %v1806 = vrot.slane %v1804, 1
      %v1807 = vor.u32 %v1802, %v1806
      %v1809 = vshll.u32 %v1752, 16
      %v1811 = vrot.slane %v1809, 1
      %v1812 = vsel %vm1251, %v1807, %v1811
      %v1814 = vshrl.u32 %v1673, 16
      %v1816 = vshll.u32 %v1673, 16
      %v1818 = vrot.slane %v1816, 1
      %v1819 = vor.u32 %v1814, %v1818
      %v1821 = vshll.u32 %v1753, 16
      %v1823 = vrot.slane %v1821, 1
      %v1824 = vsel %vm1251, %v1819, %v1823
      %v1826 = vshrl.u32 %v1674, 16
      %v1828 = vshll.u32 %v1674, 16
      %v1830 = vrot.slane %v1828, 1
      %v1831 = vor.u32 %v1826, %v1830
      %v1833 = vshll.u32 %v1754, 16
      %v1835 = vrot.slane %v1833, 1
      %v1836 = vsel %vm1251, %v1831, %v1835
      %v1838 = vshrl.u32 %v1675, 16
      %v1840 = vshll.u32 %v1675, 16
      %v1842 = vrot.slane %v1840, 1
      %v1843 = vor.u32 %v1838, %v1842
      %v1845 = vshll.u32 %v1755, 16
      %v1847 = vrot.slane %v1845, 1
      %v1848 = vsel %vm1251, %v1843, %v1847
      %v1850 = vshrl.u32 %v1676, 16
      %v1852 = vshll.u32 %v1676, 16
      %v1854 = vrot.slane %v1852, 1
      %v1855 = vor.u32 %v1850, %v1854
      %v1857 = vshll.u32 %v1756, 16
      %v1859 = vrot.slane %v1857, 1
      %v1860 = vsel %vm1251, %v1855, %v1859
      %v1862 = vshrl.u32 %v1677, 16
      %v1864 = vshll.u32 %v1677, 16
      %v1866 = vrot.slane %v1864, 1
      %v1867 = vor.u32 %v1862, %v1866
      %v1869 = vshll.u32 %v1757, 16
      %v1871 = vrot.slane %v1869, 1
      %v1872 = vsel %vm1251, %v1867, %v1871
      %v1874 = vshrl.u32 %v1678, 16
      %v1876 = vshll.u32 %v1678, 16
      %v1878 = vrot.slane %v1876, 1
      %v1879 = vor.u32 %v1874, %v1878
      %v1881 = vshll.u32 %v1758, 16
      %v1883 = vrot.slane %v1881, 1
      %v1884 = vsel %vm1251, %v1879, %v1883
      %v1886 = vshrl.u32 %v1679, 16
      %v1888 = vshll.u32 %v1679, 16
      %v1890 = vrot.slane %v1888, 1
      %v1891 = vor.u32 %v1886, %v1890
      %v1893 = vshll.u32 %v1759, 16
      %v1895 = vrot.slane %v1893, 1
      %v1896 = vsel %vm1251, %v1891, %v1895
      %v1898 = vshrl.u32 %v1680, 16
      %v1900 = vshll.u32 %v1680, 16
      %v1902 = vrot.slane %v1900, 1
      %v1903 = vor.u32 %v1898, %v1902
      %v1905 = vshll.u32 %v1760, 16
      %v1907 = vrot.slane %v1905, 1
      %v1908 = vsel %vm1251, %v1903, %v1907
      %v1910 = vshrl.u32 %v1681, 16
      %v1912 = vshll.u32 %v1681, 16
      %v1914 = vrot.slane %v1912, 1
      %v1915 = vor.u32 %v1910, %v1914
      %v1917 = vshll.u32 %v1761, 16
      %v1919 = vrot.slane %v1917, 1
      %v1920 = vsel %vm1251, %v1915, %v1919
      %v1922 = vshrl.u32 %v1682, 16
      %v1924 = vshll.u32 %v1682, 16
      %v1926 = vrot.slane %v1924, 1
      %v1927 = vor.u32 %v1922, %v1926
      %v1929 = vshll.u32 %v1762, 16
      %v1931 = vrot.slane %v1929, 1
      %v1932 = vsel %vm1251, %v1927, %v1931
      %v1934 = vshrl.u32 %v1683, 16
      %v1936 = vshll.u32 %v1683, 16
      %v1938 = vrot.slane %v1936, 1
      %v1939 = vor.u32 %v1934, %v1938
      %v1941 = vshll.u32 %v1763, 16
      %v1943 = vrot.slane %v1941, 1
      %v1944 = vsel %vm1251, %v1939, %v1943
      %v1946 = vshrl.u32 %v1684, 16
      %v1948 = vshll.u32 %v1684, 16
      %v1950 = vrot.slane %v1948, 1
      %v1951 = vor.u32 %v1946, %v1950
      %v1953 = vshll.u32 %v1764, 16
      %v1955 = vrot.slane %v1953, 1
      %v1956 = vsel %vm1251, %v1951, %v1955
      %1957 = vrot.lane.b32.xlu0 %v1776, 32
      %v1958 = vpop.permute.xlu0 %1957
      %1959 = vrot.lane.b32.xlu0 %v1788, 32
      %v1960 = vpop.permute.xlu0 %1959
      %1961 = vrot.lane.b32.xlu0 %v1800, 32
      %v1962 = vpop.permute.xlu0 %1961
      %1963 = vrot.lane.b32.xlu0 %v1812, 32
      %v1964 = vpop.permute.xlu0 %1963
      %1965 = vrot.lane.b32.xlu0 %v1824, 32
      %v1966 = vpop.permute.xlu0 %1965
      %1967 = vrot.lane.b32.xlu0 %v1836, 32
      %v1968 = vpop.permute.xlu0 %1967
      %1969 = vrot.lane.b32.xlu0 %v1848, 32
      %v1970 = vpop.permute.xlu0 %1969
      %1971 = vrot.lane.b32.xlu0 %v1860, 32
      %v1972 = vpop.permute.xlu0 %1971
      %1973 = vrot.lane.b32.xlu0 %v1872, 32
      %v1974 = vpop.permute.xlu0 %1973
      %1975 = vrot.lane.b32.xlu0 %v1884, 32
      %v1976 = vpop.permute.xlu0 %1975
      %1977 = vrot.lane.b32.xlu0 %v1896, 32
      %v1978 = vpop.permute.xlu0 %1977
      %1979 = vrot.lane.b32.xlu0 %v1908, 32
      %v1980 = vpop.permute.xlu0 %1979
      %1981 = vrot.lane.b32.xlu0 %v1920, 32
      %v1982 = vpop.permute.xlu0 %1981
      %1983 = vrot.lane.b32.xlu0 %v1932, 32
      %v1984 = vpop.permute.xlu0 %1983
      %1985 = vrot.lane.b32.xlu0 %v1944, 32
      %v1986 = vpop.permute.xlu0 %1985
      %1987 = vrot.lane.b32.xlu0 %v1956, 32
      %v1988 = vpop.permute.xlu0 %1987
      %v2005 = vunpack.c.l.b16 %v1042
      %v2006 = vunpack.c.l.b16 %v1043
      %v2007 = vunpack.c.l.b16 %v1044
      %v2008 = vunpack.c.l.b16 %v1045
      %v2009 = vunpack.c.l.b16 %v1046
      %v2010 = vunpack.c.l.b16 %v1047
      %v2011 = vunpack.c.l.b16 %v1048
      %v2012 = vunpack.c.l.b16 %v1049
      %v2013 = vunpack.c.l.b16 %v1050
      %v2014 = vunpack.c.l.b16 %v1051
      %v2015 = vunpack.c.l.b16 %v1052
      %v2016 = vunpack.c.l.b16 %v1053
      %v2017 = vunpack.c.l.b16 %v1054
      %v2018 = vunpack.c.l.b16 %v1055
      %v2019 = vunpack.c.l.b16 %v1056
      %v2020 = vunpack.c.l.b16 %v1057
      %v2021 = vpack.c.b16 %v1638, %v2005
      %v2022 = vpack.c.b16 %v1640, %v2006
      %v2023 = vpack.c.b16 %v1642, %v2007
      %v2024 = vpack.c.b16 %v1644, %v2008
      %v2025 = vpack.c.b16 %v1646, %v2009
      %v2026 = vpack.c.b16 %v1648, %v2010
      %v2027 = vpack.c.b16 %v1650, %v2011
      %v2028 = vpack.c.b16 %v1652, %v2012
      %v2029 = vpack.c.b16 %v1654, %v2013
      %v2030 = vpack.c.b16 %v1656, %v2014
      %v2031 = vpack.c.b16 %v1658, %v2015
      %v2032 = vpack.c.b16 %v1660, %v2016
      %v2033 = vpack.c.b16 %v1662, %v2017
      %v2034 = vpack.c.b16 %v1664, %v2018
      %v2035 = vpack.c.b16 %v1666, %v2019
      %v2036 = vpack.c.b16 %v1668, %v2020
      %v2037 = vrot.slane %v2021, 1
      %v2038 = vrot.slane %v1749, 1
      %v2039 = vsel %vm1524, %v2037, %v2038
      %v2040 = vrot.slane %v2022, 1
      %v2041 = vrot.slane %v1750, 1
      %v2042 = vsel %vm1524, %v2040, %v2041
      %v2043 = vrot.slane %v2023, 1
      %v2044 = vrot.slane %v1751, 1
      %v2045 = vsel %vm1524, %v2043, %v2044
      %v2046 = vrot.slane %v2024, 1
      %v2047 = vrot.slane %v1752, 1
      %v2048 = vsel %vm1524, %v2046, %v2047
      %v2049 = vrot.slane %v2025, 1
      %v2050 = vrot.slane %v1753, 1
      %v2051 = vsel %vm1524, %v2049, %v2050
      %v2052 = vrot.slane %v2026, 1
      %v2053 = vrot.slane %v1754, 1
      %v2054 = vsel %vm1524, %v2052, %v2053
      %v2055 = vrot.slane %v2027, 1
      %v2056 = vrot.slane %v1755, 1
      %v2057 = vsel %vm1524, %v2055, %v2056
      %v2058 = vrot.slane %v2028, 1
      %v2059 = vrot.slane %v1756, 1
      %v2060 = vsel %vm1524, %v2058, %v2059
      %v2061 = vrot.slane %v2029, 1
      %v2062 = vrot.slane %v1757, 1
      %v2063 = vsel %vm1524, %v2061, %v2062
      %v2064 = vrot.slane %v2030, 1
      %v2065 = vrot.slane %v1758, 1
      %v2066 = vsel %vm1524, %v2064, %v2065
      %v2067 = vrot.slane %v2031, 1
      %v2068 = vrot.slane %v1759, 1
      %v2069 = vsel %vm1524, %v2067, %v2068
      %v2070 = vrot.slane %v2032, 1
      %v2071 = vrot.slane %v1760, 1
      %v2072 = vsel %vm1524, %v2070, %v2071
      %v2073 = vrot.slane %v2033, 1
      %v2074 = vrot.slane %v1761, 1
      %v2075 = vsel %vm1524, %v2073, %v2074
      %v2076 = vrot.slane %v2034, 1
      %v2077 = vrot.slane %v1762, 1
      %v2078 = vsel %vm1524, %v2076, %v2077
      %v2079 = vrot.slane %v2035, 1
      %v2080 = vrot.slane %v1763, 1
      %v2081 = vsel %vm1524, %v2079, %v2080
      %v2082 = vrot.slane %v2036, 1
      %v2083 = vrot.slane %v1764, 1
      %v2084 = vsel %vm1524, %v2082, %v2083
      %2085 = vrot.lane.b32.xlu0 %v2039, 40
      %v2086 = vpop.permute.xlu0 %2085
      %2087 = vrot.lane.b32.xlu0 %v2042, 40
      %v2088 = vpop.permute.xlu0 %2087
      %2089 = vrot.lane.b32.xlu0 %v2045, 40
      %v2090 = vpop.permute.xlu0 %2089
      %2091 = vrot.lane.b32.xlu0 %v2048, 40
      %v2092 = vpop.permute.xlu0 %2091
      %2093 = vrot.lane.b32.xlu0 %v2051, 40
      %v2094 = vpop.permute.xlu0 %2093
      %2095 = vrot.lane.b32.xlu0 %v2054, 40
      %v2096 = vpop.permute.xlu0 %2095
      %2097 = vrot.lane.b32.xlu0 %v2057, 40
      %v2098 = vpop.permute.xlu0 %2097
      %2099 = vrot.lane.b32.xlu0 %v2060, 40
      %v2100 = vpop.permute.xlu0 %2099
      %2101 = vrot.lane.b32.xlu0 %v2063, 40
      %v2102 = vpop.permute.xlu0 %2101
      %2103 = vrot.lane.b32.xlu0 %v2066, 40
      %v2104 = vpop.permute.xlu0 %2103
      %2105 = vrot.lane.b32.xlu0 %v2069, 40
      %v2106 = vpop.permute.xlu0 %2105
      %2107 = vrot.lane.b32.xlu0 %v2072, 40
      %v2108 = vpop.permute.xlu0 %2107
      %2109 = vrot.lane.b32.xlu0 %v2075, 40
      %v2110 = vpop.permute.xlu0 %2109
      %2111 = vrot.lane.b32.xlu0 %v2078, 40
      %v2112 = vpop.permute.xlu0 %2111
      %2113 = vrot.lane.b32.xlu0 %v2081, 40
      %v2114 = vpop.permute.xlu0 %2113
      %2115 = vrot.lane.b32.xlu0 %v2084, 40
      %v2116 = vpop.permute.xlu0 %2115
      %v2149 = vunpack.c.l.b16 %v1059
      %v2150 = vunpack.c.l.b16 %v1060
      %v2151 = vunpack.c.l.b16 %v1061
      %v2152 = vunpack.c.l.b16 %v1062
      %v2153 = vunpack.c.l.b16 %v1063
      %v2154 = vunpack.c.l.b16 %v1064
      %v2155 = vunpack.c.l.b16 %v1065
      %v2156 = vunpack.c.l.b16 %v1066
      %v2157 = vunpack.c.l.b16 %v1067
      %v2158 = vunpack.c.l.b16 %v1068
      %v2159 = vunpack.c.l.b16 %v1069
      %v2160 = vunpack.c.l.b16 %v1070
      %v2161 = vunpack.c.l.b16 %v1071
      %v2162 = vunpack.c.l.b16 %v1072
      %v2163 = vunpack.c.l.b16 %v1073
      %v2164 = vunpack.c.l.b16 %v1074
      %v2165 = vunpack.c.l.b16 %v1075
      %v2166 = vunpack.c.l.b16 %v1076
      %v2167 = vunpack.c.l.b16 %v1077
      %v2168 = vunpack.c.l.b16 %v1078
      %v2169 = vunpack.c.l.b16 %v1079
      %v2170 = vunpack.c.l.b16 %v1080
      %v2171 = vunpack.c.l.b16 %v1081
      %v2172 = vunpack.c.l.b16 %v1082
      %v2173 = vunpack.c.l.b16 %v1083
      %v2174 = vunpack.c.l.b16 %v1084
      %v2175 = vunpack.c.l.b16 %v1085
      %v2176 = vunpack.c.l.b16 %v1086
      %v2177 = vunpack.c.l.b16 %v1087
      %v2178 = vunpack.c.l.b16 %v1088
      %v2179 = vunpack.c.l.b16 %v1089
      %v2180 = vunpack.c.l.b16 %v1090
      %v2181 = vpack.c.b16 %v2150, %v2149
      %v2182 = vpack.c.b16 %v2152, %v2151
      %v2183 = vpack.c.b16 %v2154, %v2153
      %v2184 = vpack.c.b16 %v2156, %v2155
      %v2185 = vpack.c.b16 %v2158, %v2157
      %v2186 = vpack.c.b16 %v2160, %v2159
      %v2187 = vpack.c.b16 %v2162, %v2161
      %v2188 = vpack.c.b16 %v2164, %v2163
      %v2189 = vpack.c.b16 %v2166, %v2165
      %v2190 = vpack.c.b16 %v2168, %v2167
      %v2191 = vpack.c.b16 %v2170, %v2169
      %v2192 = vpack.c.b16 %v2172, %v2171
      %v2193 = vpack.c.b16 %v2174, %v2173
      %v2194 = vpack.c.b16 %v2176, %v2175
      %v2195 = vpack.c.b16 %v2178, %v2177
      %v2196 = vpack.c.b16 %v2180, %v2179
      %2197 = vrot.lane.b32.xlu0 %v2181, 48
      %v2198 = vpop.permute.xlu0 %2197
      %2199 = vrot.lane.b32.xlu0 %v2182, 48
      %v2200 = vpop.permute.xlu0 %2199
      %2201 = vrot.lane.b32.xlu0 %v2183, 48
      %v2202 = vpop.permute.xlu0 %2201
      %2203 = vrot.lane.b32.xlu0 %v2184, 48
      %v2204 = vpop.permute.xlu0 %2203
      %2205 = vrot.lane.b32.xlu0 %v2185, 48
      %v2206 = vpop.permute.xlu0 %2205
      %2207 = vrot.lane.b32.xlu0 %v2186, 48
      %v2208 = vpop.permute.xlu0 %2207
      %2209 = vrot.lane.b32.xlu0 %v2187, 48
      %v2210 = vpop.permute.xlu0 %2209
      %2211 = vrot.lane.b32.xlu0 %v2188, 48
      %v2212 = vpop.permute.xlu0 %2211
      %2213 = vrot.lane.b32.xlu0 %v2189, 48
      %v2214 = vpop.permute.xlu0 %2213
      %2215 = vrot.lane.b32.xlu0 %v2190, 48
      %v2216 = vpop.permute.xlu0 %2215
      %2217 = vrot.lane.b32.xlu0 %v2191, 48
      %v2218 = vpop.permute.xlu0 %2217
      %2219 = vrot.lane.b32.xlu0 %v2192, 48
      %v2220 = vpop.permute.xlu0 %2219
      %2221 = vrot.lane.b32.xlu0 %v2193, 48
      %v2222 = vpop.permute.xlu0 %2221
      %2223 = vrot.lane.b32.xlu0 %v2194, 48
      %v2224 = vpop.permute.xlu0 %2223
      %2225 = vrot.lane.b32.xlu0 %v2195, 48
      %v2226 = vpop.permute.xlu0 %2225
      %2227 = vrot.lane.b32.xlu0 %v2196, 48
      %v2228 = vpop.permute.xlu0 %2227
      %v2245 = vunpack.c.l.b16 %v1091
      %v2246 = vunpack.c.l.b16 %v1092
      %v2247 = vunpack.c.l.b16 %v1093
      %v2248 = vunpack.c.l.b16 %v1094
      %v2249 = vunpack.c.l.b16 %v1095
      %v2250 = vunpack.c.l.b16 %v1096
      %v2251 = vunpack.c.l.b16 %v1097
      %v2252 = vunpack.c.l.b16 %v1098
      %v2253 = vunpack.c.l.b16 %v1099
      %v2254 = vunpack.c.l.b16 %v1100
      %v2255 = vunpack.c.l.b16 %v1101
      %v2256 = vunpack.c.l.b16 %v1102
      %v2257 = vunpack.c.l.b16 %v1103
      %v2258 = vunpack.c.l.b16 %v1104
      %v2259 = vunpack.c.l.b16 %v1105
      %v2260 = vunpack.c.l.b16 %v1106
      %v2261 = vpack.c.b16 %v2245, %v2245
      %v2262 = vpack.c.b16 %v2246, %v2246
      %v2263 = vpack.c.b16 %v2247, %v2247
      %v2264 = vpack.c.b16 %v2248, %v2248
      %v2265 = vpack.c.b16 %v2249, %v2249
      %v2266 = vpack.c.b16 %v2250, %v2250
      %v2267 = vpack.c.b16 %v2251, %v2251
      %v2268 = vpack.c.b16 %v2252, %v2252
      %v2269 = vpack.c.b16 %v2253, %v2253
      %v2270 = vpack.c.b16 %v2254, %v2254
      %v2271 = vpack.c.b16 %v2255, %v2255
      %v2272 = vpack.c.b16 %v2256, %v2256
      %v2273 = vpack.c.b16 %v2257, %v2257
      %v2274 = vpack.c.b16 %v2258, %v2258
      %v2275 = vpack.c.b16 %v2259, %v2259
      %v2276 = vpack.c.b16 %v2260, %v2260
      %v2278 = vshrl.u32 %v2181, 16
      %v2280 = vshll.u32 %v2181, 16
      %v2282 = vrot.slane %v2280, 1
      %v2283 = vor.u32 %v2278, %v2282
      %v2285 = vshll.u32 %v2261, 16
      %v2287 = vrot.slane %v2285, 1
      %v2288 = vsel %vm1251, %v2283, %v2287
      %v2290 = vshrl.u32 %v2182, 16
      %v2292 = vshll.u32 %v2182, 16
      %v2294 = vrot.slane %v2292, 1
      %v2295 = vor.u32 %v2290, %v2294
      %v2297 = vshll.u32 %v2262, 16
      %v2299 = vrot.slane %v2297, 1
      %v2300 = vsel %vm1251, %v2295, %v2299
      %v2302 = vshrl.u32 %v2183, 16
      %v2304 = vshll.u32 %v2183, 16
      %v2306 = vrot.slane %v2304, 1
      %v2307 = vor.u32 %v2302, %v2306
      %v2309 = vshll.u32 %v2263, 16
      %v2311 = vrot.slane %v2309, 1
      %v2312 = vsel %vm1251, %v2307, %v2311
      %v2314 = vshrl.u32 %v2184, 16
      %v2316 = vshll.u32 %v2184, 16
      %v2318 = vrot.slane %v2316, 1
      %v2319 = vor.u32 %v2314, %v2318
      %v2321 = vshll.u32 %v2264, 16
      %v2323 = vrot.slane %v2321, 1
      %v2324 = vsel %vm1251, %v2319, %v2323
      %v2326 = vshrl.u32 %v2185, 16
      %v2328 = vshll.u32 %v2185, 16
      %v2330 = vrot.slane %v2328, 1
      %v2331 = vor.u32 %v2326, %v2330
      %v2333 = vshll.u32 %v2265, 16
      %v2335 = vrot.slane %v2333, 1
      %v2336 = vsel %vm1251, %v2331, %v2335
      %v2338 = vshrl.u32 %v2186, 16
      %v2340 = vshll.u32 %v2186, 16
      %v2342 = vrot.slane %v2340, 1
      %v2343 = vor.u32 %v2338, %v2342
      %v2345 = vshll.u32 %v2266, 16
      %v2347 = vrot.slane %v2345, 1
      %v2348 = vsel %vm1251, %v2343, %v2347
      %v2350 = vshrl.u32 %v2187, 16
      %v2352 = vshll.u32 %v2187, 16
      %v2354 = vrot.slane %v2352, 1
      %v2355 = vor.u32 %v2350, %v2354
      %v2357 = vshll.u32 %v2267, 16
      %v2359 = vrot.slane %v2357, 1
      %v2360 = vsel %vm1251, %v2355, %v2359
      %v2362 = vshrl.u32 %v2188, 16
      %v2364 = vshll.u32 %v2188, 16
      %v2366 = vrot.slane %v2364, 1
      %v2367 = vor.u32 %v2362, %v2366
      %v2369 = vshll.u32 %v2268, 16
      %v2371 = vrot.slane %v2369, 1
      %v2372 = vsel %vm1251, %v2367, %v2371
      %v2374 = vshrl.u32 %v2189, 16
      %v2376 = vshll.u32 %v2189, 16
      %v2378 = vrot.slane %v2376, 1
      %v2379 = vor.u32 %v2374, %v2378
      %v2381 = vshll.u32 %v2269, 16
      %v2383 = vrot.slane %v2381, 1
      %v2384 = vsel %vm1251, %v2379, %v2383
      %v2386 = vshrl.u32 %v2190, 16
      %v2388 = vshll.u32 %v2190, 16
      %v2390 = vrot.slane %v2388, 1
      %v2391 = vor.u32 %v2386, %v2390
      %v2393 = vshll.u32 %v2270, 16
      %v2395 = vrot.slane %v2393, 1
      %v2396 = vsel %vm1251, %v2391, %v2395
      %v2398 = vshrl.u32 %v2191, 16
      %v2400 = vshll.u32 %v2191, 16
      %v2402 = vrot.slane %v2400, 1
      %v2403 = vor.u32 %v2398, %v2402
      %v2405 = vshll.u32 %v2271, 16
      %v2407 = vrot.slane %v2405, 1
      %v2408 = vsel %vm1251, %v2403, %v2407
      %v2410 = vshrl.u32 %v2192, 16
      %v2412 = vshll.u32 %v2192, 16
      %v2414 = vrot.slane %v2412, 1
      %v2415 = vor.u32 %v2410, %v2414
      %v2417 = vshll.u32 %v2272, 16
      %v2419 = vrot.slane %v2417, 1
      %v2420 = vsel %vm1251, %v2415, %v2419
      %v2422 = vshrl.u32 %v2193, 16
      %v2424 = vshll.u32 %v2193, 16
      %v2426 = vrot.slane %v2424, 1
      %v2427 = vor.u32 %v2422, %v2426
      %v2429 = vshll.u32 %v2273, 16
      %v2431 = vrot.slane %v2429, 1
      %v2432 = vsel %vm1251, %v2427, %v2431
      %v2434 = vshrl.u32 %v2194, 16
      %v2436 = vshll.u32 %v2194, 16
      %v2438 = vrot.slane %v2436, 1
      %v2439 = vor.u32 %v2434, %v2438
      %v2441 = vshll.u32 %v2274, 16
      %v2443 = vrot.slane %v2441, 1
      %v2444 = vsel %vm1251, %v2439, %v2443
      %v2446 = vshrl.u32 %v2195, 16
      %v2448 = vshll.u32 %v2195, 16
      %v2450 = vrot.slane %v2448, 1
      %v2451 = vor.u32 %v2446, %v2450
      %v2453 = vshll.u32 %v2275, 16
      %v2455 = vrot.slane %v2453, 1
      %v2456 = vsel %vm1251, %v2451, %v2455
      %v2458 = vshrl.u32 %v2196, 16
      %v2460 = vshll.u32 %v2196, 16
      %v2462 = vrot.slane %v2460, 1
      %v2463 = vor.u32 %v2458, %v2462
      %v2465 = vshll.u32 %v2276, 16
      %v2467 = vrot.slane %v2465, 1
      %v2468 = vsel %vm1251, %v2463, %v2467
      %2469 = vrot.lane.b32.xlu0 %v2288, 56
      %v2470 = vpop.permute.xlu0 %2469
      %2471 = vrot.lane.b32.xlu0 %v2300, 56
      %v2472 = vpop.permute.xlu0 %2471
      %2473 = vrot.lane.b32.xlu0 %v2312, 56
      %v2474 = vpop.permute.xlu0 %2473
      %2475 = vrot.lane.b32.xlu0 %v2324, 56
      %v2476 = vpop.permute.xlu0 %2475
      %2477 = vrot.lane.b32.xlu0 %v2336, 56
      %v2478 = vpop.permute.xlu0 %2477
      %2479 = vrot.lane.b32.xlu0 %v2348, 56
      %v2480 = vpop.permute.xlu0 %2479
      %2481 = vrot.lane.b32.xlu0 %v2360, 56
      %v2482 = vpop.permute.xlu0 %2481
      %2483 = vrot.lane.b32.xlu0 %v2372, 56
      %v2484 = vpop.permute.xlu0 %2483
      %2485 = vrot.lane.b32.xlu0 %v2384, 56
      %v2486 = vpop.permute.xlu0 %2485
      %2487 = vrot.lane.b32.xlu0 %v2396, 56
      %v2488 = vpop.permute.xlu0 %2487
      %2489 = vrot.lane.b32.xlu0 %v2408, 56
      %v2490 = vpop.permute.xlu0 %2489
      %2491 = vrot.lane.b32.xlu0 %v2420, 56
      %v2492 = vpop.permute.xlu0 %2491
      %2493 = vrot.lane.b32.xlu0 %v2432, 56
      %v2494 = vpop.permute.xlu0 %2493
      %2495 = vrot.lane.b32.xlu0 %v2444, 56
      %v2496 = vpop.permute.xlu0 %2495
      %2497 = vrot.lane.b32.xlu0 %v2456, 56
      %v2498 = vpop.permute.xlu0 %2497
      %2499 = vrot.lane.b32.xlu0 %v2468, 56
      %v2500 = vpop.permute.xlu0 %2499
      %v2517 = vunpack.c.l.b16 %v1107
      %v2518 = vunpack.c.l.b16 %v1108
      %v2519 = vunpack.c.l.b16 %v1109
      %v2520 = vunpack.c.l.b16 %v1110
      %v2521 = vunpack.c.l.b16 %v1111
      %v2522 = vunpack.c.l.b16 %v1112
      %v2523 = vunpack.c.l.b16 %v1113
      %v2524 = vunpack.c.l.b16 %v1114
      %v2525 = vunpack.c.l.b16 %v1115
      %v2526 = vunpack.c.l.b16 %v1116
      %v2527 = vunpack.c.l.b16 %v1117
      %v2528 = vunpack.c.l.b16 %v1118
      %v2529 = vunpack.c.l.b16 %v1119
      %v2530 = vunpack.c.l.b16 %v1120
      %v2531 = vunpack.c.l.b16 %v1121
      %v2532 = vunpack.c.l.b16 %v1122
      %v2533 = vpack.c.b16 %v2150, %v2517
      %v2534 = vpack.c.b16 %v2152, %v2518
      %v2535 = vpack.c.b16 %v2154, %v2519
      %v2536 = vpack.c.b16 %v2156, %v2520
      %v2537 = vpack.c.b16 %v2158, %v2521
      %v2538 = vpack.c.b16 %v2160, %v2522
      %v2539 = vpack.c.b16 %v2162, %v2523
      %v2540 = vpack.c.b16 %v2164, %v2524
      %v2541 = vpack.c.b16 %v2166, %v2525
      %v2542 = vpack.c.b16 %v2168, %v2526
      %v2543 = vpack.c.b16 %v2170, %v2527
      %v2544 = vpack.c.b16 %v2172, %v2528
      %v2545 = vpack.c.b16 %v2174, %v2529
      %v2546 = vpack.c.b16 %v2176, %v2530
      %v2547 = vpack.c.b16 %v2178, %v2531
      %v2548 = vpack.c.b16 %v2180, %v2532
      %v2549 = vrot.slane %v2533, 1
      %v2550 = vrot.slane %v2261, 1
      %v2551 = vsel %vm1524, %v2549, %v2550
      %v2552 = vrot.slane %v2534, 1
      %v2553 = vrot.slane %v2262, 1
      %v2554 = vsel %vm1524, %v2552, %v2553
      %v2555 = vrot.slane %v2535, 1
      %v2556 = vrot.slane %v2263, 1
      %v2557 = vsel %vm1524, %v2555, %v2556
      %v2558 = vrot.slane %v2536, 1
      %v2559 = vrot.slane %v2264, 1
      %v2560 = vsel %vm1524, %v2558, %v2559
      %v2561 = vrot.slane %v2537, 1
      %v2562 = vrot.slane %v2265, 1
      %v2563 = vsel %vm1524, %v2561, %v2562
      %v2564 = vrot.slane %v2538, 1
      %v2565 = vrot.slane %v2266, 1
      %v2566 = vsel %vm1524, %v2564, %v2565
      %v2567 = vrot.slane %v2539, 1
      %v2568 = vrot.slane %v2267, 1
      %v2569 = vsel %vm1524, %v2567, %v2568
      %v2570 = vrot.slane %v2540, 1
      %v2571 = vrot.slane %v2268, 1
      %v2572 = vsel %vm1524, %v2570, %v2571
      %v2573 = vrot.slane %v2541, 1
      %v2574 = vrot.slane %v2269, 1
      %v2575 = vsel %vm1524, %v2573, %v2574
      %v2576 = vrot.slane %v2542, 1
      %v2577 = vrot.slane %v2270, 1
      %v2578 = vsel %vm1524, %v2576, %v2577
      %v2579 = vrot.slane %v2543, 1
      %v2580 = vrot.slane %v2271, 1
      %v2581 = vsel %vm1524, %v2579, %v2580
      %v2582 = vrot.slane %v2544, 1
      %v2583 = vrot.slane %v2272, 1
      %v2584 = vsel %vm1524, %v2582, %v2583
      %v2585 = vrot.slane %v2545, 1
      %v2586 = vrot.slane %v2273, 1
      %v2587 = vsel %vm1524, %v2585, %v2586
      %v2588 = vrot.slane %v2546, 1
      %v2589 = vrot.slane %v2274, 1
      %v2590 = vsel %vm1524, %v2588, %v2589
      %v2591 = vrot.slane %v2547, 1
      %v2592 = vrot.slane %v2275, 1
      %v2593 = vsel %vm1524, %v2591, %v2592
      %v2594 = vrot.slane %v2548, 1
      %v2595 = vrot.slane %v2276, 1
      %v2596 = vsel %vm1524, %v2594, %v2595
      %2597 = vrot.lane.b32.xlu0 %v2551, 64
      %v2598 = vpop.permute.xlu0 %2597
      %2599 = vrot.lane.b32.xlu0 %v2554, 64
      %v2600 = vpop.permute.xlu0 %2599
      %2601 = vrot.lane.b32.xlu0 %v2557, 64
      %v2602 = vpop.permute.xlu0 %2601
      %2603 = vrot.lane.b32.xlu0 %v2560, 64
      %v2604 = vpop.permute.xlu0 %2603
      %2605 = vrot.lane.b32.xlu0 %v2563, 64
      %v2606 = vpop.permute.xlu0 %2605
      %2607 = vrot.lane.b32.xlu0 %v2566, 64
      %v2608 = vpop.permute.xlu0 %2607
      %2609 = vrot.lane.b32.xlu0 %v2569, 64
      %v2610 = vpop.permute.xlu0 %2609
      %2611 = vrot.lane.b32.xlu0 %v2572, 64
      %v2612 = vpop.permute.xlu0 %2611
      %2613 = vrot.lane.b32.xlu0 %v2575, 64
      %v2614 = vpop.permute.xlu0 %2613
      %2615 = vrot.lane.b32.xlu0 %v2578, 64
      %v2616 = vpop.permute.xlu0 %2615
      %2617 = vrot.lane.b32.xlu0 %v2581, 64
      %v2618 = vpop.permute.xlu0 %2617
      %2619 = vrot.lane.b32.xlu0 %v2584, 64
      %v2620 = vpop.permute.xlu0 %2619
      %2621 = vrot.lane.b32.xlu0 %v2587, 64
      %v2622 = vpop.permute.xlu0 %2621
      %2623 = vrot.lane.b32.xlu0 %v2590, 64
      %v2624 = vpop.permute.xlu0 %2623
      %2625 = vrot.lane.b32.xlu0 %v2593, 64
      %v2626 = vpop.permute.xlu0 %2625
      %2627 = vrot.lane.b32.xlu0 %v2596, 64
      %v2628 = vpop.permute.xlu0 %2627
      %vm2629 = vcmask 64512
      %v2631 = vsel %vm2629, %v1187, %v1445
      %v2633 = vsel %vm2629, %v1188, %v1447
      %v2635 = vsel %vm2629, %v1189, %v1449
      %v2637 = vsel %vm2629, %v1190, %v1451
      %v2639 = vsel %vm2629, %v1191, %v1453
      %v2641 = vsel %vm2629, %v1192, %v1455
      %v2643 = vsel %vm2629, %v1193, %v1457
      %v2645 = vsel %vm2629, %v1194, %v1459
      %v2647 = vsel %vm2629, %v1195, %v1461
      %v2649 = vsel %vm2629, %v1196, %v1463
      %v2651 = vsel %vm2629, %v1197, %v1465
      %v2653 = vsel %vm2629, %v1198, %v1467
      %v2655 = vsel %vm2629, %v1199, %v1469
      %v2657 = vsel %vm2629, %v1200, %v1471
      %v2659 = vsel %vm2629, %v1201, %v1473
      %v2661 = vsel %vm2629, %v1202, %v1475
      %vm2662 = vcmask 130048
      %v2664 = vsel %vm2662, %v2631, %v1574
      %v2666 = vsel %vm2662, %v2633, %v1576
      %v2668 = vsel %vm2662, %v2635, %v1578
      %v2670 = vsel %vm2662, %v2637, %v1580
      %v2672 = vsel %vm2662, %v2639, %v1582
      %v2674 = vsel %vm2662, %v2641, %v1584
      %v2676 = vsel %vm2662, %v2643, %v1586
      %v2678 = vsel %vm2662, %v2645, %v1588
      %v2680 = vsel %vm2662, %v2647, %v1590
      %v2682 = vsel %vm2662, %v2649, %v1592
      %v2684 = vsel %vm2662, %v2651, %v1594
      %v2686 = vsel %vm2662, %v2653, %v1596
      %v2688 = vsel %vm2662, %v2655, %v1598
      %v2690 = vsel %vm2662, %v2657, %v1600
      %v2692 = vsel %vm2662, %v2659, %v1602
      %v2694 = vsel %vm2662, %v2661, %v1604
      %vm2695 = vcmask 195584
      %v2697 = vsel %vm2695, %v2664, %v1686
      %v2699 = vsel %vm2695, %v2666, %v1688
      %v2701 = vsel %vm2695, %v2668, %v1690
      %v2703 = vsel %vm2695, %v2670, %v1692
      %v2705 = vsel %vm2695, %v2672, %v1694
      %v2707 = vsel %vm2695, %v2674, %v1696
      %v2709 = vsel %vm2695, %v2676, %v1698
      %v2711 = vsel %vm2695, %v2678, %v1700
      %v2713 = vsel %vm2695, %v2680, %v1702
      %v2715 = vsel %vm2695, %v2682, %v1704
      %v2717 = vsel %vm2695, %v2684, %v1706
      %v2719 = vsel %vm2695, %v2686, %v1708
      %v2721 = vsel %vm2695, %v2688, %v1710
      %v2723 = vsel %vm2695, %v2690, %v1712
      %v2725 = vsel %vm2695, %v2692, %v1714
      %v2727 = vsel %vm2695, %v2694, %v1716
      %vm2728 = vcmask 261120
      %v2730 = vsel %vm2728, %v2697, %v1958
      %v2732 = vsel %vm2728, %v2699, %v1960
      %v2734 = vsel %vm2728, %v2701, %v1962
      %v2736 = vsel %vm2728, %v2703, %v1964
      %v2738 = vsel %vm2728, %v2705, %v1966
      %v2740 = vsel %vm2728, %v2707, %v1968
      %v2742 = vsel %vm2728, %v2709, %v1970
      %v2744 = vsel %vm2728, %v2711, %v1972
      %v2746 = vsel %vm2728, %v2713, %v1974
      %v2748 = vsel %vm2728, %v2715, %v1976
      %v2750 = vsel %vm2728, %v2717, %v1978
      %v2752 = vsel %vm2728, %v2719, %v1980
      %v2754 = vsel %vm2728, %v2721, %v1982
      %v2756 = vsel %vm2728, %v2723, %v1984
      %v2758 = vsel %vm2728, %v2725, %v1986
      %v2760 = vsel %vm2728, %v2727, %v1988
      %vm2761 = vcmask 326656
      %v2763 = vsel %vm2761, %v2730, %v2086
      %v2765 = vsel %vm2761, %v2732, %v2088
      %v2767 = vsel %vm2761, %v2734, %v2090
      %v2769 = vsel %vm2761, %v2736, %v2092
      %v2771 = vsel %vm2761, %v2738, %v2094
      %v2773 = vsel %vm2761, %v2740, %v2096
      %v2775 = vsel %vm2761, %v2742, %v2098
      %v2777 = vsel %vm2761, %v2744, %v2100
      %v2779 = vsel %vm2761, %v2746, %v2102
      %v2781 = vsel %vm2761, %v2748, %v2104
      %v2783 = vsel %vm2761, %v2750, %v2106
      %v2785 = vsel %vm2761, %v2752, %v2108
      %v2787 = vsel %vm2761, %v2754, %v2110
      %v2789 = vsel %vm2761, %v2756, %v2112
      %v2791 = vsel %vm2761, %v2758, %v2114
      %v2793 = vsel %vm2761, %v2760, %v2116
      %vm2794 = vcmask 392192
      %v2796 = vsel %vm2794, %v2763, %v2198
      %v2798 = vsel %vm2794, %v2765, %v2200
      %v2800 = vsel %vm2794, %v2767, %v2202
      %v2802 = vsel %vm2794, %v2769, %v2204
      %v2804 = vsel %vm2794, %v2771, %v2206
      %v2806 = vsel %vm2794, %v2773, %v2208
      %v2808 = vsel %vm2794, %v2775, %v2210
      %v2810 = vsel %vm2794, %v2777, %v2212
      %v2812 = vsel %vm2794, %v2779, %v2214
      %v2814 = vsel %vm2794, %v2781, %v2216
      %v2816 = vsel %vm2794, %v2783, %v2218
      %v2818 = vsel %vm2794, %v2785, %v2220
      %v2820 = vsel %vm2794, %v2787, %v2222
      %v2822 = vsel %vm2794, %v2789, %v2224
      %v2824 = vsel %vm2794, %v2791, %v2226
      %v2826 = vsel %vm2794, %v2793, %v2228
      %vm2827 = vcmask 457728
      %v2829 = vsel %vm2827, %v2796, %v2470
      %v2831 = vsel %vm2827, %v2798, %v2472
      %v2833 = vsel %vm2827, %v2800, %v2474
      %v2835 = vsel %vm2827, %v2802, %v2476
      %v2837 = vsel %vm2827, %v2804, %v2478
      %v2839 = vsel %vm2827, %v2806, %v2480
      %v2841 = vsel %vm2827, %v2808, %v2482
      %v2843 = vsel %vm2827, %v2810, %v2484
      %v2845 = vsel %vm2827, %v2812, %v2486
      %v2847 = vsel %vm2827, %v2814, %v2488
      %v2849 = vsel %vm2827, %v2816, %v2490
      %v2851 = vsel %vm2827, %v2818, %v2492
      %v2853 = vsel %vm2827, %v2820, %v2494
      %v2855 = vsel %vm2827, %v2822, %v2496
      %v2857 = vsel %vm2827, %v2824, %v2498
      %v2859 = vsel %vm2827, %v2826, %v2500
      %vm2860 = vcmask 523264
      %v2862 = vsel %vm2860, %v2829, %v2598
      %v2864 = vsel %vm2860, %v2831, %v2600
      %v2866 = vsel %vm2860, %v2833, %v2602
      %v2868 = vsel %vm2860, %v2835, %v2604
      %v2870 = vsel %vm2860, %v2837, %v2606
      %v2872 = vsel %vm2860, %v2839, %v2608
      %v2874 = vsel %vm2860, %v2841, %v2610
      %v2876 = vsel %vm2860, %v2843, %v2612
      %v2878 = vsel %vm2860, %v2845, %v2614
      %v2880 = vsel %vm2860, %v2847, %v2616
      %v2882 = vsel %vm2860, %v2849, %v2618
      %v2884 = vsel %vm2860, %v2851, %v2620
      %v2886 = vsel %vm2860, %v2853, %v2622
      %v2888 = vsel %vm2860, %v2855, %v2624
      %v2890 = vsel %vm2860, %v2857, %v2626
      %v2892 = vsel %vm2860, %v2859, %v2628
      %v2893 = vld [vmem:[%s3] sm:$0xf]
      %v2894 = vld [vmem:[%s3 + $0x4] sm:$0xf]
      %v2895 = vld [vmem:[%s3 + $0x8] sm:$0xf]
      %v2896 = vld [vmem:[%s3 + $0xc] sm:$0xf]
      %v2897 = vld [vmem:[%s3 + $0x10] sm:$0xf]
      %v2898 = vld [vmem:[%s3 + $0x14] sm:$0xf]
      %v2899 = vld [vmem:[%s3 + $0x18] sm:$0xf]
      %v2900 = vld [vmem:[%s3 + $0x1c] sm:$0xf]
      %v2901 = vld [vmem:[%s3 + $0x20] sm:$0xf]
      %v2911 = vunpack.c.l.b16 %v2893
      %v2912 = vunpack.c.l.b16 %v2894
      %v2913 = vunpack.c.l.b16 %v2895
      %v2914 = vunpack.c.l.b16 %v2896
      %v2915 = vunpack.c.l.b16 %v2897
      %v2916 = vunpack.c.l.b16 %v2898
      %v2917 = vunpack.c.l.b16 %v2899
      %v2918 = vunpack.c.l.b16 %v2900
      %v2919 = vunpack.c.l.b16 %v2901
      %v2920 = vpack.c.b16 %v2912, %v2911
      %v2921 = vpack.c.b16 %v2914, %v2913
      %v2922 = vpack.c.b16 %v2916, %v2915
      %v2923 = vpack.c.b16 %v2918, %v2917
      %v2924 = vpack.c.b16 %v2919, %v2919
      %vm2929 = vcmask 588800
      %v2930 = vsel %vm2929, %v2862, 0
      %v2932 = vsel %vm2929, %v2864, 0
      %v2934 = vsel %vm2929, %v2866, 0
      %v2936 = vsel %vm2929, %v2868, 0
      %v2938 = vsel %vm2929, %v2870, 0
      %v2940 = vsel %vm2929, %v2872, 0
      %v2942 = vsel %vm2929, %v2874, 0
      %v2944 = vsel %vm2929, %v2876, 0
      %v2946 = vsel %vm2929, %v2878, 0
      %v2948 = vsel %vm2929, %v2880, 0
      %v2950 = vsel %vm2929, %v2882, 0
      %v2952 = vsel %vm2929, %v2884, 0
      %v2954 = vsel %vm2929, %v2886, 0
      %v2956 = vsel %vm2929, %v2888, 0
      %v2958 = vsel %vm2929, %v2890, 0
      %v2960 = vsel %vm2929, %v2892, 0
      %vm2962 = vcmask 1043456
      %v2964 = vsel %vm2962, %v2924, 0
      %2966 = vmatpush.bf16.msra.mxu0 0
      %2967 = vmatpush.bf16.msra.mxu0 0
      %2968 = vmatpush.bf16.msra.mxu0 0
      %2969 = vmatpush.bf16.msra.mxu0 %v2964
      %2970 = vmatpush.bf16.msra.mxu0 %v2923
      %2971 = vmatpush.bf16.msra.mxu0 %v2922
      %2972 = vmatpush.bf16.msra.mxu0 %v2921
      %2973 = vmatpush.bf16.msra.mxu0 %v2920
      %2974 = vmatmul.bf16.gmra.mxu0 %v2930
      %v2975 = vpop.f32.mrf.mxu0
      %v2976 = vadd.f32 0.0, %v2975
      %v2977 = vpop.f32.mrf.mxu0
      %v2978 = vadd.f32 0.0, %v2977
      %2979 = vmatmul.bf16.gmra.mxu0 %v2932
      %v2980 = vpop.f32.mrf.mxu0
      %v2981 = vadd.f32 0.0, %v2980
      %v2982 = vpop.f32.mrf.mxu0
      %v2983 = vadd.f32 0.0, %v2982
      %2984 = vmatmul.bf16.gmra.mxu0 %v2934
      %v2985 = vpop.f32.mrf.mxu0
      %v2986 = vadd.f32 0.0, %v2985
      %v2987 = vpop.f32.mrf.mxu0
      %v2988 = vadd.f32 0.0, %v2987
      %2989 = vmatmul.bf16.gmra.mxu0 %v2936
      %v2990 = vpop.f32.mrf.mxu0
      %v2991 = vadd.f32 0.0, %v2990
      %v2992 = vpop.f32.mrf.mxu0
      %v2993 = vadd.f32 0.0, %v2992
      %2994 = vmatmul.bf16.gmra.mxu0 %v2938
      %v2995 = vpop.f32.mrf.mxu0
      %v2996 = vadd.f32 0.0, %v2995
      %v2997 = vpop.f32.mrf.mxu0
      %v2998 = vadd.f32 0.0, %v2997
      %2999 = vmatmul.bf16.gmra.mxu0 %v2940
      %v3000 = vpop.f32.mrf.mxu0
      %v3001 = vadd.f32 0.0, %v3000
      %v3002 = vpop.f32.mrf.mxu0
      %v3003 = vadd.f32 0.0, %v3002
      %3004 = vmatmul.bf16.gmra.mxu0 %v2942
      %v3005 = vpop.f32.mrf.mxu0
      %v3006 = vadd.f32 0.0, %v3005
      %v3007 = vpop.f32.mrf.mxu0
      %v3008 = vadd.f32 0.0, %v3007
      %3009 = vmatmul.bf16.gmra.mxu0 %v2944
      %v3010 = vpop.f32.mrf.mxu0
      %v3011 = vadd.f32 0.0, %v3010
      %v3012 = vpop.f32.mrf.mxu0
      %v3013 = vadd.f32 0.0, %v3012
      %3014 = vmatmul.bf16.gmra.mxu0 %v2946
      %v3015 = vpop.f32.mrf.mxu0
      %v3016 = vadd.f32 0.0, %v3015
      %v3017 = vpop.f32.mrf.mxu0
      %v3018 = vadd.f32 0.0, %v3017
      %3019 = vmatmul.bf16.gmra.mxu0 %v2948
      %v3020 = vpop.f32.mrf.mxu0
      %v3021 = vadd.f32 0.0, %v3020
      %v3022 = vpop.f32.mrf.mxu0
      %v3023 = vadd.f32 0.0, %v3022
      %3024 = vmatmul.bf16.gmra.mxu0 %v2950
      %v3025 = vpop.f32.mrf.mxu0
      %v3026 = vadd.f32 0.0, %v3025
      %v3027 = vpop.f32.mrf.mxu0
      %v3028 = vadd.f32 0.0, %v3027
      %3029 = vmatmul.bf16.gmra.mxu0 %v2952
      %v3030 = vpop.f32.mrf.mxu0
      %v3031 = vadd.f32 0.0, %v3030
      %v3032 = vpop.f32.mrf.mxu0
      %v3033 = vadd.f32 0.0, %v3032
      %3034 = vmatmul.bf16.gmra.mxu0 %v2954
      %v3035 = vpop.f32.mrf.mxu0
      %v3036 = vadd.f32 0.0, %v3035
      %v3037 = vpop.f32.mrf.mxu0
      %v3038 = vadd.f32 0.0, %v3037
      %3039 = vmatmul.bf16.gmra.mxu0 %v2956
      %v3040 = vpop.f32.mrf.mxu0
      %v3041 = vadd.f32 0.0, %v3040
      %v3042 = vpop.f32.mrf.mxu0
      %v3043 = vadd.f32 0.0, %v3042
      %3044 = vmatmul.bf16.gmra.mxu0 %v2958
      %v3045 = vpop.f32.mrf.mxu0
      %v3046 = vadd.f32 0.0, %v3045
      %v3047 = vpop.f32.mrf.mxu0
      %v3048 = vadd.f32 0.0, %v3047
      %3049 = vmatmul.bf16.gmra.mxu0 %v2960
      %v3050 = vpop.f32.mrf.mxu0
      %v3051 = vadd.f32 0.0, %v3050
      %v3052 = vpop.f32.mrf.mxu0
      %v3053 = vadd.f32 0.0, %v3052
      %3054 = vdwg.mxu0
      %v3055 = vsel %vm2629, %v2976, 0.0
      %v3056 = vsel %vm2629, %v2978, 0.0
      %v3057 = vadd.f32 %v3055, %v3056
      %v3058 = vsel %vm2629, %v2981, 0.0
      %v3059 = vadd.f32 %v3057, %v3058
      %v3060 = vsel %vm2629, %v2983, 0.0
      %v3061 = vadd.f32 %v3059, %v3060
      %v3062 = vsel %vm2629, %v2986, 0.0
      %v3063 = vadd.f32 %v3061, %v3062
      %v3064 = vsel %vm2629, %v2988, 0.0
      %v3065 = vadd.f32 %v3063, %v3064
      %v3066 = vsel %vm2629, %v2991, 0.0
      %v3067 = vadd.f32 %v3065, %v3066
      %v3068 = vsel %vm2629, %v2993, 0.0
      %v3069 = vadd.f32 %v3067, %v3068
      %v3070 = vsel %vm2629, %v2996, 0.0
      %v3071 = vadd.f32 %v3069, %v3070
      %v3072 = vsel %vm2629, %v2998, 0.0
      %v3073 = vadd.f32 %v3071, %v3072
      %v3074 = vsel %vm2629, %v3001, 0.0
      %v3075 = vadd.f32 %v3073, %v3074
      %v3076 = vsel %vm2629, %v3003, 0.0
      %v3077 = vadd.f32 %v3075, %v3076
      %v3078 = vsel %vm2629, %v3006, 0.0
      %v3079 = vadd.f32 %v3077, %v3078
      %v3080 = vsel %vm2629, %v3008, 0.0
      %v3081 = vadd.f32 %v3079, %v3080
      %v3082 = vsel %vm2629, %v3011, 0.0
      %v3083 = vadd.f32 %v3081, %v3082
      %v3084 = vsel %vm2629, %v3013, 0.0
      %v3085 = vadd.f32 %v3083, %v3084
      %v3086 = vsel %vm2629, %v3016, 0.0
      %v3087 = vadd.f32 %v3085, %v3086
      %v3088 = vsel %vm2629, %v3018, 0.0
      %v3089 = vadd.f32 %v3087, %v3088
      %v3090 = vsel %vm2629, %v3021, 0.0
      %v3091 = vadd.f32 %v3089, %v3090
      %v3092 = vsel %vm2629, %v3023, 0.0
      %v3093 = vadd.f32 %v3091, %v3092
      %v3094 = vsel %vm2629, %v3026, 0.0
      %v3095 = vadd.f32 %v3093, %v3094
      %v3096 = vsel %vm2629, %v3028, 0.0
      %v3097 = vadd.f32 %v3095, %v3096
      %v3098 = vsel %vm2629, %v3031, 0.0
      %v3099 = vadd.f32 %v3097, %v3098
      %v3100 = vsel %vm2629, %v3033, 0.0
      %v3101 = vadd.f32 %v3099, %v3100
      %v3102 = vsel %vm2629, %v3036, 0.0
      %v3103 = vadd.f32 %v3101, %v3102
      %v3104 = vsel %vm2629, %v3038, 0.0
      %v3105 = vadd.f32 %v3103, %v3104
      %v3106 = vsel %vm2629, %v3041, 0.0
      %v3107 = vadd.f32 %v3105, %v3106
      %v3108 = vsel %vm2629, %v3043, 0.0
      %v3109 = vadd.f32 %v3107, %v3108
      %v3110 = vsel %vm2629, %v3046, 0.0
      %v3111 = vadd.f32 %v3109, %v3110
      %v3112 = vsel %vm2629, %v3048, 0.0
      %v3113 = vadd.f32 %v3111, %v3112
      %v3114 = vsel %vm2629, %v3051, 0.0
      %v3115 = vadd.f32 %v3113, %v3114
      %v3116 = vsel %vm2629, %v3053, 0.0
      %v3117 = vadd.f32 %v3115, %v3116
      %v3118 = vrot.slane %v3117, 4
      %v3119 = vadd.f32 %v3117, %v3118
      %v3120 = vrot.slane %v3119, 2
      %v3121 = vadd.f32 %v3119, %v3120
      %v3122 = vrot.slane %v3121, 1
      %v3123 = vadd.f32 %v3121, %v3122
      %v3124 = vadd.f32 %v3123, 0.0
      %v3125 = vmul.f32 %v2976, %v2976
      %v3126 = vmul.f32 %v2978, %v2978
      %v3127 = vmul.f32 %v2981, %v2981
      %v3128 = vmul.f32 %v2983, %v2983
      %v3129 = vmul.f32 %v2986, %v2986
      %v3130 = vmul.f32 %v2988, %v2988
      %v3131 = vmul.f32 %v2991, %v2991
      %v3132 = vmul.f32 %v2993, %v2993
      %v3133 = vmul.f32 %v2996, %v2996
      %v3134 = vmul.f32 %v2998, %v2998
      %v3135 = vmul.f32 %v3001, %v3001
      %v3136 = vmul.f32 %v3003, %v3003
      %v3137 = vmul.f32 %v3006, %v3006
      %v3138 = vmul.f32 %v3008, %v3008
      %v3139 = vmul.f32 %v3011, %v3011
      %v3140 = vmul.f32 %v3013, %v3013
      %v3141 = vmul.f32 %v3016, %v3016
      %v3142 = vmul.f32 %v3018, %v3018
      %v3143 = vmul.f32 %v3021, %v3021
      %v3144 = vmul.f32 %v3023, %v3023
      %v3145 = vmul.f32 %v3026, %v3026
      %v3146 = vmul.f32 %v3028, %v3028
      %v3147 = vmul.f32 %v3031, %v3031
      %v3148 = vmul.f32 %v3033, %v3033
      %v3149 = vmul.f32 %v3036, %v3036
      %v3150 = vmul.f32 %v3038, %v3038
      %v3151 = vmul.f32 %v3041, %v3041
      %v3152 = vmul.f32 %v3043, %v3043
      %v3153 = vmul.f32 %v3046, %v3046
      %v3154 = vmul.f32 %v3048, %v3048
      %v3155 = vmul.f32 %v3051, %v3051
      %v3156 = vmul.f32 %v3053, %v3053
      %v3157 = vsel %vm2629, %v3125, 0.0
      %v3158 = vsel %vm2629, %v3126, 0.0
      %v3159 = vadd.f32 %v3157, %v3158
      %v3160 = vsel %vm2629, %v3127, 0.0
      %v3161 = vadd.f32 %v3159, %v3160
      %v3162 = vsel %vm2629, %v3128, 0.0
      %v3163 = vadd.f32 %v3161, %v3162
      %v3164 = vsel %vm2629, %v3129, 0.0
      %v3165 = vadd.f32 %v3163, %v3164
      %v3166 = vsel %vm2629, %v3130, 0.0
      %v3167 = vadd.f32 %v3165, %v3166
      %v3168 = vsel %vm2629, %v3131, 0.0
      %v3169 = vadd.f32 %v3167, %v3168
      %v3170 = vsel %vm2629, %v3132, 0.0
      %v3171 = vadd.f32 %v3169, %v3170
      %v3172 = vsel %vm2629, %v3133, 0.0
      %v3173 = vadd.f32 %v3171, %v3172
      %v3174 = vsel %vm2629, %v3134, 0.0
      %v3175 = vadd.f32 %v3173, %v3174
      %v3176 = vsel %vm2629, %v3135, 0.0
      %v3177 = vadd.f32 %v3175, %v3176
      %v3178 = vsel %vm2629, %v3136, 0.0
      %v3179 = vadd.f32 %v3177, %v3178
      %v3180 = vsel %vm2629, %v3137, 0.0
      %v3181 = vadd.f32 %v3179, %v3180
      %v3182 = vsel %vm2629, %v3138, 0.0
      %v3183 = vadd.f32 %v3181, %v3182
      %v3184 = vsel %vm2629, %v3139, 0.0
      %v3185 = vadd.f32 %v3183, %v3184
      %v3186 = vsel %vm2629, %v3140, 0.0
      %v3187 = vadd.f32 %v3185, %v3186
      %v3188 = vsel %vm2629, %v3141, 0.0
      %v3189 = vadd.f32 %v3187, %v3188
      %v3190 = vsel %vm2629, %v3142, 0.0
      %v3191 = vadd.f32 %v3189, %v3190
      %v3192 = vsel %vm2629, %v3143, 0.0
      %v3193 = vadd.f32 %v3191, %v3192
      %v3194 = vsel %vm2629, %v3144, 0.0
      %v3195 = vadd.f32 %v3193, %v3194
      %v3196 = vsel %vm2629, %v3145, 0.0
      %v3197 = vadd.f32 %v3195, %v3196
      %v3198 = vsel %vm2629, %v3146, 0.0
      %v3199 = vadd.f32 %v3197, %v3198
      %v3200 = vsel %vm2629, %v3147, 0.0
      %v3201 = vadd.f32 %v3199, %v3200
      %v3202 = vsel %vm2629, %v3148, 0.0
      %v3203 = vadd.f32 %v3201, %v3202
      %v3204 = vsel %vm2629, %v3149, 0.0
      %v3205 = vadd.f32 %v3203, %v3204
      %v3206 = vsel %vm2629, %v3150, 0.0
      %v3207 = vadd.f32 %v3205, %v3206
      %v3208 = vsel %vm2629, %v3151, 0.0
      %v3209 = vadd.f32 %v3207, %v3208
      %v3210 = vsel %vm2629, %v3152, 0.0
      %v3211 = vadd.f32 %v3209, %v3210
      %v3212 = vsel %vm2629, %v3153, 0.0
      %v3213 = vadd.f32 %v3211, %v3212
      %v3214 = vsel %vm2629, %v3154, 0.0
      %v3215 = vadd.f32 %v3213, %v3214
      %v3216 = vsel %vm2629, %v3155, 0.0
      %v3217 = vadd.f32 %v3215, %v3216
      %v3218 = vsel %vm2629, %v3156, 0.0
      %v3219 = vadd.f32 %v3217, %v3218
      %v3220 = vrot.slane %v3219, 4
      %v3221 = vadd.f32 %v3219, %v3220
      %v3222 = vrot.slane %v3221, 2
      %v3223 = vadd.f32 %v3221, %v3222
      %v3224 = vrot.slane %v3223, 1
      %v3225 = vadd.f32 %v3223, %v3224
      %v3226 = vadd.f32 %v3225, 0.0
      %v3227 = vpack.c.bf16 %v2976, %v2976
      %v3228 = vpack.c.bf16 %v2978, %v2978
      %v3229 = vpack.c.bf16 %v2981, %v2981
      %v3230 = vpack.c.bf16 %v2983, %v2983
      %v3231 = vpack.c.bf16 %v2986, %v2986
      %v3232 = vpack.c.bf16 %v2988, %v2988
      %v3233 = vpack.c.bf16 %v2991, %v2991
      %v3234 = vpack.c.bf16 %v2993, %v2993
      %v3235 = vpack.c.bf16 %v2996, %v2996
      %v3236 = vpack.c.bf16 %v2998, %v2998
      %v3237 = vpack.c.bf16 %v3001, %v3001
      %v3238 = vpack.c.bf16 %v3003, %v3003
      %v3239 = vpack.c.bf16 %v3006, %v3006
      %v3240 = vpack.c.bf16 %v3008, %v3008
      %v3241 = vpack.c.bf16 %v3011, %v3011
      %v3242 = vpack.c.bf16 %v3013, %v3013
      %v3243 = vpack.c.bf16 %v3016, %v3016
      %v3244 = vpack.c.bf16 %v3018, %v3018
      %v3245 = vpack.c.bf16 %v3021, %v3021
      %v3246 = vpack.c.bf16 %v3023, %v3023
      %v3247 = vpack.c.bf16 %v3026, %v3026
      %v3248 = vpack.c.bf16 %v3028, %v3028
      %v3249 = vpack.c.bf16 %v3031, %v3031
      %v3250 = vpack.c.bf16 %v3033, %v3033
      %v3251 = vpack.c.bf16 %v3036, %v3036
      %v3252 = vpack.c.bf16 %v3038, %v3038
      %v3253 = vpack.c.bf16 %v3041, %v3041
      %v3254 = vpack.c.bf16 %v3043, %v3043
      %v3255 = vpack.c.bf16 %v3046, %v3046
      %v3256 = vpack.c.bf16 %v3048, %v3048
      %v3257 = vpack.c.bf16 %v3051, %v3051
      %v3258 = vpack.c.bf16 %v3053, %v3053
      %3259 = vst.msk [vmem:[%s231] sm:$0xf] %vm437, %v3227
      %3260 = vst.msk [vmem:[%s231 + $0x4] sm:$0xf] %vm437, %v3228
      %3261 = vst.msk [vmem:[%s231 + $0x8] sm:$0xf] %vm437, %v3229
      %3262 = vst.msk [vmem:[%s231 + $0xc] sm:$0xf] %vm437, %v3230
      %3263 = vst.msk [vmem:[%s231 + $0x10] sm:$0xf] %vm437, %v3231
      %3264 = vst.msk [vmem:[%s231 + $0x14] sm:$0xf] %vm437, %v3232
      %3265 = vst.msk [vmem:[%s231 + $0x18] sm:$0xf] %vm437, %v3233
      %3266 = vst.msk [vmem:[%s231 + $0x1c] sm:$0xf] %vm437, %v3234
      %3267 = vst.msk [vmem:[%s231 + $0x20] sm:$0xf] %vm437, %v3235
      %3268 = vst.msk [vmem:[%s231 + $0x24] sm:$0xf] %vm437, %v3236
      %3269 = vst.msk [vmem:[%s231 + $0x28] sm:$0xf] %vm437, %v3237
      %3270 = vst.msk [vmem:[%s231 + $0x2c] sm:$0xf] %vm437, %v3238
      %3271 = vst.msk [vmem:[%s231 + $0x30] sm:$0xf] %vm437, %v3239
      %3272 = vst.msk [vmem:[%s231 + $0x34] sm:$0xf] %vm437, %v3240
      %3273 = vst.msk [vmem:[%s231 + $0x38] sm:$0xf] %vm437, %v3241
      %3274 = vst.msk [vmem:[%s231 + $0x3c] sm:$0xf] %vm437, %v3242
      %3275 = vst.msk [vmem:[%s231 + $0x40] sm:$0xf] %vm437, %v3243
      %3276 = vst.msk [vmem:[%s231 + $0x44] sm:$0xf] %vm437, %v3244
      %3277 = vst.msk [vmem:[%s231 + $0x48] sm:$0xf] %vm437, %v3245
      %3278 = vst.msk [vmem:[%s231 + $0x4c] sm:$0xf] %vm437, %v3246
      %3279 = vst.msk [vmem:[%s231 + $0x50] sm:$0xf] %vm437, %v3247
      %3280 = vst.msk [vmem:[%s231 + $0x54] sm:$0xf] %vm437, %v3248
      %3281 = vst.msk [vmem:[%s231 + $0x58] sm:$0xf] %vm437, %v3249
      %3282 = vst.msk [vmem:[%s231 + $0x5c] sm:$0xf] %vm437, %v3250
      %3283 = vst.msk [vmem:[%s231 + $0x60] sm:$0xf] %vm437, %v3251
      %3284 = vst.msk [vmem:[%s231 + $0x64] sm:$0xf] %vm437, %v3252
      %3285 = vst.msk [vmem:[%s231 + $0x68] sm:$0xf] %vm437, %v3253
      %3286 = vst.msk [vmem:[%s231 + $0x6c] sm:$0xf] %vm437, %v3254
      %3287 = vst.msk [vmem:[%s231 + $0x70] sm:$0xf] %vm437, %v3255
      %3288 = vst.msk [vmem:[%s231 + $0x74] sm:$0xf] %vm437, %v3256
      %3289 = vst.msk [vmem:[%s231 + $0x78] sm:$0xf] %vm437, %v3257
      %3290 = vst.msk [vmem:[%s231 + $0x7c] sm:$0xf] %vm437, %v3258
      %vm3291 = vcmask 1040384
      %v3292 = vsel %vm3291, %v3124, %v3226
      %vm3293 = vcmask 1041408
      %v3294 = vsel %vm3293, %v3292, 0.0
      %3295 = vst.msk [vmem:[%s235] sm:$0xff] %vm2629, %v3294
      %p3296 = scmp.lt.s32.totalorder %s17, 1
      %s3297 = scalar_select %p3296, %s17, 1
      %s3298 = smul.addr %s3297, 32
      %s3299 = smul.addr %s3298, 4
      %s3300 = scalar_lea.vmem %s4, %s3299
      %p3301 = scmp.lt.s32.totalorder %s17, 1
      %s3302 = scalar_select %p3301, %s17, 1
      %s3303 = smul.addr %s3302, 8
      %s3304 = scalar_lea.vmem %s5, %s3303
      // Predicated region
      $region37: #{conv_block_forward.4} parent=35 // pred_check
        %p3305 = pneg %p124
      $region38: #{conv_block_forward.4} parent=35 // pred_check_branch
        %3307 = sbr.rel (%p3305) target = $region40
      $region39: #{conv_block_forward.4} parent=35 // pred_region
        _
      $region40: #{conv_block_forward.4} parent=35 // pred_fallthru
        _
      // Predicated region
      $region41: #{conv_block_forward.4} parent=35 // pred_check
        %p3308 = pneg %p150
      $region42: #{conv_block_forward.4} parent=35 // pred_check_branch
        %3310 = sbr.rel (%p3308) target = $region44
      $region43: #{conv_block_forward.4} parent=35 // pred_region
        _
      $region44: #{conv_block_forward.4} parent=35 // pred_fallthru
        _
    $region36: #{conv_block_forward.4} parent=5 // pred_fallthru
      _
    %p3311 = scmp.le.s32.totalorder 2, %s12
    // Predicated region
    $region45: #{conv_block_forward.4} parent=5 // pred_check
      %p3312 = pneg %p3311
    $region46: #{conv_block_forward.4} parent=5 // pred_check_branch
      %3314 = sbr.rel (%p3312) target = $region48
    $region47: #{conv_block_forward.4} parent=5 // pred_region
      %s3315 = ssub.s32 %s12, 2
      // Predicated region
      $region49: #{conv_block_forward.4} parent=47 // pred_check
        %p3316 = pneg %p130
      $region50: #{conv_block_forward.4} parent=47 // pred_check_branch
        %3318 = sbr.rel (%p3316) target = $region52
      $region51: #{conv_block_forward.4} parent=47 // pred_region
        %p3319 = scmp.lt.s32.totalorder %s18, 1
        %s3320 = scalar_select %p3319, %s18, 1
        %s3321 = smul.addr %s3320, 32
        %s3322 = smul.addr %s3321, 4
        %s3323 = scalar_lea.vmem %s4, %s3322
      $region52: #{conv_block_forward.4} parent=47 // pred_fallthru
        _
      // Predicated region
      $region53: #{conv_block_forward.4} parent=47 // pred_check
        %p3324 = pneg %p156
      $region54: #{conv_block_forward.4} parent=47 // pred_check_branch
        %3326 = sbr.rel (%p3324) target = $region56
      $region55: #{conv_block_forward.4} parent=47 // pred_region
        %p3327 = scmp.lt.s32.totalorder %s18, 1
        %s3328 = scalar_select %p3327, %s18, 1
        %s3329 = smul.addr %s3328, 8
        %s3330 = scalar_lea.vmem %s5, %s3329
      $region56: #{conv_block_forward.4} parent=47 // pred_fallthru
        _
    $region48: #{conv_block_forward.4} parent=5 // pred_fallthru
      _
  $region6: #{conv_block_forward.4} parent=0 // loop_footer
    %s16 = sadd.s32 1, %s12
  $region7: #{conv_block_forward.4} parent=0 // loop_footer_branch
    %11 = sbr.rel target = $region3
  $region8: #{conv_block_forward.4} parent=0 // loop_exit
    _

// kernel: conv_block_forward.3
$region0: #{conv_block_forward.3}
  #allocation0 [shape = 'u32[]', space=smem, size = 0x4, offset = 0x4, fixed_abs, tag = 'smem constant byte address 0x4 - core index']
  #allocation1 [shape = 'u32[72,128]{1,0:T(1,128)}', space=vmem, size = 0x9000, scoped, tag = 'internal scratch']
  #allocation2 [shape = 'bf16[18,18,4]{2,1,0:T(8,128)(2,1)}', space=vmem, size = 0x1b000, scoped, tag = 'scratch operand']
  %s0 = inlined_call_operand.vmem [shape: bf16[2,16,16,4], index: 0, kind: input, shape index: {}]
  %s1 = inlined_call_operand.vmem [shape: f32[1,4], index: 1, kind: input, shape index: {}]
  %s2 = inlined_call_operand.vmem [shape: f32[1,4], index: 2, kind: input, shape index: {}]
  %s3 = inlined_call_operand.vmem [shape: bf16[36,8], index: 3, kind: input, shape index: {}]
  %s4 = inlined_call_operand.vmem [shape: bf16[2,256,8], index: 4, kind: output, shape index: {0}]
  %s5 = inlined_call_operand.vmem [shape: f32[2,8,8], index: 5, kind: output, shape index: {1}]
  %6 = xla_tuple %s4, %s5
  %s7 = sld [smem:[#allocation0]]
  $region57: #{conv_block_forward.3} parent=0
    _
  %s9 = ssub.s32 1, %s7
  %s10 = scalar_select 0, %s9, %s7
  loop: start=0, step=1, limit=4
  $region2: #{conv_block_forward.3} parent=0 // loop_pre_header
    _
  $region3: #{conv_block_forward.3} parent=0 // loop_header
    %s12 = sphi 0, %s16
    %p13 = scmp.ge.s32.totalorder %s12, 4
    %s22 = sphi 0, %s24
    %s25 = sphi 0, %s22
    %s26 = sphi 0, %s25
    %s42 = sphi 0, %s26
    %s46 = sphi 0, %s46
    %s48 = sphi 0, %s46
    %s49 = sphi 0, %s48
    %s63 = sphi 0, %s49
    %s67 = sphi 0, %s67
    %s69 = sphi 0, %s67
    %s70 = sphi 0, %s69
    %s84 = sphi 0, %s70
    %s88 = sphi 0, %s88
    %s90 = sphi 0, %s88
    %s91 = sphi 0, %s90
    %s105 = sphi 0, %s91
    %s111 = sphi 0, %s113
    %s114 = sphi 0, %s111
    %s115 = sphi 0, %s114
    %s131 = sphi 0, %s115
    %s137 = sphi 0, %s139
    %s140 = sphi 0, %s137
    %s141 = sphi 0, %s140
    %s157 = sphi 0, %s141
  $region4: #{conv_block_forward.3} parent=0 // loop_header_branch
    %15 = sbr.rel (%p13) target = $region8
  $region5: #{conv_block_forward.3} parent=0 // loop_body
    %s17 = ssub.s32 %s12, 1
    %s18 = ssub.s32 %s12, 2
    %s19 = sadd.s32 %s12, 1
    %s20 = ssub.s32 %s12, %s19
    %p21 = scmp.eq.s32.totalorder %s20, 0
    %s23 = sadd.s32 %s22, 1
    %s24 = scalar_select %p21, %s22, %s23
    %p27 = pneg %p21
    %p28 = scmp.eq.s32.totalorder %s12, 1
    %p29 = por %p27, %p28
    %p30 = scmp.ne.s32.totalorder %s22, %s25
    %p31 = scmp.eq.s32.totalorder %s12, 0
    %p32 = por %p30, %p31
    %p33 = scmp.ne.s32.totalorder %s22, %s25
    %p34 = scmp.eq.s32.totalorder %s17, 1
    %p35 = por %p33, %p34
    %p36 = scmp.ne.s32.totalorder %s25, %s26
    %p37 = scmp.eq.s32.totalorder %s17, 0
    %p38 = por %p36, %p37
    %p39 = scmp.ne.s32.totalorder %s25, %s26
    %p40 = scmp.eq.s32.totalorder %s18, 1
    %p41 = por %p39, %p40
    %p43 = scmp.ne.s32.totalorder %s26, %s42
    %p44 = scmp.eq.s32.totalorder %s18, 0
    %p45 = por %p43, %p44
    %s47 = sadd.s32 %s46, 1
    %p50 = scmp.eq.s32.totalorder %s12, 1
    %p51 = scmp.ne.s32.totalorder %s46, %s48
    %p52 = scmp.eq.s32.totalorder %s12, 0
    %p53 = por %p51, %p52
    %p54 = scmp.ne.s32.totalorder %s46, %s48
    %p55 = scmp.eq.s32.totalorder %s17, 1
    %p56 = por %p54, %p55
    %p57 = scmp.ne.s32.totalorder %s48, %s49
    %p58 = scmp.eq.s32.totalorder %s17, 0
    %p59 = por %p57, %p58
    %p60 = scmp.ne.s32.totalorder %s48, %s49
    %p61 = scmp.eq.s32.totalorder %s18, 1
    %p62 = por %p60, %p61
    %p64 = scmp.ne.s32.totalorder %s49, %s63
    %p65 = scmp.eq.s32.totalorder %s18, 0
    %p66 = por %p64, %p65
    %s68 = sadd.s32 %s67, 1
    %p71 = scmp.eq.s32.totalorder %s12, 1
    %p72 = scmp.ne.s32.totalorder %s67, %s69
    %p73 = scmp.eq.s32.totalorder %s12, 0
    %p74 = por %p72, %p73
    %p75 = scmp.ne.s32.totalorder %s67, %s69
    %p76 = scmp.eq.s32.totalorder %s17, 1
    %p77 = por %p75, %p76
    %p78 = scmp.ne.s32.totalorder %s69, %s70
    %p79 = scmp.eq.s32.totalorder %s17, 0
    %p80 = por %p78, %p79
    %p81 = scmp.ne.s32.totalorder %s69, %s70
    %p82 = scmp.eq.s32.totalorder %s18, 1
    %p83 = por %p81, %p82
    %p85 = scmp.ne.s32.totalorder %s70, %s84
    %p86 = scmp.eq.s32.totalorder %s18, 0
    %p87 = por %p85, %p86
    %s89 = sadd.s32 %s88, 1
    %p92 = scmp.eq.s32.totalorder %s12, 1
    %p93 = scmp.ne.s32.totalorder %s88, %s90
    %p94 = scmp.eq.s32.totalorder %s12, 0
    %p95 = por %p93, %p94
    %p96 = scmp.ne.s32.totalorder %s88, %s90
    %p97 = scmp.eq.s32.totalorder %s17, 1
    %p98 = por %p96, %p97
    %p99 = scmp.ne.s32.totalorder %s90, %s91
    %p100 = scmp.eq.s32.totalorder %s17, 0
    %p101 = por %p99, %p100
    %p102 = scmp.ne.s32.totalorder %s90, %s91
    %p103 = scmp.eq.s32.totalorder %s18, 1
    %p104 = por %p102, %p103
    %p106 = scmp.ne.s32.totalorder %s91, %s105
    %p107 = scmp.eq.s32.totalorder %s18, 0
    %p108 = por %p106, %p107
    %s109 = ssub.s32 %s12, %s19
    %p110 = scmp.eq.s32.totalorder %s109, 0
    %s112 = sadd.s32 %s111, 1
    %s113 = scalar_select %p110, %s111, %s112
    %p116 = pneg %p110
    %p117 = scmp.eq.s32.totalorder %s12, 1
    %p118 = por %p116, %p117
    %p119 = scmp.ne.s32.totalorder %s111, %s114
    %p120 = scmp.eq.s32.totalorder %s12, 0
    %p121 = por %p119, %p120
    %p122 = scmp.ne.s32.totalorder %s111, %s114
    %p123 = scmp.eq.s32.totalorder %s17, 1
    %p124 = por %p122, %p123
    %p125 = scmp.ne.s32.totalorder %s114, %s115
    %p126 = scmp.eq.s32.totalorder %s17, 0
    %p127 = por %p125, %p126
    %p128 = scmp.ne.s32.totalorder %s114, %s115
    %p129 = scmp.eq.s32.totalorder %s18, 1
    %p130 = por %p128, %p129
    %p132 = scmp.ne.s32.totalorder %s115, %s131
    %p133 = scmp.eq.s32.totalorder %s18, 0
    %p134 = por %p132, %p133
    %s135 = ssub.s32 %s12, %s19
    %p136 = scmp.eq.s32.totalorder %s135, 0
    %s138 = sadd.s32 %s137, 1
    %s139 = scalar_select %p136, %s137, %s138
    %p142 = pneg %p136
    %p143 = scmp.eq.s32.totalorder %s12, 1
    %p144 = por %p142, %p143
    %p145 = scmp.ne.s32.totalorder %s137, %s140
    %p146 = scmp.eq.s32.totalorder %s12, 0
    %p147 = por %p145, %p146
    %p148 = scmp.ne.s32.totalorder %s137, %s140
    %p149 = scmp.eq.s32.totalorder %s17, 1
    %p150 = por %p148, %p149
    %p151 = scmp.ne.s32.totalorder %s140, %s141
    %p152 = scmp.eq.s32.totalorder %s17, 0
    %p153 = por %p151, %p152
    %p154 = scmp.ne.s32.totalorder %s140, %s141
    %p155 = scmp.eq.s32.totalorder %s18, 1
    %p156 = por %p154, %p155
    %p158 = scmp.ne.s32.totalorder %s141, %s157
    %p159 = scmp.eq.s32.totalorder %s18, 0
    %p160 = por %p158, %p159
    %p161 = scmp.le.s32.totalorder 1, %s12
    %p162 = scmp.lt.s32.totalorder %s12, 3
    %p163 = pnand %p161, %p162
    %p164 = pneg %p163
    // Predicated region
    $region9: #{conv_block_forward.3} parent=5 // pred_check
      _
    $region10: #{conv_block_forward.3} parent=5 // pred_check_branch
      %166 = sbr.rel (%p163) target = $region12
    $region11: #{conv_block_forward.3} parent=5 // pred_region
      %s167 = ssub.s32 %s12, 1
      // Predicated region
      $region13: #{conv_block_forward.3} parent=11 // pred_check
        %p168 = pneg %p59
      $region14: #{conv_block_forward.3} parent=11 // pred_check_branch
        %170 = sbr.rel (%p168) target = $region16
      $region15: #{conv_block_forward.3} parent=11 // pred_region
        _
      $region16: #{conv_block_forward.3} parent=11 // pred_fallthru
        _
      // Predicated region
      $region17: #{conv_block_forward.3} parent=11 // pred_check
        %p171 = pneg %p80
      $region18: #{conv_block_forward.3} parent=11 // pred_check_branch
        %173 = sbr.rel (%p171) target = $region20
      $region19: #{conv_block_forward.3} parent=11 // pred_region
        _
      $region20: #{conv_block_forward.3} parent=11 // pred_fallthru
        _
      // Predicated region
      $region21: #{conv_block_forward.3} parent=11 // pred_check
        %p174 = pneg %p101
      $region22: #{conv_block_forward.3} parent=11 // pred_check_branch
        %176 = sbr.rel (%p174) target = $region24
      $region23: #{conv_block_forward.3} parent=11 // pred_region
        _
      $region24: #{conv_block_forward.3} parent=11 // pred_fallthru
        _
    $region12: #{conv_block_forward.3} parent=5 // pred_fallthru
      _
    %p177 = scmp.lt.s32.totalorder %s12, 2
    // Predicated region
    $region25: #{conv_block_forward.3} parent=5 // pred_check
      %p178 = pneg %p177
    $region26: #{conv_block_forward.3} parent=5 // pred_check_branch
      %180 = sbr.rel (%p178) target = $region28
    $region27: #{conv_block_forward.3} parent=5 // pred_region
      // Predicated region
      $region29: #{conv_block_forward.3} parent=27 // pred_check
        %p181 = pneg %p32
      $region30: #{conv_block_forward.3} parent=27 // pred_check_branch
        %183 = sbr.rel (%p181) target = $region32
      $region31: #{conv_block_forward.3} parent=27 // pred_region
        %p184 = scmp.lt.s32.totalorder %s12, 1
        %s185 = scalar_select %p184, %s12, 1
        %s186 = smul.addr %s185, 32
        %s187 = smul.addr %s186, 4
        %s188 = scalar_lea.vmem %s0, %s187
      $region32: #{conv_block_forward.3} parent=27 // pred_fallthru
        _
    $region28: #{conv_block_forward.3} parent=5 // pred_fallthru
      _
    %p189 = scmp.le.s32.totalorder 1, %s12
    %p190 = scmp.lt.s32.totalorder %s12, 3
    %p191 = pnand %p189, %p190
    %p192 = pneg %p191
    // Predicated region
    $region33: #{conv_block_forward.3} parent=5 // pred_check
      _
    $region34: #{conv_block_forward.3} parent=5 // pred_check_branch
      %194 = sbr.rel (%p191) target = $region36
    $region35: #{conv_block_forward.3} parent=5 // pred_region
      %s195 = ssub.s32 %s12, 1
      %p196 = scmp.lt.s32.totalorder %s17, 1
      %s197 = scalar_select %p196, %s17, 1
      %s198 = smul.addr %s197, 32
      %s199 = smul.addr %s198, 4
      %s200 = scalar_lea.vmem %s0, %s199
      %p201 = pneg %p38
      %p202 = pneg %p35
      %p203 = pneg %p59
      %p204 = pneg %p56
      %p205 = pneg %p80
      %p206 = pneg %p77
      %p207 = pneg %p101
      %p208 = pneg %p98
      %p209 = pneg %p127
      %p210 = pneg %p124
      %p211 = scmp.lt.s32.totalorder %s17, 1
      %s212 = scalar_select %p211, %s17, 1
      %s213 = smul.addr %s212, 32
      %s214 = smul.addr %s213, 4
      %s215 = scalar_lea.vmem %s4, %s214
      %p216 = pneg %p153
      %p217 = pneg %p150
      %p218 = scmp.lt.s32.totalorder %s17, 1
      %s219 = scalar_select %p218, %s17, 1
      %s220 = smul.addr %s219, 8
      %s221 = scalar_lea.vmem %s5, %s220
      %p222 = scmp.lt.s32.totalorder %s17, 1
      %s223 = scalar_select %p222, %s17, 1
      %s224 = smul.addr %s223, 32
      %s225 = smul.addr %s224, 4
      %s226 = scalar_lea.vmem %s0, %s225
      %p227 = scmp.lt.s32.totalorder %s17, 1
      %s228 = scalar_select %p227, %s17, 1
      %s229 = smul.addr %s228, 32
      %s230 = smul.addr %s229, 4
      %s231 = scalar_lea.vmem %s4, %s230
      %p232 = scmp.lt.s32.totalorder %s17, 1
      %s233 = scalar_select %p232, %s17, 1
      %s234 = smul.addr %s233, 8
      %s235 = scalar_lea.vmem %s5, %s234
      %v237 = vld [vmem:[%s226] sm:$0xf]
      %v238 = vld [vmem:[%s226 + $0x4] sm:$0xf]
      %v239 = vld [vmem:[%s226 + $0x8] sm:$0xf]
      %v240 = vld [vmem:[%s226 + $0xc] sm:$0xf]
      %v241 = vld [vmem:[%s226 + $0x10] sm:$0xf]
      %v242 = vld [vmem:[%s226 + $0x14] sm:$0xf]
      %v243 = vld [vmem:[%s226 + $0x18] sm:$0xf]
      %v244 = vld [vmem:[%s226 + $0x1c] sm:$0xf]
      %v245 = vld [vmem:[%s226 + $0x20] sm:$0xf]
      %v246 = vld [vmem:[%s226 + $0x24] sm:$0xf]
      %v247 = vld [vmem:[%s226 + $0x28] sm:$0xf]
      %v248 = vld [vmem:[%s226 + $0x2c] sm:$0xf]
      %v249 = vld [vmem:[%s226 + $0x30] sm:$0xf]
      %v250 = vld [vmem:[%s226 + $0x34] sm:$0xf]
      %v251 = vld [vmem:[%s226 + $0x38] sm:$0xf]
      %v252 = vld [vmem:[%s226 + $0x3c] sm:$0xf]
      %v253 = vld [vmem:[%s226 + $0x40] sm:$0xf]
      %v254 = vld [vmem:[%s226 + $0x44] sm:$0xf]
      %v255 = vld [vmem:[%s226 + $0x48] sm:$0xf]
      %v256 = vld [vmem:[%s226 + $0x4c] sm:$0xf]
      %v257 = vld [vmem:[%s226 + $0x50] sm:$0xf]
      %v258 = vld [vmem:[%s226 + $0x54] sm:$0xf]
      %v259 = vld [vmem:[%s226 + $0x58] sm:$0xf]
      %v260 = vld [vmem:[%s226 + $0x5c] sm:$0xf]
      %v261 = vld [vmem:[%s226 + $0x60] sm:$0xf]
      %v262 = vld [vmem:[%s226 + $0x64] sm:$0xf]
      %v263 = vld [vmem:[%s226 + $0x68] sm:$0xf]
      %v264 = vld [vmem:[%s226 + $0x6c] sm:$0xf]
      %v265 = vld [vmem:[%s226 + $0x70] sm:$0xf]
      %v266 = vld [vmem:[%s226 + $0x74] sm:$0xf]
      %v267 = vld [vmem:[%s226 + $0x78] sm:$0xf]
      %v268 = vld [vmem:[%s226 + $0x7c] sm:$0xf]
      %vm269 = vcmask 27648
      %270 = vst.msk [vmem:[#allocation2] sm:$0xf] %vm269, 0
      %271 = vst.msk [vmem:[#allocation2 + $0x4] sm:$0xf] %vm269, 0
      %vm272 = vcmask 24576
      %273 = vst.msk [vmem:[#allocation2 + $0x8] sm:$0x1] %vm272, 0
      %s274 = scalar_lea.vmem [#allocation2], 204
      %275 = vst.msk [vmem:[%s274] sm:$0xf] %vm269, 0
      %276 = vst.msk [vmem:[%s274 + $0x4] sm:$0xf] %vm269, 0
      %277 = vst.msk [vmem:[%s274 + $0x8] sm:$0x1] %vm272, 0
      %v310 = vunpack.c.l.b16 %v237
      %v311 = vunpack.c.l.b16 %v238
      %v312 = vunpack.c.l.b16 %v239
      %v313 = vunpack.c.l.b16 %v240
      %v314 = vunpack.c.l.b16 %v241
      %v315 = vunpack.c.l.b16 %v242
      %v316 = vunpack.c.l.b16 %v243
      %v317 = vunpack.c.l.b16 %v244
      %v318 = vunpack.c.l.b16 %v245
      %v319 = vunpack.c.l.b16 %v246
      %v320 = vunpack.c.l.b16 %v247
      %v321 = vunpack.c.l.b16 %v248
      %v322 = vunpack.c.l.b16 %v249
      %v323 = vunpack.c.l.b16 %v250
      %v324 = vunpack.c.l.b16 %v251
      %v325 = vunpack.c.l.b16 %v252
      %v326 = vunpack.c.l.b16 %v253
      %v327 = vunpack.c.l.b16 %v254
      %v328 = vunpack.c.l.b16 %v255
      %v329 = vunpack.c.l.b16 %v256
      %v330 = vunpack.c.l.b16 %v257
      %v331 = vunpack.c.l.b16 %v258
      %v332 = vunpack.c.l.b16 %v259
      %v333 = vunpack.c.l.b16 %v260
      %v334 = vunpack.c.l.b16 %v261
      %v335 = vunpack.c.l.b16 %v262
      %v336 = vunpack.c.l.b16 %v263
      %v337 = vunpack.c.l.b16 %v264
      %v338 = vunpack.c.l.b16 %v265
      %v339 = vunpack.c.l.b16 %v266
      %v340 = vunpack.c.l.b16 %v267
      %v341 = vunpack.c.l.b16 %v268
      %v342 = vpack.c.b16 %v311, %v310
      %v343 = vpack.c.b16 %v313, %v312
      %v344 = vpack.c.b16 %v315, %v314
      %v345 = vpack.c.b16 %v317, %v316
      %v346 = vpack.c.b16 %v319, %v318
      %v347 = vpack.c.b16 %v321, %v320
      %v348 = vpack.c.b16 %v323, %v322
      %v349 = vpack.c.b16 %v325, %v324
      %v350 = vpack.c.b16 %v327, %v326
      %v351 = vpack.c.b16 %v329, %v328
      %v352 = vpack.c.b16 %v331, %v330
      %v353 = vpack.c.b16 %v333, %v332
      %v354 = vpack.c.b16 %v335, %v334
      %v355 = vpack.c.b16 %v337, %v336
      %v356 = vpack.c.b16 %v339, %v338
      %v357 = vpack.c.b16 %v341, %v340
      %v359 = vshrl.u32 %v342, 16
      %v361 = vrot.slane %v359, 7
      %v362 = vshll.u32 %v342, 16
      %v364 = vor.u32 %v361, %v362
      %v366 = vshrl.u32 %v343, 16
      %v368 = vrot.slane %v366, 7
      %v369 = vshll.u32 %v343, 16
      %v371 = vor.u32 %v368, %v369
      %v373 = vshrl.u32 %v344, 16
      %v375 = vrot.slane %v373, 7
      %v376 = vshll.u32 %v344, 16
      %v378 = vor.u32 %v375, %v376
      %v380 = vshrl.u32 %v345, 16
      %v382 = vrot.slane %v380, 7
      %v383 = vshll.u32 %v345, 16
      %v385 = vor.u32 %v382, %v383
      %v387 = vshrl.u32 %v346, 16
      %v389 = vrot.slane %v387, 7
      %v390 = vshll.u32 %v346, 16
      %v392 = vor.u32 %v389, %v390
      %v394 = vshrl.u32 %v347, 16
      %v396 = vrot.slane %v394, 7
      %v397 = vshll.u32 %v347, 16
      %v399 = vor.u32 %v396, %v397
      %v401 = vshrl.u32 %v348, 16
      %v403 = vrot.slane %v401, 7
      %v404 = vshll.u32 %v348, 16
      %v406 = vor.u32 %v403, %v404
      %v408 = vshrl.u32 %v349, 16
      %v410 = vrot.slane %v408, 7
      %v411 = vshll.u32 %v349, 16
      %v413 = vor.u32 %v410, %v411
      %v415 = vshrl.u32 %v350, 16
      %v417 = vrot.slane %v415, 7
      %v418 = vshll.u32 %v350, 16
      %v420 = vor.u32 %v417, %v418
      %v422 = vshrl.u32 %v351, 16
      %v424 = vrot.slane %v422, 7
      %v425 = vshll.u32 %v351, 16
      %v427 = vor.u32 %v424, %v425
      %v429 = vshrl.u32 %v352, 16
      %v431 = vrot.slane %v429, 7
      %v432 = vshll.u32 %v352, 16
      %v434 = vor.u32 %v431, %v432
      %v436 = vshrl.u32 %v353, 16
      %v438 = vrot.slane %v436, 7
      %v439 = vshll.u32 %v353, 16
      %v441 = vor.u32 %v438, %v439
      %v443 = vshrl.u32 %v354, 16
      %v445 = vrot.slane %v443, 7
      %v446 = vshll.u32 %v354, 16
      %v448 = vor.u32 %v445, %v446
      %v450 = vshrl.u32 %v355, 16
      %v452 = vrot.slane %v450, 7
      %v453 = vshll.u32 %v355, 16
      %v455 = vor.u32 %v452, %v453
      %v457 = vshrl.u32 %v356, 16
      %v459 = vrot.slane %v457, 7
      %v460 = vshll.u32 %v356, 16
      %v462 = vor.u32 %v459, %v460
      %v464 = vshrl.u32 %v357, 16
      %v466 = vrot.slane %v464, 7
      %v467 = vshll.u32 %v357, 16
      %v469 = vor.u32 %v466, %v467
      %vm502 = vcmask 1040384
      %vm503 = vsmask.f32 256
      %vm504 = vmand %vm502, %vm503
      %v505 = vsel %vm504, 0, %v364
      %v506 = vsel %vm504, 0, %v371
      %v507 = vsel %vm504, 0, %v378
      %v508 = vsel %vm504, 0, %v385
      %v509 = vsel %vm504, 0, %v392
      %v510 = vsel %vm504, 0, %v399
      %v511 = vsel %vm504, 0, %v406
      %v512 = vsel %vm504, 0, %v413
      %v513 = vsel %vm504, 0, %v420
      %v514 = vsel %vm504, 0, %v427
      %v515 = vsel %vm504, 0, %v434
      %v516 = vsel %vm504, 0, %v441
      %v517 = vsel %vm504, 0, %v448
      %v518 = vsel %vm504, 0, %v455
      %v519 = vsel %vm504, 0, %v462
      %v520 = vsel %vm504, 0, %v469
      %v521 = vsel %vm504, %v361, 0
      %v522 = vsel %vm504, %v368, 0
      %v523 = vsel %vm504, %v375, 0
      %v524 = vsel %vm504, %v382, 0
      %v525 = vsel %vm504, %v389, 0
      %v526 = vsel %vm504, %v396, 0
      %v527 = vsel %vm504, %v403, 0
      %v528 = vsel %vm504, %v410, 0
      %v529 = vsel %vm504, %v417, 0
      %v530 = vsel %vm504, %v424, 0
      %v531 = vsel %vm504, %v431, 0
      %v532 = vsel %vm504, %v438, 0
      %v533 = vsel %vm504, %v445, 0
      %v534 = vsel %vm504, %v452, 0
      %v535 = vsel %vm504, %v459, 0
      %v536 = vsel %vm504, %v466, 0
      %v569 = vunpack.c.l.b16 %v505
      %v570 = vunpack.c.h.b16 %v505
      %v571 = vunpack.c.l.b16 %v521
      %v572 = vunpack.c.l.b16 %v506
      %v573 = vunpack.c.h.b16 %v506
      %v574 = vunpack.c.l.b16 %v522
      %v575 = vunpack.c.l.b16 %v507
      %v576 = vunpack.c.h.b16 %v507
      %v577 = vunpack.c.l.b16 %v523
      %v578 = vunpack.c.l.b16 %v508
      %v579 = vunpack.c.h.b16 %v508
      %v580 = vunpack.c.l.b16 %v524
      %v581 = vunpack.c.l.b16 %v509
      %v582 = vunpack.c.h.b16 %v509
      %v583 = vunpack.c.l.b16 %v525
      %v584 = vunpack.c.l.b16 %v510
      %v585 = vunpack.c.h.b16 %v510
      %v586 = vunpack.c.l.b16 %v526
      %v587 = vunpack.c.l.b16 %v511
      %v588 = vunpack.c.h.b16 %v511
      %v589 = vunpack.c.l.b16 %v527
      %v590 = vunpack.c.l.b16 %v512
      %v591 = vunpack.c.h.b16 %v512
      %v592 = vunpack.c.l.b16 %v528
      %v593 = vunpack.c.l.b16 %v513
      %v594 = vunpack.c.h.b16 %v513
      %v595 = vunpack.c.l.b16 %v529
      %v596 = vunpack.c.l.b16 %v514
      %v597 = vunpack.c.h.b16 %v514
      %v598 = vunpack.c.l.b16 %v530
      %v599 = vunpack.c.l.b16 %v515
      %v600 = vunpack.c.h.b16 %v515
      %v601 = vunpack.c.l.b16 %v531
      %v602 = vunpack.c.l.b16 %v516
      %v603 = vunpack.c.h.b16 %v516
      %v604 = vunpack.c.l.b16 %v532
      %v605 = vunpack.c.l.b16 %v517
      %v606 = vunpack.c.h.b16 %v517
      %v607 = vunpack.c.l.b16 %v533
      %v608 = vunpack.c.l.b16 %v518
      %v609 = vunpack.c.h.b16 %v518
      %v610 = vunpack.c.l.b16 %v534
      %v611 = vunpack.c.l.b16 %v519
      %v612 = vunpack.c.h.b16 %v519
      %v613 = vunpack.c.l.b16 %v535
      %v614 = vunpack.c.l.b16 %v520
      %v615 = vunpack.c.h.b16 %v520
      %v616 = vunpack.c.l.b16 %v536
      %v617 = vpack.c.b16 %v569, %v569
      %v618 = vpack.c.b16 %v570, %v570
      %v619 = vpack.c.b16 %v571, %v571
      %v620 = vpack.c.b16 %v572, %v572
      %v621 = vpack.c.b16 %v573, %v573
      %v622 = vpack.c.b16 %v574, %v574
      %v623 = vpack.c.b16 %v575, %v575
      %v624 = vpack.c.b16 %v576, %v576
      %v625 = vpack.c.b16 %v577, %v577
      %v626 = vpack.c.b16 %v578, %v578
      %v627 = vpack.c.b16 %v579, %v579
      %v628 = vpack.c.b16 %v580, %v580
      %v629 = vpack.c.b16 %v581, %v581
      %v630 = vpack.c.b16 %v582, %v582
      %v631 = vpack.c.b16 %v583, %v583
      %v632 = vpack.c.b16 %v584, %v584
      %v633 = vpack.c.b16 %v585, %v585
      %v634 = vpack.c.b16 %v586, %v586
      %v635 = vpack.c.b16 %v587, %v587
      %v636 = vpack.c.b16 %v588, %v588
      %v637 = vpack.c.b16 %v589, %v589
      %v638 = vpack.c.b16 %v590, %v590
      %v639 = vpack.c.b16 %v591, %v591
      %v640 = vpack.c.b16 %v592, %v592
      %v641 = vpack.c.b16 %v593, %v593
      %v642 = vpack.c.b16 %v594, %v594
      %v643 = vpack.c.b16 %v595, %v595
      %v644 = vpack.c.b16 %v596, %v596
      %v645 = vpack.c.b16 %v597, %v597
      %v646 = vpack.c.b16 %v598, %v598
      %v647 = vpack.c.b16 %v599, %v599
      %v648 = vpack.c.b16 %v600, %v600
      %v649 = vpack.c.b16 %v601, %v601
      %v650 = vpack.c.b16 %v602, %v602
      %v651 = vpack.c.b16 %v603, %v603
      %v652 = vpack.c.b16 %v604, %v604
      %v653 = vpack.c.b16 %v605, %v605
      %v654 = vpack.c.b16 %v606, %v606
      %v655 = vpack.c.b16 %v607, %v607
      %v656 = vpack.c.b16 %v608, %v608
      %v657 = vpack.c.b16 %v609, %v609
      %v658 = vpack.c.b16 %v610, %v610
      %v659 = vpack.c.b16 %v611, %v611
      %v660 = vpack.c.b16 %v612, %v612
      %v661 = vpack.c.b16 %v613, %v613
      %v662 = vpack.c.b16 %v614, %v614
      %v663 = vpack.c.b16 %v615, %v615
      %v664 = vpack.c.b16 %v616, %v616
      %s713 = scalar_lea.vmem [#allocation2], 12
      %714 = vst.msk [vmem:[%s713] sm:$0xf] %vm269, %v617
      %715 = vst.msk [vmem:[%s713 + $0x4] sm:$0xf] %vm269, %v618
      %716 = vst.msk [vmem:[%s713 + $0x8] sm:$0x1] %vm272, %v619
      %717 = vst.msk [vmem:[%s713 + $0xc] sm:$0xf] %vm269, %v620
      %718 = vst.msk [vmem:[%s713 + $0x10] sm:$0xf] %vm269, %v621
      %719 = vst.msk [vmem:[%s713 + $0x14] sm:$0x1] %vm272, %v622
      %720 = vst.msk [vmem:[%s713 + $0x18] sm:$0xf] %vm269, %v623
      %721 = vst.msk [vmem:[%s713 + $0x1c] sm:$0xf] %vm269, %v624
      %722 = vst.msk [vmem:[%s713 + $0x20] sm:$0x1] %vm272, %v625
      %723 = vst.msk [vmem:[%s713 + $0x24] sm:$0xf] %vm269, %v626
      %724 = vst.msk [vmem:[%s713 + $0x28] sm:$0xf] %vm269, %v627
      %725 = vst.msk [vmem:[%s713 + $0x2c] sm:$0x1] %vm272, %v628
      %726 = vst.msk [vmem:[%s713 + $0x30] sm:$0xf] %vm269, %v629
      %727 = vst.msk [vmem:[%s713 + $0x34] sm:$0xf] %vm269, %v630
      %728 = vst.msk [vmem:[%s713 + $0x38] sm:$0x1] %vm272, %v631
      %729 = vst.msk [vmem:[%s713 + $0x3c] sm:$0xf] %vm269, %v632
      %730 = vst.msk [vmem:[%s713 + $0x40] sm:$0xf] %vm269, %v633
      %731 = vst.msk [vmem:[%s713 + $0x44] sm:$0x1] %vm272, %v634
      %732 = vst.msk [vmem:[%s713 + $0x48] sm:$0xf] %vm269, %v635
      %733 = vst.msk [vmem:[%s713 + $0x4c] sm:$0xf] %vm269, %v636
      %734 = vst.msk [vmem:[%s713 + $0x50] sm:$0x1] %vm272, %v637
      %735 = vst.msk [vmem:[%s713 + $0x54] sm:$0xf] %vm269, %v638
      %736 = vst.msk [vmem:[%s713 + $0x58] sm:$0xf] %vm269, %v639
      %737 = vst.msk [vmem:[%s713 + $0x5c] sm:$0x1] %vm272, %v640
      %738 = vst.msk [vmem:[%s713 + $0x60] sm:$0xf] %vm269, %v641
      %739 = vst.msk [vmem:[%s713 + $0x64] sm:$0xf] %vm269, %v642
      %740 = vst.msk [vmem:[%s713 + $0x68] sm:$0x1] %vm272, %v643
      %741 = vst.msk [vmem:[%s713 + $0x6c] sm:$0xf] %vm269, %v644
      %742 = vst.msk [vmem:[%s713 + $0x70] sm:$0xf] %vm269, %v645
      %743 = vst.msk [vmem:[%s713 + $0x74] sm:$0x1] %vm272, %v646
      %744 = vst.msk [vmem:[%s713 + $0x78] sm:$0xf] %vm269, %v647
      %745 = vst.msk [vmem:[%s713 + $0x7c] sm:$0xf] %vm269, %v648
      %746 = vst.msk [vmem:[%s713 + $0x80] sm:$0x1] %vm272, %v649
      %747 = vst.msk [vmem:[%s713 + $0x84] sm:$0xf] %vm269, %v650
      %748 = vst.msk [vmem:[%s713 + $0x88] sm:$0xf] %vm269, %v651
      %749 = vst.msk [vmem:[%s713 + $0x8c] sm:$0x1] %vm272, %v652
      %750 = vst.msk [vmem:[%s713 + $0x90] sm:$0xf] %vm269, %v653
      %751 = vst.msk [vmem:[%s713 + $0x94] sm:$0xf] %vm269, %v654
      %752 = vst.msk [vmem:[%s713 + $0x98] sm:$0x1] %vm272, %v655
      %753 = vst.msk [vmem:[%s713 + $0x9c] sm:$0xf] %vm269, %v656
      %754 = vst.msk [vmem:[%s713 + $0xa0] sm:$0xf] %vm269, %v657
      %755 = vst.msk [vmem:[%s713 + $0xa4] sm:$0x1] %vm272, %v658
      %756 = vst.msk [vmem:[%s713 + $0xa8] sm:$0xf] %vm269, %v659
      %757 = vst.msk [vmem:[%s713 + $0xac] sm:$0xf] %vm269, %v660
      %758 = vst.msk [vmem:[%s713 + $0xb0] sm:$0x1] %vm272, %v661
      %759 = vst.msk [vmem:[%s713 + $0xb4] sm:$0xf] %vm269, %v662
      %760 = vst.msk [vmem:[%s713 + $0xb8] sm:$0xf] %vm269, %v663
      %761 = vst.msk [vmem:[%s713 + $0xbc] sm:$0x1] %vm272, %v664
      %v762 = vld [vmem:[#allocation2] sm:$0xf]
      %v763 = vld [vmem:[#allocation2 + $0x4] sm:$0xf]
      %v764 = vld [vmem:[#allocation2 + $0xc] sm:$0xf]
      %v765 = vld [vmem:[#allocation2 + $0x10] sm:$0xf]
      %v766 = vld [vmem:[#allocation2 + $0x18] sm:$0xf]
      %v767 = vld [vmem:[#allocation2 + $0x1c] sm:$0xf]
      %v768 = vld [vmem:[#allocation2 + $0x24] sm:$0xf]
      %v769 = vld [vmem:[#allocation2 + $0x28] sm:$0xf]
      %v770 = vld [vmem:[#allocation2 + $0x30] sm:$0xf]
      %v771 = vld [vmem:[#allocation2 + $0x34] sm:$0xf]
      %v772 = vld [vmem:[#allocation2 + $0x3c] sm:$0xf]
      %v773 = vld [vmem:[#allocation2 + $0x40] sm:$0xf]
      %v774 = vld [vmem:[#allocation2 + $0x48] sm:$0xf]
      %v775 = vld [vmem:[#allocation2 + $0x4c] sm:$0xf]
      %v776 = vld [vmem:[#allocation2 + $0x54] sm:$0xf]
      %v777 = vld [vmem:[#allocation2 + $0x58] sm:$0xf]
      %v778 = vld [vmem:[#allocation2 + $0x60] sm:$0xf]
      %v779 = vld [vmem:[#allocation2 + $0x64] sm:$0xf]
      %v780 = vld [vmem:[#allocation2 + $0x6c] sm:$0xf]
      %v781 = vld [vmem:[#allocation2 + $0x70] sm:$0xf]
      %v782 = vld [vmem:[#allocation2 + $0x78] sm:$0xf]
      %v783 = vld [vmem:[#allocation2 + $0x7c] sm:$0xf]
      %v784 = vld [vmem:[#allocation2 + $0x84] sm:$0xf]
      %v785 = vld [vmem:[#allocation2 + $0x88] sm:$0xf]
      %v786 = vld [vmem:[#allocation2 + $0x90] sm:$0xf]
      %v787 = vld [vmem:[#allocation2 + $0x94] sm:$0xf]
      %v788 = vld [vmem:[#allocation2 + $0x9c] sm:$0xf]
      %v789 = vld [vmem:[#allocation2 + $0xa0] sm:$0xf]
      %v790 = vld [vmem:[#allocation2 + $0xa8] sm:$0xf]
      %v791 = vld [vmem:[#allocation2 + $0xac] sm:$0xf]
      %v792 = vld [vmem:[#allocation2 + $0xb4] sm:$0xf]
      %v793 = vld [vmem:[#allocation2 + $0xb8] sm:$0xf]
      %v794 = vld [vmem:[#allocation2 + $0x8] sm:$0x1]
      %v795 = vld [vmem:[#allocation2 + $0x14] sm:$0x1]
      %v796 = vld [vmem:[#allocation2 + $0x20] sm:$0x1]
      %v797 = vld [vmem:[#allocation2 + $0x2c] sm:$0x1]
      %v798 = vld [vmem:[#allocation2 + $0x38] sm:$0x1]
      %v799 = vld [vmem:[#allocation2 + $0x44] sm:$0x1]
      %v800 = vld [vmem:[#allocation2 + $0x50] sm:$0x1]
      %v801 = vld [vmem:[#allocation2 + $0x5c] sm:$0x1]
      %v802 = vld [vmem:[#allocation2 + $0x68] sm:$0x1]
      %v803 = vld [vmem:[#allocation2 + $0x74] sm:$0x1]
      %v804 = vld [vmem:[#allocation2 + $0x80] sm:$0x1]
      %v805 = vld [vmem:[#allocation2 + $0x8c] sm:$0x1]
      %v806 = vld [vmem:[#allocation2 + $0x98] sm:$0x1]
      %v807 = vld [vmem:[#allocation2 + $0xa4] sm:$0x1]
      %v808 = vld [vmem:[#allocation2 + $0xb0] sm:$0x1]
      %v809 = vld [vmem:[#allocation2 + $0xbc] sm:$0x1]
      %v810 = vld [vmem:[#allocation2] sm:$0xe]
      %v811 = vld [vmem:[#allocation2 + $0xc] sm:$0xe]
      %v812 = vld [vmem:[#allocation2 + $0x18] sm:$0xe]
      %v813 = vld [vmem:[#allocation2 + $0x24] sm:$0xe]
      %v814 = vld [vmem:[#allocation2 + $0x30] sm:$0xe]
      %v815 = vld [vmem:[#allocation2 + $0x3c] sm:$0xe]
      %v816 = vld [vmem:[#allocation2 + $0x48] sm:$0xe]
      %v817 = vld [vmem:[#allocation2 + $0x54] sm:$0xe]
      %v818 = vld [vmem:[#allocation2 + $0x60] sm:$0xe]
      %v819 = vld [vmem:[#allocation2 + $0x6c] sm:$0xe]
      %v820 = vld [vmem:[#allocation2 + $0x78] sm:$0xe]
      %v821 = vld [vmem:[#allocation2 + $0x84] sm:$0xe]
      %v822 = vld [vmem:[#allocation2 + $0x90] sm:$0xe]
      %v823 = vld [vmem:[#allocation2 + $0x9c] sm:$0xe]
      %v824 = vld [vmem:[#allocation2 + $0xa8] sm:$0xe]
      %v825 = vld [vmem:[#allocation2 + $0xb4] sm:$0xe]
      %v826 = vld [vmem:[%s713] sm:$0xf]
      %v827 = vld [vmem:[%s713 + $0x4] sm:$0xf]
      %v828 = vld [vmem:[%s713 + $0xc] sm:$0xf]
      %v829 = vld [vmem:[%s713 + $0x10] sm:$0xf]
      %v830 = vld [vmem:[%s713 + $0x18] sm:$0xf]
      %v831 = vld [vmem:[%s713 + $0x1c] sm:$0xf]
      %v832 = vld [vmem:[%s713 + $0x24] sm:$0xf]
      %v833 = vld [vmem:[%s713 + $0x28] sm:$0xf]
      %v834 = vld [vmem:[%s713 + $0x30] sm:$0xf]
      %v835 = vld [vmem:[%s713 + $0x34] sm:$0xf]
      %v836 = vld [vmem:[%s713 + $0x3c] sm:$0xf]
      %v837 = vld [vmem:[%s713 + $0x40] sm:$0xf]
      %v838 = vld [vmem:[%s713 + $0x48] sm:$0xf]
      %v839 = vld [vmem:[%s713 + $0x4c] sm:$0xf]
      %v840 = vld [vmem:[%s713 + $0x54] sm:$0xf]
      %v841 = vld [vmem:[%s713 + $0x58] sm:$0xf]
      %v842 = vld [vmem:[%s713 + $0x60] sm:$0xf]
      %v843 = vld [vmem:[%s713 + $0x64] sm:$0xf]
      %v844 = vld [vmem:[%s713 + $0x6c] sm:$0xf]
      %v845 = vld [vmem:[%s713 + $0x70] sm:$0xf]
      %v846 = vld [vmem:[%s713 + $0x78] sm:$0xf]
      %v847 = vld [vmem:[%s713 + $0x7c] sm:$0xf]
      %v848 = vld [vmem:[%s713 + $0x84] sm:$0xf]
      %v849 = vld [vmem:[%s713 + $0x88] sm:$0xf]
      %v850 = vld [vmem:[%s713 + $0x90] sm:$0xf]
      %v851 = vld [vmem:[%s713 + $0x94] sm:$0xf]
      %v852 = vld [vmem:[%s713 + $0x9c] sm:$0xf]
      %v853 = vld [vmem:[%s713 + $0xa0] sm:$0xf]
      %v854 = vld [vmem:[%s713 + $0xa8] sm:$0xf]
      %v855 = vld [vmem:[%s713 + $0xac] sm:$0xf]
      %v856 = vld [vmem:[%s713 + $0xb4] sm:$0xf]
      %v857 = vld [vmem:[%s713 + $0xb8] sm:$0xf]
      %v858 = vld [vmem:[%s713 + $0x8] sm:$0x1]
      %v859 = vld [vmem:[%s713 + $0x14] sm:$0x1]
      %v860 = vld [vmem:[%s713 + $0x20] sm:$0x1]
      %v861 = vld [vmem:[%s713 + $0x2c] sm:$0x1]
      %v862 = vld [vmem:[%s713 + $0x38] sm:$0x1]
      %v863 = vld [vmem:[%s713 + $0x44] sm:$0x1]
      %v864 = vld [vmem:[%s713 + $0x50] sm:$0x1]
      %v865 = vld [vmem:[%s713 + $0x5c] sm:$0x1]
      %v866 = vld [vmem:[%s713 + $0x68] sm:$0x1]
      %v867 = vld [vmem:[%s713 + $0x74] sm:$0x1]
      %v868 = vld [vmem:[%s713 + $0x80] sm:$0x1]
      %v869 = vld [vmem:[%s713 + $0x8c] sm:$0x1]
      %v870 = vld [vmem:[%s713 + $0x98] sm:$0x1]
      %v871 = vld [vmem:[%s713 + $0xa4] sm:$0x1]
      %v872 = vld [vmem:[%s713 + $0xb0] sm:$0x1]
      %v873 = vld [vmem:[%s713 + $0xbc] sm:$0x1]
      %v874 = vld [vmem:[%s713] sm:$0xe]
      %v875 = vld [vmem:[%s713 + $0xc] sm:$0xe]
      %v876 = vld [vmem:[%s713 + $0x18] sm:$0xe]
      %v877 = vld [vmem:[%s713 + $0x24] sm:$0xe]
      %v878 = vld [vmem:[%s713 + $0x30] sm:$0xe]
      %v879 = vld [vmem:[%s713 + $0x3c] sm:$0xe]
      %v880 = vld [vmem:[%s713 + $0x48] sm:$0xe]
      %v881 = vld [vmem:[%s713 + $0x54] sm:$0xe]
      %v882 = vld [vmem:[%s713 + $0x60] sm:$0xe]
      %v883 = vld [vmem:[%s713 + $0x6c] sm:$0xe]
      %v884 = vld [vmem:[%s713 + $0x78] sm:$0xe]
      %v885 = vld [vmem:[%s713 + $0x84] sm:$0xe]
      %v886 = vld [vmem:[%s713 + $0x90] sm:$0xe]
      %v887 = vld [vmem:[%s713 + $0x9c] sm:$0xe]
      %v888 = vld [vmem:[%s713 + $0xa8] sm:$0xe]
      %v889 = vld [vmem:[%s713 + $0xb4] sm:$0xe]
      %s890 = scalar_lea.vmem [#allocation2], 24
      %v891 = vld [vmem:[%s890] sm:$0xf]
      %v892 = vld [vmem:[%s890 + $0x4] sm:$0xf]
      %v893 = vld [vmem:[%s890 + $0xc] sm:$0xf]
      %v894 = vld [vmem:[%s890 + $0x10] sm:$0xf]
      %v895 = vld [vmem:[%s890 + $0x18] sm:$0xf]
      %v896 = vld [vmem:[%s890 + $0x1c] sm:$0xf]
      %v897 = vld [vmem:[%s890 + $0x24] sm:$0xf]
      %v898 = vld [vmem:[%s890 + $0x28] sm:$0xf]
      %v899 = vld [vmem:[%s890 + $0x30] sm:$0xf]
      %v900 = vld [vmem:[%s890 + $0x34] sm:$0xf]
      %v901 = vld [vmem:[%s890 + $0x3c] sm:$0xf]
      %v902 = vld [vmem:[%s890 + $0x40] sm:$0xf]
      %v903 = vld [vmem:[%s890 + $0x48] sm:$0xf]
      %v904 = vld [vmem:[%s890 + $0x4c] sm:$0xf]
      %v905 = vld [vmem:[%s890 + $0x54] sm:$0xf]
      %v906 = vld [vmem:[%s890 + $0x58] sm:$0xf]
      %v907 = vld [vmem:[%s890 + $0x60] sm:$0xf]
      %v908 = vld [vmem:[%s890 + $0x64] sm:$0xf]
      %v909 = vld [vmem:[%s890 + $0x6c] sm:$0xf]
      %v910 = vld [vmem:[%s890 + $0x70] sm:$0xf]
      %v911 = vld [vmem:[%s890 + $0x78] sm:$0xf]
      %v912 = vld [vmem:[%s890 + $0x7c] sm:$0xf]
      %v913 = vld [vmem:[%s890 + $0x84] sm:$0xf]
      %v914 = vld [vmem:[%s890 + $0x88] sm:$0xf]
      %v915 = vld [vmem:[%s890 + $0x90] sm:$0xf]
      %v916 = vld [vmem:[%s890 + $0x94] sm:$0xf]
      %v917 = vld [vmem:[%s890 + $0x9c] sm:$0xf]
      %v918 = vld [vmem:[%s890 + $0xa0] sm:$0xf]
      %v919 = vld [vmem:[%s890 + $0xa8] sm:$0xf]
      %v920 = vld [vmem:[%s890 + $0xac] sm:$0xf]
      %v921 = vld [vmem:[%s890 + $0xb4] sm:$0xf]
      %v922 = vld [vmem:[%s890 + $0xb8] sm:$0xf]
      %v923 = vld [vmem:[%s890 + $0x8] sm:$0x1]
      %v924 = vld [vmem:[%s890 + $0x14] sm:$0x1]
      %v925 = vld [vmem:[%s890 + $0x20] sm:$0x1]
      %v926 = vld [vmem:[%s890 + $0x2c] sm:$0x1]
      %v927 = vld [vmem:[%s890 + $0x38] sm:$0x1]
      %v928 = vld [vmem:[%s890 + $0x44] sm:$0x1]
      %v929 = vld [vmem:[%s890 + $0x50] sm:$0x1]
      %v930 = vld [vmem:[%s890 + $0x5c] sm:$0x1]
      %v931 = vld [vmem:[%s890 + $0x68] sm:$0x1]
      %v932 = vld [vmem:[%s890 + $0x74] sm:$0x1]
      %v933 = vld [vmem:[%s890 + $0x80] sm:$0x1]
      %v934 = vld [vmem:[%s890 + $0x8c] sm:$0x1]
      %v935 = vld [vmem:[%s890 + $0x98] sm:$0x1]
      %v936 = vld [vmem:[%s890 + $0xa4] sm:$0x1]
      %v937 = vld [vmem:[%s890 + $0xb0] sm:$0x1]
      %v938 = vld [vmem:[%s890 + $0xbc] sm:$0x1]
      %v939 = vld [vmem:[%s890] sm:$0xe]
      %v940 = vld [vmem:[%s890 + $0xc] sm:$0xe]
      %v941 = vld [vmem:[%s890 + $0x18] sm:$0xe]
      %v942 = vld [vmem:[%s890 + $0x24] sm:$0xe]
      %v943 = vld [vmem:[%s890 + $0x30] sm:$0xe]
      %v944 = vld [vmem:[%s890 + $0x3c] sm:$0xe]
      %v945 = vld [vmem:[%s890 + $0x48] sm:$0xe]
      %v946 = vld [vmem:[%s890 + $0x54] sm:$0xe]
      %v947 = vld [vmem:[%s890 + $0x60] sm:$0xe]
      %v948 = vld [vmem:[%s890 + $0x6c] sm:$0xe]
      %v949 = vld [vmem:[%s890 + $0x78] sm:$0xe]
      %v950 = vld [vmem:[%s890 + $0x84] sm:$0xe]
      %v951 = vld [vmem:[%s890 + $0x90] sm:$0xe]
      %v952 = vld [vmem:[%s890 + $0x9c] sm:$0xe]
      %v953 = vld [vmem:[%s890 + $0xa8] sm:$0xe]
      %v954 = vld [vmem:[%s890 + $0xb4] sm:$0xe]
      %v987 = vunpack.c.l.b16 %v762
      %v988 = vunpack.c.l.b16 %v763
      %v989 = vunpack.c.l.b16 %v764
      %v990 = vunpack.c.l.b16 %v765
      %v991 = vunpack.c.l.b16 %v766
      %v992 = vunpack.c.l.b16 %v767
      %v993 = vunpack.c.l.b16 %v768
      %v994 = vunpack.c.l.b16 %v769
      %v995 = vunpack.c.l.b16 %v770
      %v996 = vunpack.c.l.b16 %v771
      %v997 = vunpack.c.l.b16 %v772
      %v998 = vunpack.c.l.b16 %v773
      %v999 = vunpack.c.l.b16 %v774
      %v1000 = vunpack.c.l.b16 %v775
      %v1001 = vunpack.c.l.b16 %v776
      %v1002 = vunpack.c.l.b16 %v777
      %v1003 = vunpack.c.l.b16 %v778
      %v1004 = vunpack.c.l.b16 %v779
      %v1005 = vunpack.c.l.b16 %v780
      %v1006 = vunpack.c.l.b16 %v781
      %v1007 = vunpack.c.l.b16 %v782
      %v1008 = vunpack.c.l.b16 %v783
      %v1009 = vunpack.c.l.b16 %v784
      %v1010 = vunpack.c.l.b16 %v785
      %v1011 = vunpack.c.l.b16 %v786
      %v1012 = vunpack.c.l.b16 %v787
      %v1013 = vunpack.c.l.b16 %v788
      %v1014 = vunpack.c.l.b16 %v789
      %v1015 = vunpack.c.l.b16 %v790
      %v1016 = vunpack.c.l.b16 %v791
      %v1017 = vunpack.c.l.b16 %v792
      %v1018 = vunpack.c.l.b16 %v793
      %v1019 = vpack.c.b16 %v988, %v987
      %v1020 = vpack.c.b16 %v990, %v989
      %v1021 = vpack.c.b16 %v992, %v991
      %v1022 = vpack.c.b16 %v994, %v993
      %v1023 = vpack.c.b16 %v996, %v995
      %v1024 = vpack.c.b16 %v998, %v997
      %v1025 = vpack.c.b16 %v1000, %v999
      %v1026 = vpack.c.b16 %v1002, %v1001
      %v1027 = vpack.c.b16 %v1004, %v1003
      %v1028 = vpack.c.b16 %v1006, %v1005
      %v1029 = vpack.c.b16 %v1008, %v1007
      %v1030 = vpack.c.b16 %v1010, %v1009
      %v1031 = vpack.c.b16 %v1012, %v1011
      %v1032 = vpack.c.b16 %v1014, %v1013
      %v1033 = vpack.c.b16 %v1016, %v1015
      %v1034 = vpack.c.b16 %v1018, %v1017
      %v1051 = vunpack.c.l.b16 %v794
      %v1052 = vunpack.c.l.b16 %v795
      %v1053 = vunpack.c.l.b16 %v796
      %v1054 = vunpack.c.l.b16 %v797
      %v1055 = vunpack.c.l.b16 %v798
      %v1056 = vunpack.c.l.b16 %v799
      %v1057 = vunpack.c.l.b16 %v800
      %v1058 = vunpack.c.l.b16 %v801
      %v1059 = vunpack.c.l.b16 %v802
      %v1060 = vunpack.c.l.b16 %v803
      %v1061 = vunpack.c.l.b16 %v804
      %v1062 = vunpack.c.l.b16 %v805
      %v1063 = vunpack.c.l.b16 %v806
      %v1064 = vunpack.c.l.b16 %v807
      %v1065 = vunpack.c.l.b16 %v808
      %v1066 = vunpack.c.l.b16 %v809
      %v1067 = vpack.c.b16 %v1051, %v1051
      %v1068 = vpack.c.b16 %v1052, %v1052
      %v1069 = vpack.c.b16 %v1053, %v1053
      %v1070 = vpack.c.b16 %v1054, %v1054
      %v1071 = vpack.c.b16 %v1055, %v1055
      %v1072 = vpack.c.b16 %v1056, %v1056
      %v1073 = vpack.c.b16 %v1057, %v1057
      %v1074 = vpack.c.b16 %v1058, %v1058
      %v1075 = vpack.c.b16 %v1059, %v1059
      %v1076 = vpack.c.b16 %v1060, %v1060
      %v1077 = vpack.c.b16 %v1061, %v1061
      %v1078 = vpack.c.b16 %v1062, %v1062
      %v1079 = vpack.c.b16 %v1063, %v1063
      %v1080 = vpack.c.b16 %v1064, %v1064
      %v1081 = vpack.c.b16 %v1065, %v1065
      %v1082 = vpack.c.b16 %v1066, %v1066
      %vm1083 = vsmask.f32 7424
      %v1085 = vshrl.u32 %v1019, 16
      %v1087 = vshll.u32 %v1019, 16
      %v1089 = vrot.slane %v1087, 1
      %v1090 = vor.u32 %v1085, %v1089
      %v1092 = vshll.u32 %v1067, 16
      %v1094 = vrot.slane %v1092, 1
      %v1095 = vsel %vm1083, %v1090, %v1094
      %v1097 = vshrl.u32 %v1020, 16
      %v1099 = vshll.u32 %v1020, 16
      %v1101 = vrot.slane %v1099, 1
      %v1102 = vor.u32 %v1097, %v1101
      %v1104 = vshll.u32 %v1068, 16
      %v1106 = vrot.slane %v1104, 1
      %v1107 = vsel %vm1083, %v1102, %v1106
      %v1109 = vshrl.u32 %v1021, 16
      %v1111 = vshll.u32 %v1021, 16
      %v1113 = vrot.slane %v1111, 1
      %v1114 = vor.u32 %v1109, %v1113
      %v1116 = vshll.u32 %v1069, 16
      %v1118 = vrot.slane %v1116, 1
      %v1119 = vsel %vm1083, %v1114, %v1118
      %v1121 = vshrl.u32 %v1022, 16
      %v1123 = vshll.u32 %v1022, 16
      %v1125 = vrot.slane %v1123, 1
      %v1126 = vor.u32 %v1121, %v1125
      %v1128 = vshll.u32 %v1070, 16
      %v1130 = vrot.slane %v1128, 1
      %v1131 = vsel %vm1083, %v1126, %v1130
      %v1133 = vshrl.u32 %v1023, 16
      %v1135 = vshll.u32 %v1023, 16
      %v1137 = vrot.slane %v1135, 1
      %v1138 = vor.u32 %v1133, %v1137
      %v1140 = vshll.u32 %v1071, 16
      %v1142 = vrot.slane %v1140, 1
      %v1143 = vsel %vm1083, %v1138, %v1142
      %v1145 = vshrl.u32 %v1024, 16
      %v1147 = vshll.u32 %v1024, 16
      %v1149 = vrot.slane %v1147, 1
      %v1150 = vor.u32 %v1145, %v1149
      %v1152 = vshll.u32 %v1072, 16
      %v1154 = vrot.slane %v1152, 1
      %v1155 = vsel %vm1083, %v1150, %v1154
      %v1157 = vshrl.u32 %v1025, 16
      %v1159 = vshll.u32 %v1025, 16
      %v1161 = vrot.slane %v1159, 1
      %v1162 = vor.u32 %v1157, %v1161
      %v1164 = vshll.u32 %v1073, 16
      %v1166 = vrot.slane %v1164, 1
      %v1167 = vsel %vm1083, %v1162, %v1166
      %v1169 = vshrl.u32 %v1026, 16
      %v1171 = vshll.u32 %v1026, 16
      %v1173 = vrot.slane %v1171, 1
      %v1174 = vor.u32 %v1169, %v1173
      %v1176 = vshll.u32 %v1074, 16
      %v1178 = vrot.slane %v1176, 1
      %v1179 = vsel %vm1083, %v1174, %v1178
      %v1181 = vshrl.u32 %v1027, 16
      %v1183 = vshll.u32 %v1027, 16
      %v1185 = vrot.slane %v1183, 1
      %v1186 = vor.u32 %v1181, %v1185
      %v1188 = vshll.u32 %v1075, 16
      %v1190 = vrot.slane %v1188, 1
      %v1191 = vsel %vm1083, %v1186, %v1190
      %v1193 = vshrl.u32 %v1028, 16
      %v1195 = vshll.u32 %v1028, 16
      %v1197 = vrot.slane %v1195, 1
      %v1198 = vor.u32 %v1193, %v1197
      %v1200 = vshll.u32 %v1076, 16
      %v1202 = vrot.slane %v1200, 1
      %v1203 = vsel %vm1083, %v1198, %v1202
      %v1205 = vshrl.u32 %v1029, 16
      %v1207 = vshll.u32 %v1029, 16
      %v1209 = vrot.slane %v1207, 1
      %v1210 = vor.u32 %v1205, %v1209
      %v1212 = vshll.u32 %v1077, 16
      %v1214 = vrot.slane %v1212, 1
      %v1215 = vsel %vm1083, %v1210, %v1214
      %v1217 = vshrl.u32 %v1030, 16
      %v1219 = vshll.u32 %v1030, 16
      %v1221 = vrot.slane %v1219, 1
      %v1222 = vor.u32 %v1217, %v1221
      %v1224 = vshll.u32 %v1078, 16
      %v1226 = vrot.slane %v1224, 1
      %v1227 = vsel %vm1083, %v1222, %v1226
      %v1229 = vshrl.u32 %v1031, 16
      %v1231 = vshll.u32 %v1031, 16
      %v1233 = vrot.slane %v1231, 1
      %v1234 = vor.u32 %v1229, %v1233
      %v1236 = vshll.u32 %v1079, 16
      %v1238 = vrot.slane %v1236, 1
      %v1239 = vsel %vm1083, %v1234, %v1238
      %v1241 = vshrl.u32 %v1032, 16
      %v1243 = vshll.u32 %v1032, 16
      %v1245 = vrot.slane %v1243, 1
      %v1246 = vor.u32 %v1241, %v1245
      %v1248 = vshll.u32 %v1080, 16
      %v1250 = vrot.slane %v1248, 1
      %v1251 = vsel %vm1083, %v1246, %v1250
      %v1253 = vshrl.u32 %v1033, 16
      %v1255 = vshll.u32 %v1033, 16
      %v1257 = vrot.slane %v1255, 1
      %v1258 = vor.u32 %v1253, %v1257
      %v1260 = vshll.u32 %v1081, 16
      %v1262 = vrot.slane %v1260, 1
      %v1263 = vsel %vm1083, %v1258, %v1262
      %v1265 = vshrl.u32 %v1034, 16
      %v1267 = vshll.u32 %v1034, 16
      %v1269 = vrot.slane %v1267, 1
      %v1270 = vor.u32 %v1265, %v1269
      %v1272 = vshll.u32 %v1082, 16
      %v1274 = vrot.slane %v1272, 1
      %v1275 = vsel %vm1083, %v1270, %v1274
      %1276 = vrot.lane.b32.xlu0 %v1095, 4
      %v1277 = vpop.permute.xlu0 %1276
      %1278 = vrot.lane.b32.xlu0 %v1107, 4
      %v1279 = vpop.permute.xlu0 %1278
      %1280 = vrot.lane.b32.xlu0 %v1119, 4
      %v1281 = vpop.permute.xlu0 %1280
      %1282 = vrot.lane.b32.xlu0 %v1131, 4
      %v1283 = vpop.permute.xlu0 %1282
      %1284 = vrot.lane.b32.xlu0 %v1143, 4
      %v1285 = vpop.permute.xlu0 %1284
      %1286 = vrot.lane.b32.xlu0 %v1155, 4
      %v1287 = vpop.permute.xlu0 %1286
      %1288 = vrot.lane.b32.xlu0 %v1167, 4
      %v1289 = vpop.permute.xlu0 %1288
      %1290 = vrot.lane.b32.xlu0 %v1179, 4
      %v1291 = vpop.permute.xlu0 %1290
      %1292 = vrot.lane.b32.xlu0 %v1191, 4
      %v1293 = vpop.permute.xlu0 %1292
      %1294 = vrot.lane.b32.xlu0 %v1203, 4
      %v1295 = vpop.permute.xlu0 %1294
      %1296 = vrot.lane.b32.xlu0 %v1215, 4
      %v1297 = vpop.permute.xlu0 %1296
      %1298 = vrot.lane.b32.xlu0 %v1227, 4
      %v1299 = vpop.permute.xlu0 %1298
      %1300 = vrot.lane.b32.xlu0 %v1239, 4
      %v1301 = vpop.permute.xlu0 %1300
      %1302 = vrot.lane.b32.xlu0 %v1251, 4
      %v1303 = vpop.permute.xlu0 %1302
      %1304 = vrot.lane.b32.xlu0 %v1263, 4
      %v1305 = vpop.permute.xlu0 %1304
      %1306 = vrot.lane.b32.xlu0 %v1275, 4
      %v1307 = vpop.permute.xlu0 %1306
      %v1324 = vunpack.c.l.b16 %v810
      %v1325 = vunpack.c.l.b16 %v811
      %v1326 = vunpack.c.l.b16 %v812
      %v1327 = vunpack.c.l.b16 %v813
      %v1328 = vunpack.c.l.b16 %v814
      %v1329 = vunpack.c.l.b16 %v815
      %v1330 = vunpack.c.l.b16 %v816
      %v1331 = vunpack.c.l.b16 %v817
      %v1332 = vunpack.c.l.b16 %v818
      %v1333 = vunpack.c.l.b16 %v819
      %v1334 = vunpack.c.l.b16 %v820
      %v1335 = vunpack.c.l.b16 %v821
      %v1336 = vunpack.c.l.b16 %v822
      %v1337 = vunpack.c.l.b16 %v823
      %v1338 = vunpack.c.l.b16 %v824
      %v1339 = vunpack.c.l.b16 %v825
      %v1340 = vpack.c.b16 %v988, %v1324
      %v1341 = vpack.c.b16 %v990, %v1325
      %v1342 = vpack.c.b16 %v992, %v1326
      %v1343 = vpack.c.b16 %v994, %v1327
      %v1344 = vpack.c.b16 %v996, %v1328
      %v1345 = vpack.c.b16 %v998, %v1329
      %v1346 = vpack.c.b16 %v1000, %v1330
      %v1347 = vpack.c.b16 %v1002, %v1331
      %v1348 = vpack.c.b16 %v1004, %v1332
      %v1349 = vpack.c.b16 %v1006, %v1333
      %v1350 = vpack.c.b16 %v1008, %v1334
      %v1351 = vpack.c.b16 %v1010, %v1335
      %v1352 = vpack.c.b16 %v1012, %v1336
      %v1353 = vpack.c.b16 %v1014, %v1337
      %v1354 = vpack.c.b16 %v1016, %v1338
      %v1355 = vpack.c.b16 %v1018, %v1339
      %vm1356 = vcmask 1046528
      %v1357 = vrot.slane %v1340, 1
      %v1358 = vrot.slane %v1067, 1
      %v1359 = vsel %vm1356, %v1357, %v1358
      %v1360 = vrot.slane %v1341, 1
      %v1361 = vrot.slane %v1068, 1
      %v1362 = vsel %vm1356, %v1360, %v1361
      %v1363 = vrot.slane %v1342, 1
      %v1364 = vrot.slane %v1069, 1
      %v1365 = vsel %vm1356, %v1363, %v1364
      %v1366 = vrot.slane %v1343, 1
      %v1367 = vrot.slane %v1070, 1
      %v1368 = vsel %vm1356, %v1366, %v1367
      %v1369 = vrot.slane %v1344, 1
      %v1370 = vrot.slane %v1071, 1
      %v1371 = vsel %vm1356, %v1369, %v1370
      %v1372 = vrot.slane %v1345, 1
      %v1373 = vrot.slane %v1072, 1
      %v1374 = vsel %vm1356, %v1372, %v1373
      %v1375 = vrot.slane %v1346, 1
      %v1376 = vrot.slane %v1073, 1
      %v1377 = vsel %vm1356, %v1375, %v1376
      %v1378 = vrot.slane %v1347, 1
      %v1379 = vrot.slane %v1074, 1
      %v1380 = vsel %vm1356, %v1378, %v1379
      %v1381 = vrot.slane %v1348, 1
      %v1382 = vrot.slane %v1075, 1
      %v1383 = vsel %vm1356, %v1381, %v1382
      %v1384 = vrot.slane %v1349, 1
      %v1385 = vrot.slane %v1076, 1
      %v1386 = vsel %vm1356, %v1384, %v1385
      %v1387 = vrot.slane %v1350, 1
      %v1388 = vrot.slane %v1077, 1
      %v1389 = vsel %vm1356, %v1387, %v1388
      %v1390 = vrot.slane %v1351, 1
      %v1391 = vrot.slane %v1078, 1
      %v1392 = vsel %vm1356, %v1390, %v1391
      %v1393 = vrot.slane %v1352, 1
      %v1394 = vrot.slane %v1079, 1
      %v1395 = vsel %vm1356, %v1393, %v1394
      %v1396 = vrot.slane %v1353, 1
      %v1397 = vrot.slane %v1080, 1
      %v1398 = vsel %vm1356, %v1396, %v1397
      %v1399 = vrot.slane %v1354, 1
      %v1400 = vrot.slane %v1081, 1
      %v1401 = vsel %vm1356, %v1399, %v1400
      %v1402 = vrot.slane %v1355, 1
      %v1403 = vrot.slane %v1082, 1
      %v1404 = vsel %vm1356, %v1402, %v1403
      %1405 = vrot.lane.b32.xlu0 %v1359, 8
      %v1406 = vpop.permute.xlu0 %1405
      %1407 = vrot.lane.b32.xlu0 %v1362, 8
      %v1408 = vpop.permute.xlu0 %1407
      %1409 = vrot.lane.b32.xlu0 %v1365, 8
      %v1410 = vpop.permute.xlu0 %1409
      %1411 = vrot.lane.b32.xlu0 %v1368, 8
      %v1412 = vpop.permute.xlu0 %1411
      %1413 = vrot.lane.b32.xlu0 %v1371, 8
      %v1414 = vpop.permute.xlu0 %1413
      %1415 = vrot.lane.b32.xlu0 %v1374, 8
      %v1416 = vpop.permute.xlu0 %1415
      %1417 = vrot.lane.b32.xlu0 %v1377, 8
      %v1418 = vpop.permute.xlu0 %1417
      %1419 = vrot.lane.b32.xlu0 %v1380, 8
      %v1420 = vpop.permute.xlu0 %1419
      %1421 = vrot.lane.b32.xlu0 %v1383, 8
      %v1422 = vpop.permute.xlu0 %1421
      %1423 = vrot.lane.b32.xlu0 %v1386, 8
      %v1424 = vpop.permute.xlu0 %1423
      %1425 = vrot.lane.b32.xlu0 %v1389, 8
      %v1426 = vpop.permute.xlu0 %1425
      %1427 = vrot.lane.b32.xlu0 %v1392, 8
      %v1428 = vpop.permute.xlu0 %1427
      %1429 = vrot.lane.b32.xlu0 %v1395, 8
      %v1430 = vpop.permute.xlu0 %1429
      %1431 = vrot.lane.b32.xlu0 %v1398, 8
      %v1432 = vpop.permute.xlu0 %1431
      %1433 = vrot.lane.b32.xlu0 %v1401, 8
      %v1434 = vpop.permute.xlu0 %1433
      %1435 = vrot.lane.b32.xlu0 %v1404, 8
      %v1436 = vpop.permute.xlu0 %1435
      %v1469 = vunpack.c.l.b16 %v826
      %v1470 = vunpack.c.l.b16 %v827
      %v1471 = vunpack.c.l.b16 %v828
      %v1472 = vunpack.c.l.b16 %v829
      %v1473 = vunpack.c.l.b16 %v830
      %v1474 = vunpack.c.l.b16 %v831
      %v1475 = vunpack.c.l.b16 %v832
      %v1476 = vunpack.c.l.b16 %v833
      %v1477 = vunpack.c.l.b16 %v834
      %v1478 = vunpack.c.l.b16 %v835
      %v1479 = vunpack.c.l.b16 %v836
      %v1480 = vunpack.c.l.b16 %v837
      %v1481 = vunpack.c.l.b16 %v838
      %v1482 = vunpack.c.l.b16 %v839
      %v1483 = vunpack.c.l.b16 %v840
      %v1484 = vunpack.c.l.b16 %v841
      %v1485 = vunpack.c.l.b16 %v842
      %v1486 = vunpack.c.l.b16 %v843
      %v1487 = vunpack.c.l.b16 %v844
      %v1488 = vunpack.c.l.b16 %v845
      %v1489 = vunpack.c.l.b16 %v846
      %v1490 = vunpack.c.l.b16 %v847
      %v1491 = vunpack.c.l.b16 %v848
      %v1492 = vunpack.c.l.b16 %v849
      %v1493 = vunpack.c.l.b16 %v850
      %v1494 = vunpack.c.l.b16 %v851
      %v1495 = vunpack.c.l.b16 %v852
      %v1496 = vunpack.c.l.b16 %v853
      %v1497 = vunpack.c.l.b16 %v854
      %v1498 = vunpack.c.l.b16 %v855
      %v1499 = vunpack.c.l.b16 %v856
      %v1500 = vunpack.c.l.b16 %v857
      %v1501 = vpack.c.b16 %v1470, %v1469
      %v1502 = vpack.c.b16 %v1472, %v1471
      %v1503 = vpack.c.b16 %v1474, %v1473
      %v1504 = vpack.c.b16 %v1476, %v1475
      %v1505 = vpack.c.b16 %v1478, %v1477
      %v1506 = vpack.c.b16 %v1480, %v1479
      %v1507 = vpack.c.b16 %v1482, %v1481
      %v1508 = vpack.c.b16 %v1484, %v1483
      %v1509 = vpack.c.b16 %v1486, %v1485
      %v1510 = vpack.c.b16 %v1488, %v1487
      %v1511 = vpack.c.b16 %v1490, %v1489
      %v1512 = vpack.c.b16 %v1492, %v1491
      %v1513 = vpack.c.b16 %v1494, %v1493
      %v1514 = vpack.c.b16 %v1496, %v1495
      %v1515 = vpack.c.b16 %v1498, %v1497
      %v1516 = vpack.c.b16 %v1500, %v1499
      %1517 = vrot.lane.b32.xlu0 %v1501, 12
      %v1518 = vpop.permute.xlu0 %1517
      %1519 = vrot.lane.b32.xlu0 %v1502, 12
      %v1520 = vpop.permute.xlu0 %1519
      %1521 = vrot.lane.b32.xlu0 %v1503, 12
      %v1522 = vpop.permute.xlu0 %1521
      %1523 = vrot.lane.b32.xlu0 %v1504, 12
      %v1524 = vpop.permute.xlu0 %1523
      %1525 = vrot.lane.b32.xlu0 %v1505, 12
      %v1526 = vpop.permute.xlu0 %1525
      %1527 = vrot.lane.b32.xlu0 %v1506, 12
      %v1528 = vpop.permute.xlu0 %1527
      %1529 = vrot.lane.b32.xlu0 %v1507, 12
      %v1530 = vpop.permute.xlu0 %1529
      %1531 = vrot.lane.b32.xlu0 %v1508, 12
      %v1532 = vpop.permute.xlu0 %1531
      %1533 = vrot.lane.b32.xlu0 %v1509, 12
      %v1534 = vpop.permute.xlu0 %1533
      %1535 = vrot.lane.b32.xlu0 %v1510, 12
      %v1536 = vpop.permute.xlu0 %1535
      %1537 = vrot.lane.b32.xlu0 %v1511, 12
      %v1538 = vpop.permute.xlu0 %1537
      %1539 = vrot.lane.b32.xlu0 %v1512, 12
      %v1540 = vpop.permute.xlu0 %1539
      %1541 = vrot.lane.b32.xlu0 %v1513, 12
      %v1542 = vpop.permute.xlu0 %1541
      %1543 = vrot.lane.b32.xlu0 %v1514, 12
      %v1544 = vpop.permute.xlu0 %1543
      %1545 = vrot.lane.b32.xlu0 %v1515, 12
      %v1546 = vpop.permute.xlu0 %1545
      %1547 = vrot.lane.b32.xlu0 %v1516, 12
      %v1548 = vpop.permute.xlu0 %1547
      %v1565 = vunpack.c.l.b16 %v858
      %v1566 = vunpack.c.l.b16 %v859
      %v1567 = vunpack.c.l.b16 %v860
      %v1568 = vunpack.c.l.b16 %v861
      %v1569 = vunpack.c.l.b16 %v862
      %v1570 = vunpack.c.l.b16 %v863
      %v1571 = vunpack.c.l.b16 %v864
      %v1572 = vunpack.c.l.b16 %v865
      %v1573 = vunpack.c.l.b16 %v866
      %v1574 = vunpack.c.l.b16 %v867
      %v1575 = vunpack.c.l.b16 %v868
      %v1576 = vunpack.c.l.b16 %v869
      %v1577 = vunpack.c.l.b16 %v870
      %v1578 = vunpack.c.l.b16 %v871
      %v1579 = vunpack.c.l.b16 %v872
      %v1580 = vunpack.c.l.b16 %v873
      %v1581 = vpack.c.b16 %v1565, %v1565
      %v1582 = vpack.c.b16 %v1566, %v1566
      %v1583 = vpack.c.b16 %v1567, %v1567
      %v1584 = vpack.c.b16 %v1568, %v1568
      %v1585 = vpack.c.b16 %v1569, %v1569
      %v1586 = vpack.c.b16 %v1570, %v1570
      %v1587 = vpack.c.b16 %v1571, %v1571
      %v1588 = vpack.c.b16 %v1572, %v1572
      %v1589 = vpack.c.b16 %v1573, %v1573
      %v1590 = vpack.c.b16 %v1574, %v1574
      %v1591 = vpack.c.b16 %v1575, %v1575
      %v1592 = vpack.c.b16 %v1576, %v1576
      %v1593 = vpack.c.b16 %v1577, %v1577
      %v1594 = vpack.c.b16 %v1578, %v1578
      %v1595 = vpack.c.b16 %v1579, %v1579
      %v1596 = vpack.c.b16 %v1580, %v1580
      %v1598 = vshrl.u32 %v1501, 16
      %v1600 = vshll.u32 %v1501, 16
      %v1602 = vrot.slane %v1600, 1
      %v1603 = vor.u32 %v1598, %v1602
      %v1605 = vshll.u32 %v1581, 16
      %v1607 = vrot.slane %v1605, 1
      %v1608 = vsel %vm1083, %v1603, %v1607
      %v1610 = vshrl.u32 %v1502, 16
      %v1612 = vshll.u32 %v1502, 16
      %v1614 = vrot.slane %v1612, 1
      %v1615 = vor.u32 %v1610, %v1614
      %v1617 = vshll.u32 %v1582, 16
      %v1619 = vrot.slane %v1617, 1
      %v1620 = vsel %vm1083, %v1615, %v1619
      %v1622 = vshrl.u32 %v1503, 16
      %v1624 = vshll.u32 %v1503, 16
      %v1626 = vrot.slane %v1624, 1
      %v1627 = vor.u32 %v1622, %v1626
      %v1629 = vshll.u32 %v1583, 16
      %v1631 = vrot.slane %v1629, 1
      %v1632 = vsel %vm1083, %v1627, %v1631
      %v1634 = vshrl.u32 %v1504, 16
      %v1636 = vshll.u32 %v1504, 16
      %v1638 = vrot.slane %v1636, 1
      %v1639 = vor.u32 %v1634, %v1638
      %v1641 = vshll.u32 %v1584, 16
      %v1643 = vrot.slane %v1641, 1
      %v1644 = vsel %vm1083, %v1639, %v1643
      %v1646 = vshrl.u32 %v1505, 16
      %v1648 = vshll.u32 %v1505, 16
      %v1650 = vrot.slane %v1648, 1
      %v1651 = vor.u32 %v1646, %v1650
      %v1653 = vshll.u32 %v1585, 16
      %v1655 = vrot.slane %v1653, 1
      %v1656 = vsel %vm1083, %v1651, %v1655
      %v1658 = vshrl.u32 %v1506, 16
      %v1660 = vshll.u32 %v1506, 16
      %v1662 = vrot.slane %v1660, 1
      %v1663 = vor.u32 %v1658, %v1662
      %v1665 = vshll.u32 %v1586, 16
      %v1667 = vrot.slane %v1665, 1
      %v1668 = vsel %vm1083, %v1663, %v1667
      %v1670 = vshrl.u32 %v1507, 16
      %v1672 = vshll.u32 %v1507, 16
      %v1674 = vrot.slane %v1672, 1
      %v1675 = vor.u32 %v1670, %v1674
      %v1677 = vshll.u32 %v1587, 16
      %v1679 = vrot.slane %v1677, 1
      %v1680 = vsel %vm1083, %v1675, %v1679
      %v1682 = vshrl.u32 %v1508, 16
      %v1684 = vshll.u32 %v1508, 16
      %v1686 = vrot.slane %v1684, 1
      %v1687 = vor.u32 %v1682, %v1686
      %v1689 = vshll.u32 %v1588, 16
      %v1691 = vrot.slane %v1689, 1
      %v1692 = vsel %vm1083, %v1687, %v1691
      %v1694 = vshrl.u32 %v1509, 16
      %v1696 = vshll.u32 %v1509, 16
      %v1698 = vrot.slane %v1696, 1
      %v1699 = vor.u32 %v1694, %v1698
      %v1701 = vshll.u32 %v1589, 16
      %v1703 = vrot.slane %v1701, 1
      %v1704 = vsel %vm1083, %v1699, %v1703
      %v1706 = vshrl.u32 %v1510, 16
      %v1708 = vshll.u32 %v1510, 16
      %v1710 = vrot.slane %v1708, 1
      %v1711 = vor.u32 %v1706, %v1710
      %v1713 = vshll.u32 %v1590, 16
      %v1715 = vrot.slane %v1713, 1
      %v1716 = vsel %vm1083, %v1711, %v1715
      %v1718 = vshrl.u32 %v1511, 16
      %v1720 = vshll.u32 %v1511, 16
      %v1722 = vrot.slane %v1720, 1
      %v1723 = vor.u32 %v1718, %v1722
      %v1725 = vshll.u32 %v1591, 16
      %v1727 = vrot.slane %v1725, 1
      %v1728 = vsel %vm1083, %v1723, %v1727
      %v1730 = vshrl.u32 %v1512, 16
      %v1732 = vshll.u32 %v1512, 16
      %v1734 = vrot.slane %v1732, 1
      %v1735 = vor.u32 %v1730, %v1734
      %v1737 = vshll.u32 %v1592, 16
      %v1739 = vrot.slane %v1737, 1
      %v1740 = vsel %vm1083, %v1735, %v1739
      %v1742 = vshrl.u32 %v1513, 16
      %v1744 = vshll.u32 %v1513, 16
      %v1746 = vrot.slane %v1744, 1
      %v1747 = vor.u32 %v1742, %v1746
      %v1749 = vshll.u32 %v1593, 16
      %v1751 = vrot.slane %v1749, 1
      %v1752 = vsel %vm1083, %v1747, %v1751
      %v1754 = vshrl.u32 %v1514, 16
      %v1756 = vshll.u32 %v1514, 16
      %v1758 = vrot.slane %v1756, 1
      %v1759 = vor.u32 %v1754, %v1758
      %v1761 = vshll.u32 %v1594, 16
      %v1763 = vrot.slane %v1761, 1
      %v1764 = vsel %vm1083, %v1759, %v1763
      %v1766 = vshrl.u32 %v1515, 16
      %v1768 = vshll.u32 %v1515, 16
      %v1770 = vrot.slane %v1768, 1
      %v1771 = vor.u32 %v1766, %v1770
      %v1773 = vshll.u32 %v1595, 16
      %v1775 = vrot.slane %v1773, 1
      %v1776 = vsel %vm1083, %v1771, %v1775
      %v1778 = vshrl.u32 %v1516, 16
      %v1780 = vshll.u32 %v1516, 16
      %v1782 = vrot.slane %v1780, 1
      %v1783 = vor.u32 %v1778, %v1782
      %v1785 = vshll.u32 %v1596, 16
      %v1787 = vrot.slane %v1785, 1
      %v1788 = vsel %vm1083, %v1783, %v1787
      %1789 = vrot.lane.b32.xlu0 %v1608, 16
      %v1790 = vpop.permute.xlu0 %1789
      %1791 = vrot.lane.b32.xlu0 %v1620, 16
      %v1792 = vpop.permute.xlu0 %1791
      %1793 = vrot.lane.b32.xlu0 %v1632, 16
      %v1794 = vpop.permute.xlu0 %1793
      %1795 = vrot.lane.b32.xlu0 %v1644, 16
      %v1796 = vpop.permute.xlu0 %1795
      %1797 = vrot.lane.b32.xlu0 %v1656, 16
      %v1798 = vpop.permute.xlu0 %1797
      %1799 = vrot.lane.b32.xlu0 %v1668, 16
      %v1800 = vpop.permute.xlu0 %1799
      %1801 = vrot.lane.b32.xlu0 %v1680, 16
      %v1802 = vpop.permute.xlu0 %1801
      %1803 = vrot.lane.b32.xlu0 %v1692, 16
      %v1804 = vpop.permute.xlu0 %1803
      %1805 = vrot.lane.b32.xlu0 %v1704, 16
      %v1806 = vpop.permute.xlu0 %1805
      %1807 = vrot.lane.b32.xlu0 %v1716, 16
      %v1808 = vpop.permute.xlu0 %1807
      %1809 = vrot.lane.b32.xlu0 %v1728, 16
      %v1810 = vpop.permute.xlu0 %1809
      %1811 = vrot.lane.b32.xlu0 %v1740, 16
      %v1812 = vpop.permute.xlu0 %1811
      %1813 = vrot.lane.b32.xlu0 %v1752, 16
      %v1814 = vpop.permute.xlu0 %1813
      %1815 = vrot.lane.b32.xlu0 %v1764, 16
      %v1816 = vpop.permute.xlu0 %1815
      %1817 = vrot.lane.b32.xlu0 %v1776, 16
      %v1818 = vpop.permute.xlu0 %1817
      %1819 = vrot.lane.b32.xlu0 %v1788, 16
      %v1820 = vpop.permute.xlu0 %1819
      %v1837 = vunpack.c.l.b16 %v874
      %v1838 = vunpack.c.l.b16 %v875
      %v1839 = vunpack.c.l.b16 %v876
      %v1840 = vunpack.c.l.b16 %v877
      %v1841 = vunpack.c.l.b16 %v878
      %v1842 = vunpack.c.l.b16 %v879
      %v1843 = vunpack.c.l.b16 %v880
      %v1844 = vunpack.c.l.b16 %v881
      %v1845 = vunpack.c.l.b16 %v882
      %v1846 = vunpack.c.l.b16 %v883
      %v1847 = vunpack.c.l.b16 %v884
      %v1848 = vunpack.c.l.b16 %v885
      %v1849 = vunpack.c.l.b16 %v886
      %v1850 = vunpack.c.l.b16 %v887
      %v1851 = vunpack.c.l.b16 %v888
      %v1852 = vunpack.c.l.b16 %v889
      %v1853 = vpack.c.b16 %v1470, %v1837
      %v1854 = vpack.c.b16 %v1472, %v1838
      %v1855 = vpack.c.b16 %v1474, %v1839
      %v1856 = vpack.c.b16 %v1476, %v1840
      %v1857 = vpack.c.b16 %v1478, %v1841
      %v1858 = vpack.c.b16 %v1480, %v1842
      %v1859 = vpack.c.b16 %v1482, %v1843
      %v1860 = vpack.c.b16 %v1484, %v1844
      %v1861 = vpack.c.b16 %v1486, %v1845
      %v1862 = vpack.c.b16 %v1488, %v1846
      %v1863 = vpack.c.b16 %v1490, %v1847
      %v1864 = vpack.c.b16 %v1492, %v1848
      %v1865 = vpack.c.b16 %v1494, %v1849
      %v1866 = vpack.c.b16 %v1496, %v1850
      %v1867 = vpack.c.b16 %v1498, %v1851
      %v1868 = vpack.c.b16 %v1500, %v1852
      %v1869 = vrot.slane %v1853, 1
      %v1870 = vrot.slane %v1581, 1
      %v1871 = vsel %vm1356, %v1869, %v1870
      %v1872 = vrot.slane %v1854, 1
      %v1873 = vrot.slane %v1582, 1
      %v1874 = vsel %vm1356, %v1872, %v1873
      %v1875 = vrot.slane %v1855, 1
      %v1876 = vrot.slane %v1583, 1
      %v1877 = vsel %vm1356, %v1875, %v1876
      %v1878 = vrot.slane %v1856, 1
      %v1879 = vrot.slane %v1584, 1
      %v1880 = vsel %vm1356, %v1878, %v1879
      %v1881 = vrot.slane %v1857, 1
      %v1882 = vrot.slane %v1585, 1
      %v1883 = vsel %vm1356, %v1881, %v1882
      %v1884 = vrot.slane %v1858, 1
      %v1885 = vrot.slane %v1586, 1
      %v1886 = vsel %vm1356, %v1884, %v1885
      %v1887 = vrot.slane %v1859, 1
      %v1888 = vrot.slane %v1587, 1
      %v1889 = vsel %vm1356, %v1887, %v1888
      %v1890 = vrot.slane %v1860, 1
      %v1891 = vrot.slane %v1588, 1
      %v1892 = vsel %vm1356, %v1890, %v1891
      %v1893 = vrot.slane %v1861, 1
      %v1894 = vrot.slane %v1589, 1
      %v1895 = vsel %vm1356, %v1893, %v1894
      %v1896 = vrot.slane %v1862, 1
      %v1897 = vrot.slane %v1590, 1
      %v1898 = vsel %vm1356, %v1896, %v1897
      %v1899 = vrot.slane %v1863, 1
      %v1900 = vrot.slane %v1591, 1
      %v1901 = vsel %vm1356, %v1899, %v1900
      %v1902 = vrot.slane %v1864, 1
      %v1903 = vrot.slane %v1592, 1
      %v1904 = vsel %vm1356, %v1902, %v1903
      %v1905 = vrot.slane %v1865, 1
      %v1906 = vrot.slane %v1593, 1
      %v1907 = vsel %vm1356, %v1905, %v1906
      %v1908 = vrot.slane %v1866, 1
      %v1909 = vrot.slane %v1594, 1
      %v1910 = vsel %vm1356, %v1908, %v1909
      %v1911 = vrot.slane %v1867, 1
      %v1912 = vrot.slane %v1595, 1
      %v1913 = vsel %vm1356, %v1911, %v1912
      %v1914 = vrot.slane %v1868, 1
      %v1915 = vrot.slane %v1596, 1
      %v1916 = vsel %vm1356, %v1914, %v1915
      %1917 = vrot.lane.b32.xlu0 %v1871, 20
      %v1918 = vpop.permute.xlu0 %1917
      %1919 = vrot.lane.b32.xlu0 %v1874, 20
      %v1920 = vpop.permute.xlu0 %1919
      %1921 = vrot.lane.b32.xlu0 %v1877, 20
      %v1922 = vpop.permute.xlu0 %1921
      %1923 = vrot.lane.b32.xlu0 %v1880, 20
      %v1924 = vpop.permute.xlu0 %1923
      %1925 = vrot.lane.b32.xlu0 %v1883, 20
      %v1926 = vpop.permute.xlu0 %1925
      %1927 = vrot.lane.b32.xlu0 %v1886, 20
      %v1928 = vpop.permute.xlu0 %1927
      %1929 = vrot.lane.b32.xlu0 %v1889, 20
      %v1930 = vpop.permute.xlu0 %1929
      %1931 = vrot.lane.b32.xlu0 %v1892, 20
      %v1932 = vpop.permute.xlu0 %1931
      %1933 = vrot.lane.b32.xlu0 %v1895, 20
      %v1934 = vpop.permute.xlu0 %1933
      %1935 = vrot.lane.b32.xlu0 %v1898, 20
      %v1936 = vpop.permute.xlu0 %1935
      %1937 = vrot.lane.b32.xlu0 %v1901, 20
      %v1938 = vpop.permute.xlu0 %1937
      %1939 = vrot.lane.b32.xlu0 %v1904, 20
      %v1940 = vpop.permute.xlu0 %1939
      %1941 = vrot.lane.b32.xlu0 %v1907, 20
      %v1942 = vpop.permute.xlu0 %1941
      %1943 = vrot.lane.b32.xlu0 %v1910, 20
      %v1944 = vpop.permute.xlu0 %1943
      %1945 = vrot.lane.b32.xlu0 %v1913, 20
      %v1946 = vpop.permute.xlu0 %1945
      %1947 = vrot.lane.b32.xlu0 %v1916, 20
      %v1948 = vpop.permute.xlu0 %1947
      %v1981 = vunpack.c.l.b16 %v891
      %v1982 = vunpack.c.l.b16 %v892
      %v1983 = vunpack.c.l.b16 %v893
      %v1984 = vunpack.c.l.b16 %v894
      %v1985 = vunpack.c.l.b16 %v895
      %v1986 = vunpack.c.l.b16 %v896
      %v1987 = vunpack.c.l.b16 %v897
      %v1988 = vunpack.c.l.b16 %v898
      %v1989 = vunpack.c.l.b16 %v899
      %v1990 = vunpack.c.l.b16 %v900
      %v1991 = vunpack.c.l.b16 %v901
      %v1992 = vunpack.c.l.b16 %v902
      %v1993 = vunpack.c.l.b16 %v903
      %v1994 = vunpack.c.l.b16 %v904
      %v1995 = vunpack.c.l.b16 %v905
      %v1996 = vunpack.c.l.b16 %v906
      %v1997 = vunpack.c.l.b16 %v907
      %v1998 = vunpack.c.l.b16 %v908
      %v1999 = vunpack.c.l.b16 %v909
      %v2000 = vunpack.c.l.b16 %v910
      %v2001 = vunpack.c.l.b16 %v911
      %v2002 = vunpack.c.l.b16 %v912
      %v2003 = vunpack.c.l.b16 %v913
      %v2004 = vunpack.c.l.b16 %v914
      %v2005 = vunpack.c.l.b16 %v915
      %v2006 = vunpack.c.l.b16 %v916
      %v2007 = vunpack.c.l.b16 %v917
      %v2008 = vunpack.c.l.b16 %v918
      %v2009 = vunpack.c.l.b16 %v919
      %v2010 = vunpack.c.l.b16 %v920
      %v2011 = vunpack.c.l.b16 %v921
      %v2012 = vunpack.c.l.b16 %v922
      %v2013 = vpack.c.b16 %v1982, %v1981
      %v2014 = vpack.c.b16 %v1984, %v1983
      %v2015 = vpack.c.b16 %v1986, %v1985
      %v2016 = vpack.c.b16 %v1988, %v1987
      %v2017 = vpack.c.b16 %v1990, %v1989
      %v2018 = vpack.c.b16 %v1992, %v1991
      %v2019 = vpack.c.b16 %v1994, %v1993
      %v2020 = vpack.c.b16 %v1996, %v1995
      %v2021 = vpack.c.b16 %v1998, %v1997
      %v2022 = vpack.c.b16 %v2000, %v1999
      %v2023 = vpack.c.b16 %v2002, %v2001
      %v2024 = vpack.c.b16 %v2004, %v2003
      %v2025 = vpack.c.b16 %v2006, %v2005
      %v2026 = vpack.c.b16 %v2008, %v2007
      %v2027 = vpack.c.b16 %v2010, %v2009
      %v2028 = vpack.c.b16 %v2012, %v2011
      %2029 = vrot.lane.b32.xlu0 %v2013, 24
      %v2030 = vpop.permute.xlu0 %2029
      %2031 = vrot.lane.b32.xlu0 %v2014, 24
      %v2032 = vpop.permute.xlu0 %2031
      %2033 = vrot.lane.b32.xlu0 %v2015, 24
      %v2034 = vpop.permute.xlu0 %2033
      %2035 = vrot.lane.b32.xlu0 %v2016, 24
      %v2036 = vpop.permute.xlu0 %2035
      %2037 = vrot.lane.b32.xlu0 %v2017, 24
      %v2038 = vpop.permute.xlu0 %2037
      %2039 = vrot.lane.b32.xlu0 %v2018, 24
      %v2040 = vpop.permute.xlu0 %2039
      %2041 = vrot.lane.b32.xlu0 %v2019, 24
      %v2042 = vpop.permute.xlu0 %2041
      %2043 = vrot.lane.b32.xlu0 %v2020, 24
      %v2044 = vpop.permute.xlu0 %2043
      %2045 = vrot.lane.b32.xlu0 %v2021, 24
      %v2046 = vpop.permute.xlu0 %2045
      %2047 = vrot.lane.b32.xlu0 %v2022, 24
      %v2048 = vpop.permute.xlu0 %2047
      %2049 = vrot.lane.b32.xlu0 %v2023, 24
      %v2050 = vpop.permute.xlu0 %2049
      %2051 = vrot.lane.b32.xlu0 %v2024, 24
      %v2052 = vpop.permute.xlu0 %2051
      %2053 = vrot.lane.b32.xlu0 %v2025, 24
      %v2054 = vpop.permute.xlu0 %2053
      %2055 = vrot.lane.b32.xlu0 %v2026, 24
      %v2056 = vpop.permute.xlu0 %2055
      %2057 = vrot.lane.b32.xlu0 %v2027, 24
      %v2058 = vpop.permute.xlu0 %2057
      %2059 = vrot.lane.b32.xlu0 %v2028, 24
      %v2060 = vpop.permute.xlu0 %2059
      %v2077 = vunpack.c.l.b16 %v923
      %v2078 = vunpack.c.l.b16 %v924
      %v2079 = vunpack.c.l.b16 %v925
      %v2080 = vunpack.c.l.b16 %v926
      %v2081 = vunpack.c.l.b16 %v927
      %v2082 = vunpack.c.l.b16 %v928
      %v2083 = vunpack.c.l.b16 %v929
      %v2084 = vunpack.c.l.b16 %v930
      %v2085 = vunpack.c.l.b16 %v931
      %v2086 = vunpack.c.l.b16 %v932
      %v2087 = vunpack.c.l.b16 %v933
      %v2088 = vunpack.c.l.b16 %v934
      %v2089 = vunpack.c.l.b16 %v935
      %v2090 = vunpack.c.l.b16 %v936
      %v2091 = vunpack.c.l.b16 %v937
      %v2092 = vunpack.c.l.b16 %v938
      %v2093 = vpack.c.b16 %v2077, %v2077
      %v2094 = vpack.c.b16 %v2078, %v2078
      %v2095 = vpack.c.b16 %v2079, %v2079
      %v2096 = vpack.c.b16 %v2080, %v2080
      %v2097 = vpack.c.b16 %v2081, %v2081
      %v2098 = vpack.c.b16 %v2082, %v2082
      %v2099 = vpack.c.b16 %v2083, %v2083
      %v2100 = vpack.c.b16 %v2084, %v2084
      %v2101 = vpack.c.b16 %v2085, %v2085
      %v2102 = vpack.c.b16 %v2086, %v2086
      %v2103 = vpack.c.b16 %v2087, %v2087
      %v2104 = vpack.c.b16 %v2088, %v2088
      %v2105 = vpack.c.b16 %v2089, %v2089
      %v2106 = vpack.c.b16 %v2090, %v2090
      %v2107 = vpack.c.b16 %v2091, %v2091
      %v2108 = vpack.c.b16 %v2092, %v2092
      %v2110 = vshrl.u32 %v2013, 16
      %v2112 = vshll.u32 %v2013, 16
      %v2114 = vrot.slane %v2112, 1
      %v2115 = vor.u32 %v2110, %v2114
      %v2117 = vshll.u32 %v2093, 16
      %v2119 = vrot.slane %v2117, 1
      %v2120 = vsel %vm1083, %v2115, %v2119
      %v2122 = vshrl.u32 %v2014, 16
      %v2124 = vshll.u32 %v2014, 16
      %v2126 = vrot.slane %v2124, 1
      %v2127 = vor.u32 %v2122, %v2126
      %v2129 = vshll.u32 %v2094, 16
      %v2131 = vrot.slane %v2129, 1
      %v2132 = vsel %vm1083, %v2127, %v2131
      %v2134 = vshrl.u32 %v2015, 16
      %v2136 = vshll.u32 %v2015, 16
      %v2138 = vrot.slane %v2136, 1
      %v2139 = vor.u32 %v2134, %v2138
      %v2141 = vshll.u32 %v2095, 16
      %v2143 = vrot.slane %v2141, 1
      %v2144 = vsel %vm1083, %v2139, %v2143
      %v2146 = vshrl.u32 %v2016, 16
      %v2148 = vshll.u32 %v2016, 16
      %v2150 = vrot.slane %v2148, 1
      %v2151 = vor.u32 %v2146, %v2150
      %v2153 = vshll.u32 %v2096, 16
      %v2155 = vrot.slane %v2153, 1
      %v2156 = vsel %vm1083, %v2151, %v2155
      %v2158 = vshrl.u32 %v2017, 16
      %v2160 = vshll.u32 %v2017, 16
      %v2162 = vrot.slane %v2160, 1
      %v2163 = vor.u32 %v2158, %v2162
      %v2165 = vshll.u32 %v2097, 16
      %v2167 = vrot.slane %v2165, 1
      %v2168 = vsel %vm1083, %v2163, %v2167
      %v2170 = vshrl.u32 %v2018, 16
      %v2172 = vshll.u32 %v2018, 16
      %v2174 = vrot.slane %v2172, 1
      %v2175 = vor.u32 %v2170, %v2174
      %v2177 = vshll.u32 %v2098, 16
      %v2179 = vrot.slane %v2177, 1
      %v2180 = vsel %vm1083, %v2175, %v2179
      %v2182 = vshrl.u32 %v2019, 16
      %v2184 = vshll.u32 %v2019, 16
      %v2186 = vrot.slane %v2184, 1
      %v2187 = vor.u32 %v2182, %v2186
      %v2189 = vshll.u32 %v2099, 16
      %v2191 = vrot.slane %v2189, 1
      %v2192 = vsel %vm1083, %v2187, %v2191
      %v2194 = vshrl.u32 %v2020, 16
      %v2196 = vshll.u32 %v2020, 16
      %v2198 = vrot.slane %v2196, 1
      %v2199 = vor.u32 %v2194, %v2198
      %v2201 = vshll.u32 %v2100, 16
      %v2203 = vrot.slane %v2201, 1
      %v2204 = vsel %vm1083, %v2199, %v2203
      %v2206 = vshrl.u32 %v2021, 16
      %v2208 = vshll.u32 %v2021, 16
      %v2210 = vrot.slane %v2208, 1
      %v2211 = vor.u32 %v2206, %v2210
      %v2213 = vshll.u32 %v2101, 16
      %v2215 = vrot.slane %v2213, 1
      %v2216 = vsel %vm1083, %v2211, %v2215
      %v2218 = vshrl.u32 %v2022, 16
      %v2220 = vshll.u32 %v2022, 16
      %v2222 = vrot.slane %v2220, 1
      %v2223 = vor.u32 %v2218, %v2222
      %v2225 = vshll.u32 %v2102, 16
      %v2227 = vrot.slane %v2225, 1
      %v2228 = vsel %vm1083, %v2223, %v2227
      %v2230 = vshrl.u32 %v2023, 16
      %v2232 = vshll.u32 %v2023, 16
      %v2234 = vrot.slane %v2232, 1
      %v2235 = vor.u32 %v2230, %v2234
      %v2237 = vshll.u32 %v2103, 16
      %v2239 = vrot.slane %v2237, 1
      %v2240 = vsel %vm1083, %v2235, %v2239
      %v2242 = vshrl.u32 %v2024, 16
      %v2244 = vshll.u32 %v2024, 16
      %v2246 = vrot.slane %v2244, 1
      %v2247 = vor.u32 %v2242, %v2246
      %v2249 = vshll.u32 %v2104, 16
      %v2251 = vrot.slane %v2249, 1
      %v2252 = vsel %vm1083, %v2247, %v2251
      %v2254 = vshrl.u32 %v2025, 16
      %v2256 = vshll.u32 %v2025, 16
      %v2258 = vrot.slane %v2256, 1
      %v2259 = vor.u32 %v2254, %v2258
      %v2261 = vshll.u32 %v2105, 16
      %v2263 = vrot.slane %v2261, 1
      %v2264 = vsel %vm1083, %v2259, %v2263
      %v2266 = vshrl.u32 %v2026, 16
      %v2268 = vshll.u32 %v2026, 16
      %v2270 = vrot.slane %v2268, 1
      %v2271 = vor.u32 %v2266, %v2270
      %v2273 = vshll.u32 %v2106, 16
      %v2275 = vrot.slane %v2273, 1
      %v2276 = vsel %vm1083, %v2271, %v2275
      %v2278 = vshrl.u32 %v2027, 16
      %v2280 = vshll.u32 %v2027, 16
      %v2282 = vrot.slane %v2280, 1
      %v2283 = vor.u32 %v2278, %v2282
      %v2285 = vshll.u32 %v2107, 16
      %v2287 = vrot.slane %v2285, 1
      %v2288 = vsel %vm1083, %v2283, %v2287
      %v2290 = vshrl.u32 %v2028, 16
      %v2292 = vshll.u32 %v2028, 16
      %v2294 = vrot.slane %v2292, 1
      %v2295 = vor.u32 %v2290, %v2294
      %v2297 = vshll.u32 %v2108, 16
      %v2299 = vrot.slane %v2297, 1
      %v2300 = vsel %vm1083, %v2295, %v2299
      %2301 = vrot.lane.b32.xlu0 %v2120, 28
      %v2302 = vpop.permute.xlu0 %2301
      %2303 = vrot.lane.b32.xlu0 %v2132, 28
      %v2304 = vpop.permute.xlu0 %2303
      %2305 = vrot.lane.b32.xlu0 %v2144, 28
      %v2306 = vpop.permute.xlu0 %2305
      %2307 = vrot.lane.b32.xlu0 %v2156, 28
      %v2308 = vpop.permute.xlu0 %2307
      %2309 = vrot.lane.b32.xlu0 %v2168, 28
      %v2310 = vpop.permute.xlu0 %2309
      %2311 = vrot.lane.b32.xlu0 %v2180, 28
      %v2312 = vpop.permute.xlu0 %2311
      %2313 = vrot.lane.b32.xlu0 %v2192, 28
      %v2314 = vpop.permute.xlu0 %2313
      %2315 = vrot.lane.b32.xlu0 %v2204, 28
      %v2316 = vpop.permute.xlu0 %2315
      %2317 = vrot.lane.b32.xlu0 %v2216, 28
      %v2318 = vpop.permute.xlu0 %2317
      %2319 = vrot.lane.b32.xlu0 %v2228, 28
      %v2320 = vpop.permute.xlu0 %2319
      %2321 = vrot.lane.b32.xlu0 %v2240, 28
      %v2322 = vpop.permute.xlu0 %2321
      %2323 = vrot.lane.b32.xlu0 %v2252, 28
      %v2324 = vpop.permute.xlu0 %2323
      %2325 = vrot.lane.b32.xlu0 %v2264, 28
      %v2326 = vpop.permute.xlu0 %2325
      %2327 = vrot.lane.b32.xlu0 %v2276, 28
      %v2328 = vpop.permute.xlu0 %2327
      %2329 = vrot.lane.b32.xlu0 %v2288, 28
      %v2330 = vpop.permute.xlu0 %2329
      %2331 = vrot.lane.b32.xlu0 %v2300, 28
      %v2332 = vpop.permute.xlu0 %2331
      %v2349 = vunpack.c.l.b16 %v939
      %v2350 = vunpack.c.l.b16 %v940
      %v2351 = vunpack.c.l.b16 %v941
      %v2352 = vunpack.c.l.b16 %v942
      %v2353 = vunpack.c.l.b16 %v943
      %v2354 = vunpack.c.l.b16 %v944
      %v2355 = vunpack.c.l.b16 %v945
      %v2356 = vunpack.c.l.b16 %v946
      %v2357 = vunpack.c.l.b16 %v947
      %v2358 = vunpack.c.l.b16 %v948
      %v2359 = vunpack.c.l.b16 %v949
      %v2360 = vunpack.c.l.b16 %v950
      %v2361 = vunpack.c.l.b16 %v951
      %v2362 = vunpack.c.l.b16 %v952
      %v2363 = vunpack.c.l.b16 %v953
      %v2364 = vunpack.c.l.b16 %v954
      %v2365 = vpack.c.b16 %v1982, %v2349
      %v2366 = vpack.c.b16 %v1984, %v2350
      %v2367 = vpack.c.b16 %v1986, %v2351
      %v2368 = vpack.c.b16 %v1988, %v2352
      %v2369 = vpack.c.b16 %v1990, %v2353
      %v2370 = vpack.c.b16 %v1992, %v2354
      %v2371 = vpack.c.b16 %v1994, %v2355
      %v2372 = vpack.c.b16 %v1996, %v2356
      %v2373 = vpack.c.b16 %v1998, %v2357
      %v2374 = vpack.c.b16 %v2000, %v2358
      %v2375 = vpack.c.b16 %v2002, %v2359
      %v2376 = vpack.c.b16 %v2004, %v2360
      %v2377 = vpack.c.b16 %v2006, %v2361
      %v2378 = vpack.c.b16 %v2008, %v2362
      %v2379 = vpack.c.b16 %v2010, %v2363
      %v2380 = vpack.c.b16 %v2012, %v2364
      %v2381 = vrot.slane %v2365, 1
      %v2382 = vrot.slane %v2093, 1
      %v2383 = vsel %vm1356, %v2381, %v2382
      %v2384 = vrot.slane %v2366, 1
      %v2385 = vrot.slane %v2094, 1
      %v2386 = vsel %vm1356, %v2384, %v2385
      %v2387 = vrot.slane %v2367, 1
      %v2388 = vrot.slane %v2095, 1
      %v2389 = vsel %vm1356, %v2387, %v2388
      %v2390 = vrot.slane %v2368, 1
      %v2391 = vrot.slane %v2096, 1
      %v2392 = vsel %vm1356, %v2390, %v2391
      %v2393 = vrot.slane %v2369, 1
      %v2394 = vrot.slane %v2097, 1
      %v2395 = vsel %vm1356, %v2393, %v2394
      %v2396 = vrot.slane %v2370, 1
      %v2397 = vrot.slane %v2098, 1
      %v2398 = vsel %vm1356, %v2396, %v2397
      %v2399 = vrot.slane %v2371, 1
      %v2400 = vrot.slane %v2099, 1
      %v2401 = vsel %vm1356, %v2399, %v2400
      %v2402 = vrot.slane %v2372, 1
      %v2403 = vrot.slane %v2100, 1
      %v2404 = vsel %vm1356, %v2402, %v2403
      %v2405 = vrot.slane %v2373, 1
      %v2406 = vrot.slane %v2101, 1
      %v2407 = vsel %vm1356, %v2405, %v2406
      %v2408 = vrot.slane %v2374, 1
      %v2409 = vrot.slane %v2102, 1
      %v2410 = vsel %vm1356, %v2408, %v2409
      %v2411 = vrot.slane %v2375, 1
      %v2412 = vrot.slane %v2103, 1
      %v2413 = vsel %vm1356, %v2411, %v2412
      %v2414 = vrot.slane %v2376, 1
      %v2415 = vrot.slane %v2104, 1
      %v2416 = vsel %vm1356, %v2414, %v2415
      %v2417 = vrot.slane %v2377, 1
      %v2418 = vrot.slane %v2105, 1
      %v2419 = vsel %vm1356, %v2417, %v2418
      %v2420 = vrot.slane %v2378, 1
      %v2421 = vrot.slane %v2106, 1
      %v2422 = vsel %vm1356, %v2420, %v2421
      %v2423 = vrot.slane %v2379, 1
      %v2424 = vrot.slane %v2107, 1
      %v2425 = vsel %vm1356, %v2423, %v2424
      %v2426 = vrot.slane %v2380, 1
      %v2427 = vrot.slane %v2108, 1
      %v2428 = vsel %vm1356, %v2426, %v2427
      %2429 = vrot.lane.b32.xlu0 %v2383, 32
      %v2430 = vpop.permute.xlu0 %2429
      %2431 = vrot.lane.b32.xlu0 %v2386, 32
      %v2432 = vpop.permute.xlu0 %2431
      %2433 = vrot.lane.b32.xlu0 %v2389, 32
      %v2434 = vpop.permute.xlu0 %2433
      %2435 = vrot.lane.b32.xlu0 %v2392, 32
      %v2436 = vpop.permute.xlu0 %2435
      %2437 = vrot.lane.b32.xlu0 %v2395, 32
      %v2438 = vpop.permute.xlu0 %2437
      %2439 = vrot.lane.b32.xlu0 %v2398, 32
      %v2440 = vpop.permute.xlu0 %2439
      %2441 = vrot.lane.b32.xlu0 %v2401, 32
      %v2442 = vpop.permute.xlu0 %2441
      %2443 = vrot.lane.b32.xlu0 %v2404, 32
      %v2444 = vpop.permute.xlu0 %2443
      %2445 = vrot.lane.b32.xlu0 %v2407, 32
      %v2446 = vpop.permute.xlu0 %2445
      %2447 = vrot.lane.b32.xlu0 %v2410, 32
      %v2448 = vpop.permute.xlu0 %2447
      %2449 = vrot.lane.b32.xlu0 %v2413, 32
      %v2450 = vpop.permute.xlu0 %2449
      %2451 = vrot.lane.b32.xlu0 %v2416, 32
      %v2452 = vpop.permute.xlu0 %2451
      %2453 = vrot.lane.b32.xlu0 %v2419, 32
      %v2454 = vpop.permute.xlu0 %2453
      %2455 = vrot.lane.b32.xlu0 %v2422, 32
      %v2456 = vpop.permute.xlu0 %2455
      %2457 = vrot.lane.b32.xlu0 %v2425, 32
      %v2458 = vpop.permute.xlu0 %2457
      %2459 = vrot.lane.b32.xlu0 %v2428, 32
      %v2460 = vpop.permute.xlu0 %2459
      %vm2461 = vcmask 31744
      %v2463 = vsel %vm2461, %v1019, %v1277
      %v2465 = vsel %vm2461, %v1020, %v1279
      %v2467 = vsel %vm2461, %v1021, %v1281
      %v2469 = vsel %vm2461, %v1022, %v1283
      %v2471 = vsel %vm2461, %v1023, %v1285
      %v2473 = vsel %vm2461, %v1024, %v1287
      %v2475 = vsel %vm2461, %v1025, %v1289
      %v2477 = vsel %vm2461, %v1026, %v1291
      %v2479 = vsel %vm2461, %v1027, %v1293
      %v2481 = vsel %vm2461, %v1028, %v1295
      %v2483 = vsel %vm2461, %v1029, %v1297
      %v2485 = vsel %vm2461, %v1030, %v1299
      %v2487 = vsel %vm2461, %v1031, %v1301
      %v2489 = vsel %vm2461, %v1032, %v1303
      %v2491 = vsel %vm2461, %v1033, %v1305
      %v2493 = vsel %vm2461, %v1034, %v1307
      %vm2494 = vcmask 64512
      %v2496 = vsel %vm2494, %v2463, %v1406
      %v2498 = vsel %vm2494, %v2465, %v1408
      %v2500 = vsel %vm2494, %v2467, %v1410
      %v2502 = vsel %vm2494, %v2469, %v1412
      %v2504 = vsel %vm2494, %v2471, %v1414
      %v2506 = vsel %vm2494, %v2473, %v1416
      %v2508 = vsel %vm2494, %v2475, %v1418
      %v2510 = vsel %vm2494, %v2477, %v1420
      %v2512 = vsel %vm2494, %v2479, %v1422
      %v2514 = vsel %vm2494, %v2481, %v1424
      %v2516 = vsel %vm2494, %v2483, %v1426
      %v2518 = vsel %vm2494, %v2485, %v1428
      %v2520 = vsel %vm2494, %v2487, %v1430
      %v2522 = vsel %vm2494, %v2489, %v1432
      %v2524 = vsel %vm2494, %v2491, %v1434
      %v2526 = vsel %vm2494, %v2493, %v1436
      %vm2527 = vcmask 97280
      %v2529 = vsel %vm2527, %v2496, %v1518
      %v2531 = vsel %vm2527, %v2498, %v1520
      %v2533 = vsel %vm2527, %v2500, %v1522
      %v2535 = vsel %vm2527, %v2502, %v1524
      %v2537 = vsel %vm2527, %v2504, %v1526
      %v2539 = vsel %vm2527, %v2506, %v1528
      %v2541 = vsel %vm2527, %v2508, %v1530
      %v2543 = vsel %vm2527, %v2510, %v1532
      %v2545 = vsel %vm2527, %v2512, %v1534
      %v2547 = vsel %vm2527, %v2514, %v1536
      %v2549 = vsel %vm2527, %v2516, %v1538
      %v2551 = vsel %vm2527, %v2518, %v1540
      %v2553 = vsel %vm2527, %v2520, %v1542
      %v2555 = vsel %vm2527, %v2522, %v1544
      %v2557 = vsel %vm2527, %v2524, %v1546
      %v2559 = vsel %vm2527, %v2526, %v1548
      %vm2560 = vcmask 130048
      %v2562 = vsel %vm2560, %v2529, %v1790
      %v2564 = vsel %vm2560, %v2531, %v1792
      %v2566 = vsel %vm2560, %v2533, %v1794
      %v2568 = vsel %vm2560, %v2535, %v1796
      %v2570 = vsel %vm2560, %v2537, %v1798
      %v2572 = vsel %vm2560, %v2539, %v1800
      %v2574 = vsel %vm2560, %v2541, %v1802
      %v2576 = vsel %vm2560, %v2543, %v1804
      %v2578 = vsel %vm2560, %v2545, %v1806
      %v2580 = vsel %vm2560, %v2547, %v1808
      %v2582 = vsel %vm2560, %v2549, %v1810
      %v2584 = vsel %vm2560, %v2551, %v1812
      %v2586 = vsel %vm2560, %v2553, %v1814
      %v2588 = vsel %vm2560, %v2555, %v1816
      %v2590 = vsel %vm2560, %v2557, %v1818
      %v2592 = vsel %vm2560, %v2559, %v1820
      %vm2593 = vcmask 162816
      %v2595 = vsel %vm2593, %v2562, %v1918
      %v2597 = vsel %vm2593, %v2564, %v1920
      %v2599 = vsel %vm2593, %v2566, %v1922
      %v2601 = vsel %vm2593, %v2568, %v1924
      %v2603 = vsel %vm2593, %v2570, %v1926
      %v2605 = vsel %vm2593, %v2572, %v1928
      %v2607 = vsel %vm2593, %v2574, %v1930
      %v2609 = vsel %vm2593, %v2576, %v1932
      %v2611 = vsel %vm2593, %v2578, %v1934
      %v2613 = vsel %vm2593, %v2580, %v1936
      %v2615 = vsel %vm2593, %v2582, %v1938
      %v2617 = vsel %vm2593, %v2584, %v1940
      %v2619 = vsel %vm2593, %v2586, %v1942
      %v2621 = vsel %vm2593, %v2588, %v1944
      %v2623 = vsel %vm2593, %v2590, %v1946
      %v2625 = vsel %vm2593, %v2592, %v1948
      %vm2626 = vcmask 195584
      %v2628 = vsel %vm2626, %v2595, %v2030
      %v2630 = vsel %vm2626, %v2597, %v2032
      %v2632 = vsel %vm2626, %v2599, %v2034
      %v2634 = vsel %vm2626, %v2601, %v2036
      %v2636 = vsel %vm2626, %v2603, %v2038
      %v2638 = vsel %vm2626, %v2605, %v2040
      %v2640 = vsel %vm2626, %v2607, %v2042
      %v2642 = vsel %vm2626, %v2609, %v2044
      %v2644 = vsel %vm2626, %v2611, %v2046
      %v2646 = vsel %vm2626, %v2613, %v2048
      %v2648 = vsel %vm2626, %v2615, %v2050
      %v2650 = vsel %vm2626, %v2617, %v2052
      %v2652 = vsel %vm2626, %v2619, %v2054
      %v2654 = vsel %vm2626, %v2621, %v2056
      %v2656 = vsel %vm2626, %v2623, %v2058
      %v2658 = vsel %vm2626, %v2625, %v2060
      %vm2659 = vcmask 228352
      %v2661 = vsel %vm2659, %v2628, %v2302
      %v2663 = vsel %vm2659, %v2630, %v2304
      %v2665 = vsel %vm2659, %v2632, %v2306
      %v2667 = vsel %vm2659, %v2634, %v2308
      %v2669 = vsel %vm2659, %v2636, %v2310
      %v2671 = vsel %vm2659, %v2638, %v2312
      %v2673 = vsel %vm2659, %v2640, %v2314
      %v2675 = vsel %vm2659, %v2642, %v2316
      %v2677 = vsel %vm2659, %v2644, %v2318
      %v2679 = vsel %vm2659, %v2646, %v2320
      %v2681 = vsel %vm2659, %v2648, %v2322
      %v2683 = vsel %vm2659, %v2650, %v2324
      %v2685 = vsel %vm2659, %v2652, %v2326
      %v2687 = vsel %vm2659, %v2654, %v2328
      %v2689 = vsel %vm2659, %v2656, %v2330
      %v2691 = vsel %vm2659, %v2658, %v2332
      %vm2692 = vcmask 261120
      %v2694 = vsel %vm2692, %v2661, %v2430
      %v2696 = vsel %vm2692, %v2663, %v2432
      %v2698 = vsel %vm2692, %v2665, %v2434
      %v2700 = vsel %vm2692, %v2667, %v2436
      %v2702 = vsel %vm2692, %v2669, %v2438
      %v2704 = vsel %vm2692, %v2671, %v2440
      %v2706 = vsel %vm2692, %v2673, %v2442
      %v2708 = vsel %vm2692, %v2675, %v2444
      %v2710 = vsel %vm2692, %v2677, %v2446
      %v2712 = vsel %vm2692, %v2679, %v2448
      %v2714 = vsel %vm2692, %v2681, %v2450
      %v2716 = vsel %vm2692, %v2683, %v2452
      %v2718 = vsel %vm2692, %v2685, %v2454
      %v2720 = vsel %vm2692, %v2687, %v2456
      %v2722 = vsel %vm2692, %v2689, %v2458
      %v2724 = vsel %vm2692, %v2691, %v2460
      %v2725 = vld [vmem:[%s3] sm:$0xf]
      %v2726 = vld [vmem:[%s3 + $0x4] sm:$0xf]
      %v2727 = vld [vmem:[%s3 + $0x8] sm:$0xf]
      %v2728 = vld [vmem:[%s3 + $0xc] sm:$0xf]
      %v2729 = vld [vmem:[%s3 + $0x10] sm:$0x3]
      %v2735 = vunpack.c.l.b16 %v2725
      %v2736 = vunpack.c.l.b16 %v2726
      %v2737 = vunpack.c.l.b16 %v2727
      %v2738 = vunpack.c.l.b16 %v2728
      %v2739 = vunpack.c.l.b16 %v2729
      %v2740 = vpack.c.b16 %v2736, %v2735
      %v2741 = vpack.c.b16 %v2738, %v2737
      %v2742 = vpack.c.b16 %v2739, %v2739
      %vm2745 = vcmask 293888
      %v2746 = vsel %vm2745, %v2694, 0
      %v2748 = vsel %vm2745, %v2696, 0
      %v2750 = vsel %vm2745, %v2698, 0
      %v2752 = vsel %vm2745, %v2700, 0
      %v2754 = vsel %vm2745, %v2702, 0
      %v2756 = vsel %vm2745, %v2704, 0
      %v2758 = vsel %vm2745, %v2706, 0
      %v2760 = vsel %vm2745, %v2708, 0
      %v2762 = vsel %vm2745, %v2710, 0
      %v2764 = vsel %vm2745, %v2712, 0
      %v2766 = vsel %vm2745, %v2714, 0
      %v2768 = vsel %vm2745, %v2716, 0
      %v2770 = vsel %vm2745, %v2718, 0
      %v2772 = vsel %vm2745, %v2720, 0
      %v2774 = vsel %vm2745, %v2722, 0
      %v2776 = vsel %vm2745, %v2724, 0
      %vm2778 = vcmask 1041408
      %v2780 = vsel %vm2778, %v2742, 0
      %2782 = vmatpush.bf16.msra.mxu0 0
      %2783 = vmatpush.bf16.msra.mxu0 0
      %2784 = vmatpush.bf16.msra.mxu0 0
      %2785 = vmatpush.bf16.msra.mxu0 0
      %2786 = vmatpush.bf16.msra.mxu0 0
      %2787 = vmatpush.bf16.msra.mxu0 %v2780
      %2788 = vmatpush.bf16.msra.mxu0 %v2741
      %2789 = vmatpush.bf16.msra.mxu0 %v2740
      %2790 = vmatmul.bf16.gmra.mxu0 %v2746
      %v2791 = vpop.f32.mrf.mxu0
      %v2792 = vadd.f32 0.0, %v2791
      %v2793 = vpop.f32.mrf.mxu0
      %v2794 = vadd.f32 0.0, %v2793
      %2795 = vmatmul.bf16.gmra.mxu0 %v2748
      %v2796 = vpop.f32.mrf.mxu0
      %v2797 = vadd.f32 0.0, %v2796
      %v2798 = vpop.f32.mrf.mxu0
      %v2799 = vadd.f32 0.0, %v2798
      %2800 = vmatmul.bf16.gmra.mxu0 %v2750
      %v2801 = vpop.f32.mrf.mxu0
      %v2802 = vadd.f32 0.0, %v2801
      %v2803 = vpop.f32.mrf.mxu0
      %v2804 = vadd.f32 0.0, %v2803
      %2805 = vmatmul.bf16.gmra.mxu0 %v2752
      %v2806 = vpop.f32.mrf.mxu0
      %v2807 = vadd.f32 0.0, %v2806
      %v2808 = vpop.f32.mrf.mxu0
      %v2809 = vadd.f32 0.0, %v2808
      %2810 = vmatmul.bf16.gmra.mxu0 %v2754
      %v2811 = vpop.f32.mrf.mxu0
      %v2812 = vadd.f32 0.0, %v2811
      %v2813 = vpop.f32.mrf.mxu0
      %v2814 = vadd.f32 0.0, %v2813
      %2815 = vmatmul.bf16.gmra.mxu0 %v2756
      %v2816 = vpop.f32.mrf.mxu0
      %v2817 = vadd.f32 0.0, %v2816
      %v2818 = vpop.f32.mrf.mxu0
      %v2819 = vadd.f32 0.0, %v2818
      %2820 = vmatmul.bf16.gmra.mxu0 %v2758
      %v2821 = vpop.f32.mrf.mxu0
      %v2822 = vadd.f32 0.0, %v2821
      %v2823 = vpop.f32.mrf.mxu0
      %v2824 = vadd.f32 0.0, %v2823
      %2825 = vmatmul.bf16.gmra.mxu0 %v2760
      %v2826 = vpop.f32.mrf.mxu0
      %v2827 = vadd.f32 0.0, %v2826
      %v2828 = vpop.f32.mrf.mxu0
      %v2829 = vadd.f32 0.0, %v2828
      %2830 = vmatmul.bf16.gmra.mxu0 %v2762
      %v2831 = vpop.f32.mrf.mxu0
      %v2832 = vadd.f32 0.0, %v2831
      %v2833 = vpop.f32.mrf.mxu0
      %v2834 = vadd.f32 0.0, %v2833
      %2835 = vmatmul.bf16.gmra.mxu0 %v2764
      %v2836 = vpop.f32.mrf.mxu0
      %v2837 = vadd.f32 0.0, %v2836
      %v2838 = vpop.f32.mrf.mxu0
      %v2839 = vadd.f32 0.0, %v2838
      %2840 = vmatmul.bf16.gmra.mxu0 %v2766
      %v2841 = vpop.f32.mrf.mxu0
      %v2842 = vadd.f32 0.0, %v2841
      %v2843 = vpop.f32.mrf.mxu0
      %v2844 = vadd.f32 0.0, %v2843
      %2845 = vmatmul.bf16.gmra.mxu0 %v2768
      %v2846 = vpop.f32.mrf.mxu0
      %v2847 = vadd.f32 0.0, %v2846
      %v2848 = vpop.f32.mrf.mxu0
      %v2849 = vadd.f32 0.0, %v2848
      %2850 = vmatmul.bf16.gmra.mxu0 %v2770
      %v2851 = vpop.f32.mrf.mxu0
      %v2852 = vadd.f32 0.0, %v2851
      %v2853 = vpop.f32.mrf.mxu0
      %v2854 = vadd.f32 0.0, %v2853
      %2855 = vmatmul.bf16.gmra.mxu0 %v2772
      %v2856 = vpop.f32.mrf.mxu0
      %v2857 = vadd.f32 0.0, %v2856
      %v2858 = vpop.f32.mrf.mxu0
      %v2859 = vadd.f32 0.0, %v2858
      %2860 = vmatmul.bf16.gmra.mxu0 %v2774
      %v2861 = vpop.f32.mrf.mxu0
      %v2862 = vadd.f32 0.0, %v2861
      %v2863 = vpop.f32.mrf.mxu0
      %v2864 = vadd.f32 0.0, %v2863
      %2865 = vmatmul.bf16.gmra.mxu0 %v2776
      %v2866 = vpop.f32.mrf.mxu0
      %v2867 = vadd.f32 0.0, %v2866
      %v2868 = vpop.f32.mrf.mxu0
      %v2869 = vadd.f32 0.0, %v2868
      %2870 = vdwg.mxu0
      %v2871 = vsel %vm2494, %v2792, 0.0
      %v2872 = vsel %vm2494, %v2794, 0.0
      %v2873 = vadd.f32 %v2871, %v2872
      %v2874 = vsel %vm2494, %v2797, 0.0
      %v2875 = vadd.f32 %v2873, %v2874
      %v2876 = vsel %vm2494, %v2799, 0.0
      %v2877 = vadd.f32 %v2875, %v2876
      %v2878 = vsel %vm2494, %v2802, 0.0
      %v2879 = vadd.f32 %v2877, %v2878
      %v2880 = vsel %vm2494, %v2804, 0.0
      %v2881 = vadd.f32 %v2879, %v2880
      %v2882 = vsel %vm2494, %v2807, 0.0
      %v2883 = vadd.f32 %v2881, %v2882
      %v2884 = vsel %vm2494, %v2809, 0.0
      %v2885 = vadd.f32 %v2883, %v2884
      %v2886 = vsel %vm2494, %v2812, 0.0
      %v2887 = vadd.f32 %v2885, %v2886
      %v2888 = vsel %vm2494, %v2814, 0.0
      %v2889 = vadd.f32 %v2887, %v2888
      %v2890 = vsel %vm2494, %v2817, 0.0
      %v2891 = vadd.f32 %v2889, %v2890
      %v2892 = vsel %vm2494, %v2819, 0.0
      %v2893 = vadd.f32 %v2891, %v2892
      %v2894 = vsel %vm2494, %v2822, 0.0
      %v2895 = vadd.f32 %v2893, %v2894
      %v2896 = vsel %vm2494, %v2824, 0.0
      %v2897 = vadd.f32 %v2895, %v2896
      %v2898 = vsel %vm2494, %v2827, 0.0
      %v2899 = vadd.f32 %v2897, %v2898
      %v2900 = vsel %vm2494, %v2829, 0.0
      %v2901 = vadd.f32 %v2899, %v2900
      %v2902 = vsel %vm2494, %v2832, 0.0
      %v2903 = vadd.f32 %v2901, %v2902
      %v2904 = vsel %vm2494, %v2834, 0.0
      %v2905 = vadd.f32 %v2903, %v2904
      %v2906 = vsel %vm2494, %v2837, 0.0
      %v2907 = vadd.f32 %v2905, %v2906
      %v2908 = vsel %vm2494, %v2839, 0.0
      %v2909 = vadd.f32 %v2907, %v2908
      %v2910 = vsel %vm2494, %v2842, 0.0
      %v2911 = vadd.f32 %v2909, %v2910
      %v2912 = vsel %vm2494, %v2844, 0.0
      %v2913 = vadd.f32 %v2911, %v2912
      %v2914 = vsel %vm2494, %v2847, 0.0
      %v2915 = vadd.f32 %v2913, %v2914
      %v2916 = vsel %vm2494, %v2849, 0.0
      %v2917 = vadd.f32 %v2915, %v2916
      %v2918 = vsel %vm2494, %v2852, 0.0
      %v2919 = vadd.f32 %v2917, %v2918
      %v2920 = vsel %vm2494, %v2854, 0.0
      %v2921 = vadd.f32 %v2919, %v2920
      %v2922 = vsel %vm2494, %v2857, 0.0
      %v2923 = vadd.f32 %v2921, %v2922
      %v2924 = vsel %vm2494, %v2859, 0.0
      %v2925 = vadd.f32 %v2923, %v2924
      %v2926 = vsel %vm2494, %v2862, 0.0
      %v2927 = vadd.f32 %v2925, %v2926
      %v2928 = vsel %vm2494, %v2864, 0.0
      %v2929 = vadd.f32 %v2927, %v2928
      %v2930 = vsel %vm2494, %v2867, 0.0
      %v2931 = vadd.f32 %v2929, %v2930
      %v2932 = vsel %vm2494, %v2869, 0.0
      %v2933 = vadd.f32 %v2931, %v2932
      %v2934 = vrot.slane %v2933, 4
      %v2935 = vadd.f32 %v2933, %v2934
      %v2936 = vrot.slane %v2935, 2
      %v2937 = vadd.f32 %v2935, %v2936
      %v2938 = vrot.slane %v2937, 1
      %v2939 = vadd.f32 %v2937, %v2938
      %v2940 = vadd.f32 %v2939, 0.0
      %v2941 = vmul.f32 %v2792, %v2792
      %v2942 = vmul.f32 %v2794, %v2794
      %v2943 = vmul.f32 %v2797, %v2797
      %v2944 = vmul.f32 %v2799, %v2799
      %v2945 = vmul.f32 %v2802, %v2802
      %v2946 = vmul.f32 %v2804, %v2804
      %v2947 = vmul.f32 %v2807, %v2807
      %v2948 = vmul.f32 %v2809, %v2809
      %v2949 = vmul.f32 %v2812, %v2812
      %v2950 = vmul.f32 %v2814, %v2814
      %v2951 = vmul.f32 %v2817, %v2817
      %v2952 = vmul.f32 %v2819, %v2819
      %v2953 = vmul.f32 %v2822, %v2822
      %v2954 = vmul.f32 %v2824, %v2824
      %v2955 = vmul.f32 %v2827, %v2827
      %v2956 = vmul.f32 %v2829, %v2829
      %v2957 = vmul.f32 %v2832, %v2832
      %v2958 = vmul.f32 %v2834, %v2834
      %v2959 = vmul.f32 %v2837, %v2837
      %v2960 = vmul.f32 %v2839, %v2839
      %v2961 = vmul.f32 %v2842, %v2842
      %v2962 = vmul.f32 %v2844, %v2844
      %v2963 = vmul.f32 %v2847, %v2847
      %v2964 = vmul.f32 %v2849, %v2849
      %v2965 = vmul.f32 %v2852, %v2852
      %v2966 = vmul.f32 %v2854, %v2854
      %v2967 = vmul.f32 %v2857, %v2857
      %v2968 = vmul.f32 %v2859, %v2859
      %v2969 = vmul.f32 %v2862, %v2862
      %v2970 = vmul.f32 %v2864, %v2864
      %v2971 = vmul.f32 %v2867, %v2867
      %v2972 = vmul.f32 %v2869, %v2869
      %v2973 = vsel %vm2494, %v2941, 0.0
      %v2974 = vsel %vm2494, %v2942, 0.0
      %v2975 = vadd.f32 %v2973, %v2974
      %v2976 = vsel %vm2494, %v2943, 0.0
      %v2977 = vadd.f32 %v2975, %v2976
      %v2978 = vsel %vm2494, %v2944, 0.0
      %v2979 = vadd.f32 %v2977, %v2978
      %v2980 = vsel %vm2494, %v2945, 0.0
      %v2981 = vadd.f32 %v2979, %v2980
      %v2982 = vsel %vm2494, %v2946, 0.0
      %v2983 = vadd.f32 %v2981, %v2982
      %v2984 = vsel %vm2494, %v2947, 0.0
      %v2985 = vadd.f32 %v2983, %v2984
      %v2986 = vsel %vm2494, %v2948, 0.0
      %v2987 = vadd.f32 %v2985, %v2986
      %v2988 = vsel %vm2494, %v2949, 0.0
      %v2989 = vadd.f32 %v2987, %v2988
      %v2990 = vsel %vm2494, %v2950, 0.0
      %v2991 = vadd.f32 %v2989, %v2990
      %v2992 = vsel %vm2494, %v2951, 0.0
      %v2993 = vadd.f32 %v2991, %v2992
      %v2994 = vsel %vm2494, %v2952, 0.0
      %v2995 = vadd.f32 %v2993, %v2994
      %v2996 = vsel %vm2494, %v2953, 0.0
      %v2997 = vadd.f32 %v2995, %v2996
      %v2998 = vsel %vm2494, %v2954, 0.0
      %v2999 = vadd.f32 %v2997, %v2998
      %v3000 = vsel %vm2494, %v2955, 0.0
      %v3001 = vadd.f32 %v2999, %v3000
      %v3002 = vsel %vm2494, %v2956, 0.0
      %v3003 = vadd.f32 %v3001, %v3002
      %v3004 = vsel %vm2494, %v2957, 0.0
      %v3005 = vadd.f32 %v3003, %v3004
      %v3006 = vsel %vm2494, %v2958, 0.0
      %v3007 = vadd.f32 %v3005, %v3006
      %v3008 = vsel %vm2494, %v2959, 0.0
      %v3009 = vadd.f32 %v3007, %v3008
      %v3010 = vsel %vm2494, %v2960, 0.0
      %v3011 = vadd.f32 %v3009, %v3010
      %v3012 = vsel %vm2494, %v2961, 0.0
      %v3013 = vadd.f32 %v3011, %v3012
      %v3014 = vsel %vm2494, %v2962, 0.0
      %v3015 = vadd.f32 %v3013, %v3014
      %v3016 = vsel %vm2494, %v2963, 0.0
      %v3017 = vadd.f32 %v3015, %v3016
      %v3018 = vsel %vm2494, %v2964, 0.0
      %v3019 = vadd.f32 %v3017, %v3018
      %v3020 = vsel %vm2494, %v2965, 0.0
      %v3021 = vadd.f32 %v3019, %v3020
      %v3022 = vsel %vm2494, %v2966, 0.0
      %v3023 = vadd.f32 %v3021, %v3022
      %v3024 = vsel %vm2494, %v2967, 0.0
      %v3025 = vadd.f32 %v3023, %v3024
      %v3026 = vsel %vm2494, %v2968, 0.0
      %v3027 = vadd.f32 %v3025, %v3026
      %v3028 = vsel %vm2494, %v2969, 0.0
      %v3029 = vadd.f32 %v3027, %v3028
      %v3030 = vsel %vm2494, %v2970, 0.0
      %v3031 = vadd.f32 %v3029, %v3030
      %v3032 = vsel %vm2494, %v2971, 0.0
      %v3033 = vadd.f32 %v3031, %v3032
      %v3034 = vsel %vm2494, %v2972, 0.0
      %v3035 = vadd.f32 %v3033, %v3034
      %v3036 = vrot.slane %v3035, 4
      %v3037 = vadd.f32 %v3035, %v3036
      %v3038 = vrot.slane %v3037, 2
      %v3039 = vadd.f32 %v3037, %v3038
      %v3040 = vrot.slane %v3039, 1
      %v3041 = vadd.f32 %v3039, %v3040
      %v3042 = vadd.f32 %v3041, 0.0
      %v3043 = vpack.c.bf16 %v2792, %v2792
      %v3044 = vpack.c.bf16 %v2794, %v2794
      %v3045 = vpack.c.bf16 %v2797, %v2797
      %v3046 = vpack.c.bf16 %v2799, %v2799
      %v3047 = vpack.c.bf16 %v2802, %v2802
      %v3048 = vpack.c.bf16 %v2804, %v2804
      %v3049 = vpack.c.bf16 %v2807, %v2807
      %v3050 = vpack.c.bf16 %v2809, %v2809
      %v3051 = vpack.c.bf16 %v2812, %v2812
      %v3052 = vpack.c.bf16 %v2814, %v2814
      %v3053 = vpack.c.bf16 %v2817, %v2817
      %v3054 = vpack.c.bf16 %v2819, %v2819
      %v3055 = vpack.c.bf16 %v2822, %v2822
      %v3056 = vpack.c.bf16 %v2824, %v2824
      %v3057 = vpack.c.bf16 %v2827, %v2827
      %v3058 = vpack.c.bf16 %v2829, %v2829
      %v3059 = vpack.c.bf16 %v2832, %v2832
      %v3060 = vpack.c.bf16 %v2834, %v2834
      %v3061 = vpack.c.bf16 %v2837, %v2837
      %v3062 = vpack.c.bf16 %v2839, %v2839
      %v3063 = vpack.c.bf16 %v2842, %v2842
      %v3064 = vpack.c.bf16 %v2844, %v2844
      %v3065 = vpack.c.bf16 %v2847, %v2847
      %v3066 = vpack.c.bf16 %v2849, %v2849
      %v3067 = vpack.c.bf16 %v2852, %v2852
      %v3068 = vpack.c.bf16 %v2854, %v2854
      %v3069 = vpack.c.bf16 %v2857, %v2857
      %v3070 = vpack.c.bf16 %v2859, %v2859
      %v3071 = vpack.c.bf16 %v2862, %v2862
      %v3072 = vpack.c.bf16 %v2864, %v2864
      %v3073 = vpack.c.bf16 %v2867, %v2867
      %v3074 = vpack.c.bf16 %v2869, %v2869
      %vm3075 = vcmask 60416
      %3076 = vst.msk [vmem:[%s231] sm:$0xf] %vm3075, %v3043
      %3077 = vst.msk [vmem:[%s231 + $0x4] sm:$0xf] %vm3075, %v3044
      %3078 = vst.msk [vmem:[%s231 + $0x8] sm:$0xf] %vm3075, %v3045
      %3079 = vst.msk [vmem:[%s231 + $0xc] sm:$0xf] %vm3075, %v3046
      %3080 = vst.msk [vmem:[%s231 + $0x10] sm:$0xf] %vm3075, %v3047
      %3081 = vst.msk [vmem:[%s231 + $0x14] sm:$0xf] %vm3075, %v3048
      %3082 = vst.msk [vmem:[%s231 + $0x18] sm:$0xf] %vm3075, %v3049
      %3083 = vst.msk [vmem:[%s231 + $0x1c] sm:$0xf] %vm3075, %v3050
      %3084 = vst.msk [vmem:[%s231 + $0x20] sm:$0xf] %vm3075, %v3051
      %3085 = vst.msk [vmem:[%s231 + $0x24] sm:$0xf] %vm3075, %v3052
      %3086 = vst.msk [vmem:[%s231 + $0x28] sm:$0xf] %vm3075, %v3053
      %3087 = vst.msk [vmem:[%s231 + $0x2c] sm:$0xf] %vm3075, %v3054
      %3088 = vst.msk [vmem:[%s231 + $0x30] sm:$0xf] %vm3075, %v3055
      %3089 = vst.msk [vmem:[%s231 + $0x34] sm:$0xf] %vm3075, %v3056
      %3090 = vst.msk [vmem:[%s231 + $0x38] sm:$0xf] %vm3075, %v3057
      %3091 = vst.msk [vmem:[%s231 + $0x3c] sm:$0xf] %vm3075, %v3058
      %3092 = vst.msk [vmem:[%s231 + $0x40] sm:$0xf] %vm3075, %v3059
      %3093 = vst.msk [vmem:[%s231 + $0x44] sm:$0xf] %vm3075, %v3060
      %3094 = vst.msk [vmem:[%s231 + $0x48] sm:$0xf] %vm3075, %v3061
      %3095 = vst.msk [vmem:[%s231 + $0x4c] sm:$0xf] %vm3075, %v3062
      %3096 = vst.msk [vmem:[%s231 + $0x50] sm:$0xf] %vm3075, %v3063
      %3097 = vst.msk [vmem:[%s231 + $0x54] sm:$0xf] %vm3075, %v3064
      %3098 = vst.msk [vmem:[%s231 + $0x58] sm:$0xf] %vm3075, %v3065
      %3099 = vst.msk [vmem:[%s231 + $0x5c] sm:$0xf] %vm3075, %v3066
      %3100 = vst.msk [vmem:[%s231 + $0x60] sm:$0xf] %vm3075, %v3067
      %3101 = vst.msk [vmem:[%s231 + $0x64] sm:$0xf] %vm3075, %v3068
      %3102 = vst.msk [vmem:[%s231 + $0x68] sm:$0xf] %vm3075, %v3069
      %3103 = vst.msk [vmem:[%s231 + $0x6c] sm:$0xf] %vm3075, %v3070
      %3104 = vst.msk [vmem:[%s231 + $0x70] sm:$0xf] %vm3075, %v3071
      %3105 = vst.msk [vmem:[%s231 + $0x74] sm:$0xf] %vm3075, %v3072
      %3106 = vst.msk [vmem:[%s231 + $0x78] sm:$0xf] %vm3075, %v3073
      %3107 = vst.msk [vmem:[%s231 + $0x7c] sm:$0xf] %vm3075, %v3074
      %vm3108 = vcmask 1040384
      %v3109 = vsel %vm3108, %v2940, %v3042
      %v3110 = vsel %vm2778, %v3109, 0.0
      %3111 = vst.msk [vmem:[%s235] sm:$0xff] %vm2494, %v3110
      %p3112 = scmp.lt.s32.totalorder %s17, 1
      %s3113 = scalar_select %p3112, %s17, 1
      %s3114 = smul.addr %s3113, 32
      %s3115 = smul.addr %s3114, 4
      %s3116 = scalar_lea.vmem %s4, %s3115
      %p3117 = scmp.lt.s32.totalorder %s17, 1
      %s3118 = scalar_select %p3117, %s17, 1
      %s3119 = smul.addr %s3118, 8
      %s3120 = scalar_lea.vmem %s5, %s3119
      // Predicated region
      $region37: #{conv_block_forward.3} parent=35 // pred_check
        %p3121 = pneg %p124
      $region38: #{conv_block_forward.3} parent=35 // pred_check_branch
        %3123 = sbr.rel (%p3121) target = $region40
      $region39: #{conv_block_forward.3} parent=35 // pred_region
        _
      $region40: #{conv_block_forward.3} parent=35 // pred_fallthru
        _
      // Predicated region
      $region41: #{conv_block_forward.3} parent=35 // pred_check
        %p3124 = pneg %p150
      $region42: #{conv_block_forward.3} parent=35 // pred_check_branch
        %3126 = sbr.rel (%p3124) target = $region44
      $region43: #{conv_block_forward.3} parent=35 // pred_region
        _
      $region44: #{conv_block_forward.3} parent=35 // pred_fallthru
        _
    $region36: #{conv_block_forward.3} parent=5 // pred_fallthru
      _
    %p3127 = scmp.le.s32.totalorder 2, %s12
    // Predicated region
    $region45: #{conv_block_forward.3} parent=5 // pred_check
      %p3128 = pneg %p3127
    $region46: #{conv_block_forward.3} parent=5 // pred_check_branch
      %3130 = sbr.rel (%p3128) target = $region48
    $region47: #{conv_block_forward.3} parent=5 // pred_region
      %s3131 = ssub.s32 %s12, 2
      // Predicated region
      $region49: #{conv_block_forward.3} parent=47 // pred_check
        %p3132 = pneg %p130
      $region50: #{conv_block_forward.3} parent=47 // pred_check_branch
        %3134 = sbr.rel (%p3132) target = $region52
      $region51: #{conv_block_forward.3} parent=47 // pred_region
        %p3135 = scmp.lt.s32.totalorder %s18, 1
        %s3136 = scalar_select %p3135, %s18, 1
        %s3137 = smul.addr %s3136, 32
        %s3138 = smul.addr %s3137, 4
        %s3139 = scalar_lea.vmem %s4, %s3138
      $region52: #{conv_block_forward.3} parent=47 // pred_fallthru
        _
      // Predicated region
      $region53: #{conv_block_forward.3} parent=47 // pred_check
        %p3140 = pneg %p156
      $region54: #{conv_block_forward.3} parent=47 // pred_check_branch
        %3142 = sbr.rel (%p3140) target = $region56
      $region55: #{conv_block_forward.3} parent=47 // pred_region
        %p3143 = scmp.lt.s32.totalorder %s18, 1
        %s3144 = scalar_select %p3143, %s18, 1
        %s3145 = smul.addr %s3144, 8
        %s3146 = scalar_lea.vmem %s5, %s3145
      $region56: #{conv_block_forward.3} parent=47 // pred_fallthru
        _
    $region48: #{conv_block_forward.3} parent=5 // pred_fallthru
      _
  $region6: #{conv_block_forward.3} parent=0 // loop_footer
    %s16 = sadd.s32 1, %s12
  $region7: #{conv_block_forward.3} parent=0 // loop_footer_branch
    %11 = sbr.rel target = $region3
  $region8: #{conv_block_forward.3} parent=0 // loop_exit
    _

</llo_original>
